<compile_context>
chip_gen: v6e
topology: v6e:2x2x1
jax: 0.10.0
libtpu: 0.0.40
codegen_flags: <defaults>
</compile_context>

<pallas_src>
import jax
import jax.numpy as jnp
from jax.experimental import pallas as pl
from jax.experimental.pallas import tpu as pltpu


def _graph_conv_kernel(x_ref, w_ref, a_ref, bias_ref, o_ref):
    # x_ref   : (1, Tt, Vp, C)     input tile, channels on lanes
    # w_ref   : (C, K*Cout)        1x1-conv weight, transposed (resident)
    # a_ref   : (K, Tt, Vp, Vp)    A[k]^T broadcast over the T tile (resident)
    # bias_ref: (Vp, Cout)         sum_k b_k (x) colsum(A_k)  (resident, f32)
    # o_ref   : (1, Tt, Vp, Cout)
    tt, vp, c = x_ref.shape[1], x_ref.shape[2], x_ref.shape[3]
    k_parts = a_ref.shape[0]
    cout = bias_ref.shape[1]

    # Merge *leading* dims only (Vp % 8 == 0) -> layout-preserving, no data movement.
    x2 = x_ref[0].reshape(tt * vp, c)                          # (Tt*Vp, C)
    w = w_ref[...]                                             # (C, K*Cout)

    acc = None
    for k in range(k_parts):                                   # K is small & static
        # 1x1 conv slice for partition k: (Tt*Vp, C) @ (C, Cout), f32 accumulation.
        yk = jnp.dot(x2, w[:, k * cout:(k + 1) * cout],
                     preferred_element_type=jnp.float32)       # (Tt*Vp, Cout)
        yk = yk.reshape(tt, vp, cout)                          # leading-dim split: free
        # Graph aggregation: for every t in the tile, A[k]^T (Vp,Vp) @ y_k[t] (Vp,Cout).
        zk = jnp.einsum('twv,tvo->two', a_ref[k], yk,
                        preferred_element_type=jnp.float32)    # (Tt, Vp, Cout)
        acc = zk if acc is None else acc + zk

    acc = acc + bias_ref[...][None]                            # folded conv bias
    o_ref[0] = acc.astype(o_ref.dtype)


def graph_conv(x, W, b, A, *, t_tile=128):
    """ST-GCN graph convolution.

    Args:
      x: (N, C, T, V) input.
      W: (K*Cout, C) 1x1-conv weight (Conv2d weight with the 1x1 dims squeezed).
      b: (K*Cout,)   conv bias.
      A: (K, V, V)   adjacency partitions.
    Returns:
      (N, Cout, T, V) output, same dtype as x.
    """
    N, C, T, V = x.shape
    K = A.shape[0]
    Cout = W.shape[0] // K
    Vp = ((V + 7) // 8) * 8                      # pad vertices to a sublane multiple

    # Largest T tile (<= t_tile) that divides T evenly.
    Tt = max(d for d in range(1, min(T, t_tile) + 1) if T % d == 0)

    # ---- wrapper-side layout plumbing (plain XLA, outside the kernel) ----
    xt = jnp.transpose(x, (0, 2, 3, 1))                        # (N, T, V, C)
    if Vp != V:
        xt = jnp.pad(xt, ((0, 0), (0, 0), (0, Vp - V), (0, 0)))
    w2t = jnp.transpose(W.reshape(K * Cout, C))                # (C, K*Cout)

    A32 = A.astype(jnp.float32)
    if Vp != V:
        A32 = jnp.pad(A32, ((0, 0), (0, Vp - V), (0, Vp - V)))
    # A[k]^T broadcast over the T tile so the in-kernel graph contraction is a plain
    # batched matmul (batch = t).  Tiny; loaded once and kept resident in VMEM.
    atb = jnp.broadcast_to(jnp.transpose(A32, (0, 2, 1))[:, None],
                           (K, Tt, Vp, Vp))
    # Bias folded through the graph contraction: sum_k b_k (x) colsum(A_k).
    colsum = jnp.sum(A32, axis=1)                              # (K, Vp)
    bias2 = jnp.einsum('kw,ko->wo', colsum,
                       b.reshape(K, Cout).astype(jnp.float32))  # (Vp, Cout)

    out_p = pl.pallas_call(
        _graph_conv_kernel,
        out_shape=jax.ShapeDtypeStruct((N, T, Vp, Cout), x.dtype),
        grid=(N, T // Tt),
        in_specs=[
            pl.BlockSpec((1, Tt, Vp, C), lambda n, t: (n, t, 0, 0)),
            pl.BlockSpec((C, K * Cout), lambda n, t: (0, 0)),
            pl.BlockSpec((K, Tt, Vp, Vp), lambda n, t: (0, 0, 0, 0)),
            pl.BlockSpec((Vp, Cout), lambda n, t: (0, 0)),
        ],
        out_specs=pl.BlockSpec((1, Tt, Vp, Cout), lambda n, t: (n, t, 0, 0)),
        compiler_params=pltpu.CompilerParams(
            dimension_semantics=("parallel", "parallel"),
            vmem_limit_bytes=64 * 1024 * 1024,
        ),
    )(xt, w2t, atb, bias2)

    out = out_p[:, :, :V, :]                                   # drop vertex padding
    return jnp.transpose(out, (0, 3, 1, 2))                    # (N, Cout, T, V)


def graph_conv_reference(x, W, b, A):
    N, C, T, V = x.shape
    K = A.shape[0]
    Cout = W.shape[0] // K
    y = jnp.einsum('oc,nctv->notv', W, x) + b[None, :, None, None]
    y = y.reshape(N, K, Cout, T, V)
    return jnp.einsum('nkctv,kvw->nctw', y, A)


if __name__ == "__main__":
    # Small deterministic shapes consistent with the module; V=25 (skeleton joints)
    # exercises the vertex-padding path, t_tile=8 exercises the T-tiled grid.
    N, C, T, V = 2, 4, 16, 25     # batch, in_channels, time, vertices
    K, Cout = 3, 8                # adjacency partitions, out_channels

    key = jax.random.PRNGKey(0)
    kx, kw, kb, ka = jax.random.split(key, 4)

    x = jax.random.normal(kx, (N, C, T, V), dtype=jnp.float32)
    # Conv2d(C, Cout*K, kernel_size=1) weight is (Cout*K, C, 1, 1) -> squeeze to (Cout*K, C).
    W = jax.random.normal(kw, (Cout * K, C), dtype=jnp.float32) * 0.1
    b = jax.random.normal(kb, (Cout * K,), dtype=jnp.float32) * 0.1
    A = jax.random.uniform(ka, (K, V, V), dtype=jnp.float32)

    out = graph_conv(x, W, b, A, t_tile=8)
    jax.block_until_ready(out)

    ref = graph_conv_reference(x, W, b, A)
    assert out.shape == (N, Cout, T, V)
    assert jnp.allclose(out, ref, atol=1e-3, rtol=1e-3), "mismatch vs reference"

    print("KERNEL_OK")
</pallas_src>

<mosaic_0001>
module attributes {stable_mosaic.version = 11 : i64} {
  func.func @_graph_conv_kernel(%arg0: i32, %arg1: i32, %arg2: memref<1x8x32x4xf32, #tpu.memory_space<vmem>>, %arg3: memref<4x24xf32, #tpu.memory_space<vmem>>, %arg4: memref<3x8x32x32xf32, #tpu.memory_space<vmem>>, %arg5: memref<32x8xf32, #tpu.memory_space<vmem>>, %arg6: memref<1x8x32x8xf32, #tpu.memory_space<vmem>>) attributes {dimension_semantics = [#tpu.dimension_semantics<parallel>, #tpu.dimension_semantics<parallel>], iteration_bounds = array<i64: 2, 2>, scalar_prefetch = 0 : i64, scratch_operands = 0 : i64, tpu.core_type = #tpu.core_type<tc>, window_params = [{transform_indices = @transform_0, window_bounds = array<i64: 1, 8, 32, 4>}, {pipeline_mode = #tpu.pipeline_mode<synchronous>, transform_indices = @transform_1, window_bounds = array<i64: 4, 24>}, {pipeline_mode = #tpu.pipeline_mode<synchronous>, transform_indices = @transform_2, window_bounds = array<i64: 3, 8, 32, 32>}, {pipeline_mode = #tpu.pipeline_mode<synchronous>, transform_indices = @transform_3, window_bounds = array<i64: 32, 8>}, {transform_indices = @transform_4, window_bounds = array<i64: 1, 8, 32, 8>}]} {
    %c0 = arith.constant 0 : index
    %c0_0 = arith.constant 0 : index
    %c0_1 = arith.constant 0 : index
    %c0_2 = arith.constant 0 : index
    %0 = vector.load %arg2[%c0, %c0_0, %c0_1, %c0_2] : memref<1x8x32x4xf32, #tpu.memory_space<vmem>>, vector<1x8x32x4xf32>
    %1 = vector.shape_cast %0 : vector<1x8x32x4xf32> to vector<8x32x4xf32>
    %2 = vector.shape_cast %1 : vector<8x32x4xf32> to vector<256x4xf32>
    %c0_3 = arith.constant 0 : index
    %c0_4 = arith.constant 0 : index
    %3 = vector.load %arg3[%c0_3, %c0_4] : memref<4x24xf32, #tpu.memory_space<vmem>>, vector<4x24xf32>
    %4 = vector.extract_strided_slice %3 {offsets = [0, 0], sizes = [4, 8], strides = [1, 1]} : vector<4x24xf32> to vector<4x8xf32>
    %cst = arith.constant dense<0.000000e+00> : vector<256x8xf32>
    %5 = tpu.matmul %2, %4, %cst {dimension_numbers = #tpu.dot_dimension_numbers<[1], [0], [0], [1], [0, 0, 1, 1], [], []>} : vector<256x4xf32>, vector<4x8xf32>, vector<256x8xf32> -> vector<256x8xf32>
    %6 = vector.shape_cast %5 : vector<256x8xf32> to vector<8x32x8xf32>
    %c0_5 = arith.constant 0 : index
    %c0_6 = arith.constant 0 : index
    %c0_7 = arith.constant 0 : index
    %c0_8 = arith.constant 0 : index
    %7 = vector.load %arg4[%c0_5, %c0_6, %c0_7, %c0_8] : memref<3x8x32x32xf32, #tpu.memory_space<vmem>>, vector<1x8x32x32xf32>
    %8 = vector.shape_cast %7 : vector<1x8x32x32xf32> to vector<8x32x32xf32>
    "tpu.trace_start"() <{level = 10 : i32, message = "twv,tvo->two"}> : () -> ()
    %cst_9 = arith.constant dense<0.000000e+00> : vector<8x32x8xf32>
    %9 = tpu.matmul %8, %6, %cst_9 {dimension_numbers = #tpu.dot_dimension_numbers<[2], [1], [1], [2], [0, 0, 0, 1, 1, 2], [0], [0]>} : vector<8x32x32xf32>, vector<8x32x8xf32>, vector<8x32x8xf32> -> vector<8x32x8xf32>
    "tpu.trace_stop"() : () -> ()
    %10 = vector.extract_strided_slice %3 {offsets = [0, 8], sizes = [4, 8], strides = [1, 1]} : vector<4x24xf32> to vector<4x8xf32>
    %cst_10 = arith.constant dense<0.000000e+00> : vector<256x8xf32>
    %11 = tpu.matmul %2, %10, %cst_10 {dimension_numbers = #tpu.dot_dimension_numbers<[1], [0], [0], [1], [0, 0, 1, 1], [], []>} : vector<256x4xf32>, vector<4x8xf32>, vector<256x8xf32> -> vector<256x8xf32>
    %12 = vector.shape_cast %11 : vector<256x8xf32> to vector<8x32x8xf32>
    %c1 = arith.constant 1 : index
    %c0_11 = arith.constant 0 : index
    %c0_12 = arith.constant 0 : index
    %c0_13 = arith.constant 0 : index
    %13 = vector.load %arg4[%c1, %c0_11, %c0_12, %c0_13] : memref<3x8x32x32xf32, #tpu.memory_space<vmem>>, vector<1x8x32x32xf32>
    %14 = vector.shape_cast %13 : vector<1x8x32x32xf32> to vector<8x32x32xf32>
    "tpu.trace_start"() <{level = 10 : i32, message = "twv,tvo->two"}> : () -> ()
    %cst_14 = arith.constant dense<0.000000e+00> : vector<8x32x8xf32>
    %15 = tpu.matmul %14, %12, %cst_14 {dimension_numbers = #tpu.dot_dimension_numbers<[2], [1], [1], [2], [0, 0, 0, 1, 1, 2], [0], [0]>} : vector<8x32x32xf32>, vector<8x32x8xf32>, vector<8x32x8xf32> -> vector<8x32x8xf32>
    "tpu.trace_stop"() : () -> ()
    %16 = arith.addf %9, %15 : vector<8x32x8xf32>
    %17 = vector.extract_strided_slice %3 {offsets = [0, 16], sizes = [4, 8], strides = [1, 1]} : vector<4x24xf32> to vector<4x8xf32>
    %cst_15 = arith.constant dense<0.000000e+00> : vector<256x8xf32>
    %18 = tpu.matmul %2, %17, %cst_15 {dimension_numbers = #tpu.dot_dimension_numbers<[1], [0], [0], [1], [0, 0, 1, 1], [], []>} : vector<256x4xf32>, vector<4x8xf32>, vector<256x8xf32> -> vector<256x8xf32>
    %19 = vector.shape_cast %18 : vector<256x8xf32> to vector<8x32x8xf32>
    %c2 = arith.constant 2 : index
    %c0_16 = arith.constant 0 : index
    %c0_17 = arith.constant 0 : index
    %c0_18 = arith.constant 0 : index
    %20 = vector.load %arg4[%c2, %c0_16, %c0_17, %c0_18] : memref<3x8x32x32xf32, #tpu.memory_space<vmem>>, vector<1x8x32x32xf32>
    %21 = vector.shape_cast %20 : vector<1x8x32x32xf32> to vector<8x32x32xf32>
    "tpu.trace_start"() <{level = 10 : i32, message = "twv,tvo->two"}> : () -> ()
    %cst_19 = arith.constant dense<0.000000e+00> : vector<8x32x8xf32>
    %22 = tpu.matmul %21, %19, %cst_19 {dimension_numbers = #tpu.dot_dimension_numbers<[2], [1], [1], [2], [0, 0, 0, 1, 1, 2], [0], [0]>} : vector<8x32x32xf32>, vector<8x32x8xf32>, vector<8x32x8xf32> -> vector<8x32x8xf32>
    "tpu.trace_stop"() : () -> ()
    %23 = arith.addf %16, %22 : vector<8x32x8xf32>
    %c0_20 = arith.constant 0 : index
    %c0_21 = arith.constant 0 : index
    %24 = vector.load %arg5[%c0_20, %c0_21] : memref<32x8xf32, #tpu.memory_space<vmem>>, vector<32x8xf32>
    %25 = vector.shape_cast %24 : vector<32x8xf32> to vector<1x32x8xf32>
    %26 = vector.broadcast %25 : vector<1x32x8xf32> to vector<8x32x8xf32>
    %27 = arith.addf %23, %26 : vector<8x32x8xf32>
    %c0_22 = arith.constant 0 : index
    %c0_23 = arith.constant 0 : index
    %c0_24 = arith.constant 0 : index
    %c0_25 = arith.constant 0 : index
    %28 = vector.load %arg6[%c0_22, %c0_23, %c0_24, %c0_25] : memref<1x8x32x8xf32, #tpu.memory_space<vmem>>, vector<1x8x32x8xf32>
    %29 = vector.shape_cast %28 : vector<1x8x32x8xf32> to vector<8x32x8xf32>
    %30 = vector.shape_cast %27 : vector<8x32x8xf32> to vector<1x8x32x8xf32>
    tpu.vector_store %arg6[%c0_22, %c0_23, %c0_24, %c0_25], %30 {strides = array<i32>} : memref<1x8x32x8xf32, #tpu.memory_space<vmem>>, vector<1x8x32x8xf32>,
    return
  }
  func.func @transform_0(%arg0: i32, %arg1: i32) -> (i32, i32, i32, i32) {
    %c0_i32 = arith.constant 0 : i32
    %c0_i32_0 = arith.constant 0 : i32
    %c0_i32_1 = arith.constant 0 : i32
    return %arg0, %arg1, %c0_i32, %c0_i32_0 : i32, i32, i32, i32
  }
  func.func @transform_1(%arg0: i32, %arg1: i32) -> (i32, i32) {
    %c0_i32 = arith.constant 0 : i32
    %c0_i32_0 = arith.constant 0 : i32
    %c0_i32_1 = arith.constant 0 : i32
    return %c0_i32, %c0_i32_0 : i32, i32
  }
  func.func @transform_2(%arg0: i32, %arg1: i32) -> (i32, i32, i32, i32) {
    %c0_i32 = arith.constant 0 : i32
    %c0_i32_0 = arith.constant 0 : i32
    %c0_i32_1 = arith.constant 0 : i32
    %c0_i32_2 = arith.constant 0 : i32
    %c0_i32_3 = arith.constant 0 : i32
    return %c0_i32, %c0_i32_0, %c0_i32_1, %c0_i32_2 : i32, i32, i32, i32
  }
  func.func @transform_3(%arg0: i32, %arg1: i32) -> (i32, i32) {
    %c0_i32 = arith.constant 0 : i32
    %c0_i32_0 = arith.constant 0 : i32
    %c0_i32_1 = arith.constant 0 : i32
    return %c0_i32, %c0_i32_0 : i32, i32
  }
  func.func @transform_4(%arg0: i32, %arg1: i32) -> (i32, i32, i32, i32) {
    %c0_i32 = arith.constant 0 : i32
    %c0_i32_0 = arith.constant 0 : i32
    %c0_i32_1 = arith.constant 0 : i32
    return %arg0, %arg1, %c0_i32, %c0_i32_0 : i32, i32, i32, i32
  }
}

</mosaic_0001>

<llo_original>
// kernel: tpu_custom_call.1
$region0: #{tpu_custom_call.1}
  #allocation0 [shape = 'u32[]', space=smem, size = 0x4, offset = 0x4, fixed_abs, tag = 'smem constant byte address 0x4 - core index']
  #allocation1 [shape = 'u32[144,128]{1,0:T(1,128)}', space=vmem, size = 0x12000, scoped, tag = 'internal scratch']
  %s0 = inlined_call_operand.vmem [shape: f32[2,16,32,4], index: 0, kind: input, shape index: {}]
  %s1 = inlined_call_operand.vmem [shape: f32[4,24], index: 1, kind: input, shape index: {}]
  %s2 = inlined_call_operand.vmem [shape: f32[3,8,32,32], index: 2, kind: input, shape index: {}]
  %s3 = inlined_call_operand.vmem [shape: f32[32,8], index: 3, kind: input, shape index: {}]
  %s4 = inlined_call_operand.vmem [shape: f32[2,16,32,8], index: 4, kind: output, shape index: {}]
  %s5 = sld [smem:[#allocation0]]
  $region49: #{tpu_custom_call.1} parent=0
    _
  %s7 = ssub.s32 1, %s5
  %s8 = scalar_select 0, %s7, %s5
  loop: start=0, step=1, limit=6
  $region2: #{tpu_custom_call.1} parent=0 // loop_pre_header
    _
  $region3: #{tpu_custom_call.1} parent=0 // loop_header
    %s10 = sphi 0, %s14
    %p11 = scmp.ge.s32.totalorder %s10, 6
    %s17 = sphi 0, %s29
    %s18 = sphi 0, %s25
    %s19 = sphi 0, %s17
    %s20 = sphi 0, %s18
    %s21 = sphi 0, %s19
    %s22 = sphi 0, %s20
    %s34 = sphi 0, %s36
    %s37 = sphi 0, %s34
    %s38 = sphi 0, %s37
    %s54 = sphi 0, %s38
    %s58 = sphi 0, %s58
    %s60 = sphi 0, %s58
    %s61 = sphi 0, %s60
    %s75 = sphi 0, %s61
    %s79 = sphi 0, %s79
    %s81 = sphi 0, %s79
    %s82 = sphi 0, %s81
    %s96 = sphi 0, %s82
    %s100 = sphi 0, %s100
    %s102 = sphi 0, %s100
    %s103 = sphi 0, %s102
    %s117 = sphi 0, %s103
    %s125 = sphi 0, %s127
    %s128 = sphi 0, %s125
    %s129 = sphi 0, %s128
    %s145 = sphi 0, %s129
  $region4: #{tpu_custom_call.1} parent=0 // loop_header_branch
    %13 = sbr.rel (%p11) target = $region8
  $region5: #{tpu_custom_call.1} parent=0 // loop_body
    %s15 = ssub.s32 %s10, 1
    %s16 = ssub.s32 %s10, 2
    %s23 = sadd.s32 1, %s18
    %p24 = scmp.ge.s32.totalorder %s23, 2
    %s25 = scalar_select %p24, 0, %s23
    %s26 = sadd.s32 1, %s17
    %s27 = scalar_select %p24, %s26, %s17
    %p28 = scmp.ge.s32.totalorder %s27, 2
    %s29 = scalar_select %p28, 0, %s27
    %s30 = ssub.s32 %s17, %s29
    %s31 = ssub.s32 %s18, %s25
    %s32 = sor.u32 %s30, %s31
    %p33 = scmp.eq.s32.totalorder %s32, 0
    %s35 = sadd.s32 %s34, 1
    %s36 = scalar_select %p33, %s34, %s35
    %p39 = pneg %p33
    %p40 = scmp.eq.s32.totalorder %s10, 3
    %p41 = por %p39, %p40
    %p42 = scmp.ne.s32.totalorder %s34, %s37
    %p43 = scmp.eq.s32.totalorder %s10, 0
    %p44 = por %p42, %p43
    %p45 = scmp.ne.s32.totalorder %s34, %s37
    %p46 = scmp.eq.s32.totalorder %s15, 3
    %p47 = por %p45, %p46
    %p48 = scmp.ne.s32.totalorder %s37, %s38
    %p49 = scmp.eq.s32.totalorder %s15, 0
    %p50 = por %p48, %p49
    %p51 = scmp.ne.s32.totalorder %s37, %s38
    %p52 = scmp.eq.s32.totalorder %s16, 3
    %p53 = por %p51, %p52
    %p55 = scmp.ne.s32.totalorder %s38, %s54
    %p56 = scmp.eq.s32.totalorder %s16, 0
    %p57 = por %p55, %p56
    %s59 = sadd.s32 %s58, 1
    %p62 = scmp.eq.s32.totalorder %s10, 3
    %p63 = scmp.ne.s32.totalorder %s58, %s60
    %p64 = scmp.eq.s32.totalorder %s10, 0
    %p65 = por %p63, %p64
    %p66 = scmp.ne.s32.totalorder %s58, %s60
    %p67 = scmp.eq.s32.totalorder %s15, 3
    %p68 = por %p66, %p67
    %p69 = scmp.ne.s32.totalorder %s60, %s61
    %p70 = scmp.eq.s32.totalorder %s15, 0
    %p71 = por %p69, %p70
    %p72 = scmp.ne.s32.totalorder %s60, %s61
    %p73 = scmp.eq.s32.totalorder %s16, 3
    %p74 = por %p72, %p73
    %p76 = scmp.ne.s32.totalorder %s61, %s75
    %p77 = scmp.eq.s32.totalorder %s16, 0
    %p78 = por %p76, %p77
    %s80 = sadd.s32 %s79, 1
    %p83 = scmp.eq.s32.totalorder %s10, 3
    %p84 = scmp.ne.s32.totalorder %s79, %s81
    %p85 = scmp.eq.s32.totalorder %s10, 0
    %p86 = por %p84, %p85
    %p87 = scmp.ne.s32.totalorder %s79, %s81
    %p88 = scmp.eq.s32.totalorder %s15, 3
    %p89 = por %p87, %p88
    %p90 = scmp.ne.s32.totalorder %s81, %s82
    %p91 = scmp.eq.s32.totalorder %s15, 0
    %p92 = por %p90, %p91
    %p93 = scmp.ne.s32.totalorder %s81, %s82
    %p94 = scmp.eq.s32.totalorder %s16, 3
    %p95 = por %p93, %p94
    %p97 = scmp.ne.s32.totalorder %s82, %s96
    %p98 = scmp.eq.s32.totalorder %s16, 0
    %p99 = por %p97, %p98
    %s101 = sadd.s32 %s100, 1
    %p104 = scmp.eq.s32.totalorder %s10, 3
    %p105 = scmp.ne.s32.totalorder %s100, %s102
    %p106 = scmp.eq.s32.totalorder %s10, 0
    %p107 = por %p105, %p106
    %p108 = scmp.ne.s32.totalorder %s100, %s102
    %p109 = scmp.eq.s32.totalorder %s15, 3
    %p110 = por %p108, %p109
    %p111 = scmp.ne.s32.totalorder %s102, %s103
    %p112 = scmp.eq.s32.totalorder %s15, 0
    %p113 = por %p111, %p112
    %p114 = scmp.ne.s32.totalorder %s102, %s103
    %p115 = scmp.eq.s32.totalorder %s16, 3
    %p116 = por %p114, %p115
    %p118 = scmp.ne.s32.totalorder %s103, %s117
    %p119 = scmp.eq.s32.totalorder %s16, 0
    %p120 = por %p118, %p119
    %s121 = ssub.s32 %s17, %s29
    %s122 = ssub.s32 %s18, %s25
    %s123 = sor.u32 %s121, %s122
    %p124 = scmp.eq.s32.totalorder %s123, 0
    %s126 = sadd.s32 %s125, 1
    %s127 = scalar_select %p124, %s125, %s126
    %p130 = pneg %p124
    %p131 = scmp.eq.s32.totalorder %s10, 3
    %p132 = por %p130, %p131
    %p133 = scmp.ne.s32.totalorder %s125, %s128
    %p134 = scmp.eq.s32.totalorder %s10, 0
    %p135 = por %p133, %p134
    %p136 = scmp.ne.s32.totalorder %s125, %s128
    %p137 = scmp.eq.s32.totalorder %s15, 3
    %p138 = por %p136, %p137
    %p139 = scmp.ne.s32.totalorder %s128, %s129
    %p140 = scmp.eq.s32.totalorder %s15, 0
    %p141 = por %p139, %p140
    %p142 = scmp.ne.s32.totalorder %s128, %s129
    %p143 = scmp.eq.s32.totalorder %s16, 3
    %p144 = por %p142, %p143
    %p146 = scmp.ne.s32.totalorder %s129, %s145
    %p147 = scmp.eq.s32.totalorder %s16, 0
    %p148 = por %p146, %p147
    %p149 = scmp.le.s32.totalorder 1, %s10
    %p150 = scmp.lt.s32.totalorder %s10, 5
    %p151 = pnand %p149, %p150
    %p152 = pneg %p151
    // Predicated region
    $region9: #{tpu_custom_call.1} parent=5 // pred_check
      _
    $region10: #{tpu_custom_call.1} parent=5 // pred_check_branch
      %154 = sbr.rel (%p151) target = $region12
    $region11: #{tpu_custom_call.1} parent=5 // pred_region
      %s155 = ssub.s32 %s10, 1
      // Predicated region
      $region13: #{tpu_custom_call.1} parent=11 // pred_check
        %p156 = pneg %p71
      $region14: #{tpu_custom_call.1} parent=11 // pred_check_branch
        %158 = sbr.rel (%p156) target = $region16
      $region15: #{tpu_custom_call.1} parent=11 // pred_region
        _
      $region16: #{tpu_custom_call.1} parent=11 // pred_fallthru
        _
      // Predicated region
      $region17: #{tpu_custom_call.1} parent=11 // pred_check
        %p159 = pneg %p92
      $region18: #{tpu_custom_call.1} parent=11 // pred_check_branch
        %161 = sbr.rel (%p159) target = $region20
      $region19: #{tpu_custom_call.1} parent=11 // pred_region
        _
      $region20: #{tpu_custom_call.1} parent=11 // pred_fallthru
        _
      // Predicated region
      $region21: #{tpu_custom_call.1} parent=11 // pred_check
        %p162 = pneg %p113
      $region22: #{tpu_custom_call.1} parent=11 // pred_check_branch
        %164 = sbr.rel (%p162) target = $region24
      $region23: #{tpu_custom_call.1} parent=11 // pred_region
        _
      $region24: #{tpu_custom_call.1} parent=11 // pred_fallthru
        _
    $region12: #{tpu_custom_call.1} parent=5 // pred_fallthru
      _
    %p165 = scmp.lt.s32.totalorder %s10, 4
    // Predicated region
    $region25: #{tpu_custom_call.1} parent=5 // pred_check
      %p166 = pneg %p165
    $region26: #{tpu_custom_call.1} parent=5 // pred_check_branch
      %168 = sbr.rel (%p166) target = $region28
    $region27: #{tpu_custom_call.1} parent=5 // pred_region
      // Predicated region
      $region29: #{tpu_custom_call.1} parent=27 // pred_check
        %p169 = pneg %p44
      $region30: #{tpu_custom_call.1} parent=27 // pred_check_branch
        %171 = sbr.rel (%p169) target = $region32
      $region31: #{tpu_custom_call.1} parent=27 // pred_region
        %s172 = smul.u32 8, %s18
        %p173 = scmp.lt.s32.totalorder %s17, 1
        %s174 = scalar_select %p173, %s17, 1
        %p175 = scmp.lt.s32.totalorder %s172, 15
        %s176 = scalar_select %p175, %s172, 15
        %s177 = smul.addr %s176, 4
        %s178 = smul.addr %s174, 64
        %s179 = sadd.s32 %s177, %s178
        %s180 = smul.addr %s179, 8
        %s181 = scalar_lea.vmem %s0, %s180
        %s182 = smul.u32 8, %s18
      $region32: #{tpu_custom_call.1} parent=27 // pred_fallthru
        _
    $region28: #{tpu_custom_call.1} parent=5 // pred_fallthru
      _
    %p183 = scmp.le.s32.totalorder 1, %s10
    %p184 = scmp.lt.s32.totalorder %s10, 5
    %p185 = pnand %p183, %p184
    %p186 = pneg %p185
    // Predicated region
    $region33: #{tpu_custom_call.1} parent=5 // pred_check
      _
    $region34: #{tpu_custom_call.1} parent=5 // pred_check_branch
      %188 = sbr.rel (%p185) target = $region36
    $region35: #{tpu_custom_call.1} parent=5 // pred_region
      %s189 = ssub.s32 %s10, 1
      %s190 = smul.u32 8, %s20
      %p191 = scmp.lt.s32.totalorder %s19, 1
      %s192 = scalar_select %p191, %s19, 1
      %p193 = scmp.lt.s32.totalorder %s190, 15
      %s194 = scalar_select %p193, %s190, 15
      %s195 = smul.addr %s194, 4
      %s196 = smul.addr %s192, 64
      %s197 = sadd.s32 %s195, %s196
      %s198 = smul.addr %s197, 8
      %s199 = scalar_lea.vmem %s0, %s198
      %p200 = pneg %p50
      %p201 = pneg %p47
      %p202 = pneg %p71
      %p203 = pneg %p68
      %p204 = pneg %p92
      %p205 = pneg %p89
      %p206 = pneg %p113
      %p207 = pneg %p110
      %p208 = pneg %p141
      %p209 = pneg %p138
      %s210 = smul.u32 8, %s20
      %p211 = scmp.lt.s32.totalorder %s19, 1
      %s212 = scalar_select %p211, %s19, 1
      %p213 = scmp.lt.s32.totalorder %s210, 15
      %s214 = scalar_select %p213, %s210, 15
      %s215 = smul.addr %s214, 4
      %s216 = smul.addr %s212, 64
      %s217 = sadd.s32 %s215, %s216
      %s218 = smul.addr %s217, 8
      %s219 = scalar_lea.vmem %s4, %s218
      %s220 = smul.u32 8, %s20
      %p221 = scmp.lt.s32.totalorder %s19, 1
      %s222 = scalar_select %p221, %s19, 1
      %p223 = scmp.lt.s32.totalorder %s220, 15
      %s224 = scalar_select %p223, %s220, 15
      %s225 = smul.addr %s224, 4
      %s226 = smul.addr %s222, 64
      %s227 = sadd.s32 %s225, %s226
      %s228 = smul.addr %s227, 8
      %s229 = scalar_lea.vmem %s0, %s228
      %s230 = smul.u32 8, %s20
      %s231 = smul.u32 8, %s20
      %p232 = scmp.lt.s32.totalorder %s19, 1
      %s233 = scalar_select %p232, %s19, 1
      %p234 = scmp.lt.s32.totalorder %s231, 15
      %s235 = scalar_select %p234, %s231, 15
      %s236 = smul.addr %s235, 4
      %s237 = smul.addr %s233, 64
      %s238 = sadd.s32 %s236, %s237
      %s239 = smul.addr %s238, 8
      %s240 = scalar_lea.vmem %s4, %s239
      %s241 = smul.u32 8, %s20
      %v242 = vld [vmem:[%s229] sm:$0xff]
      %v243 = vld [vmem:[%s229 + $0x8] sm:$0xff]
      %v244 = vld [vmem:[%s229 + $0x10] sm:$0xff]
      %v245 = vld [vmem:[%s229 + $0x18] sm:$0xff]
      %v246 = vld [vmem:[%s229 + $0x20] sm:$0xff]
      %v247 = vld [vmem:[%s229 + $0x28] sm:$0xff]
      %v248 = vld [vmem:[%s229 + $0x30] sm:$0xff]
      %v249 = vld [vmem:[%s229 + $0x38] sm:$0xff]
      %v250 = vld [vmem:[%s229 + $0x40] sm:$0xff]
      %v251 = vld [vmem:[%s229 + $0x48] sm:$0xff]
      %v252 = vld [vmem:[%s229 + $0x50] sm:$0xff]
      %v253 = vld [vmem:[%s229 + $0x58] sm:$0xff]
      %v254 = vld [vmem:[%s229 + $0x60] sm:$0xff]
      %v255 = vld [vmem:[%s229 + $0x68] sm:$0xff]
      %v256 = vld [vmem:[%s229 + $0x70] sm:$0xff]
      %v257 = vld [vmem:[%s229 + $0x78] sm:$0xff]
      %v258 = vld [vmem:[%s229 + $0x80] sm:$0xff]
      %v259 = vld [vmem:[%s229 + $0x88] sm:$0xff]
      %v260 = vld [vmem:[%s229 + $0x90] sm:$0xff]
      %v261 = vld [vmem:[%s229 + $0x98] sm:$0xff]
      %v262 = vld [vmem:[%s229 + $0xa0] sm:$0xff]
      %v263 = vld [vmem:[%s229 + $0xa8] sm:$0xff]
      %v264 = vld [vmem:[%s229 + $0xb0] sm:$0xff]
      %v265 = vld [vmem:[%s229 + $0xb8] sm:$0xff]
      %v266 = vld [vmem:[%s229 + $0xc0] sm:$0xff]
      %v267 = vld [vmem:[%s229 + $0xc8] sm:$0xff]
      %v268 = vld [vmem:[%s229 + $0xd0] sm:$0xff]
      %v269 = vld [vmem:[%s229 + $0xd8] sm:$0xff]
      %v270 = vld [vmem:[%s229 + $0xe0] sm:$0xff]
      %v271 = vld [vmem:[%s229 + $0xe8] sm:$0xff]
      %v272 = vld [vmem:[%s229 + $0xf0] sm:$0xff]
      %v273 = vld [vmem:[%s229 + $0xf8] sm:$0xff]
      %v274 = vld [vmem:[%s1] sm:$0xf]
      %vm275 = vcmask 31744
      %v277 = vsel %vm275, %v242, 0
      %v280 = vsel %vm275, %v243, 0
      %v283 = vsel %vm275, %v244, 0
      %v286 = vsel %vm275, %v245, 0
      %v289 = vsel %vm275, %v246, 0
      %v292 = vsel %vm275, %v247, 0
      %v295 = vsel %vm275, %v248, 0
      %v298 = vsel %vm275, %v249, 0
      %v301 = vsel %vm275, %v250, 0
      %v304 = vsel %vm275, %v251, 0
      %v307 = vsel %vm275, %v252, 0
      %v310 = vsel %vm275, %v253, 0
      %v313 = vsel %vm275, %v254, 0
      %v316 = vsel %vm275, %v255, 0
      %v319 = vsel %vm275, %v256, 0
      %v322 = vsel %vm275, %v257, 0
      %v325 = vsel %vm275, %v258, 0
      %v328 = vsel %vm275, %v259, 0
      %v331 = vsel %vm275, %v260, 0
      %v334 = vsel %vm275, %v261, 0
      %v337 = vsel %vm275, %v262, 0
      %v340 = vsel %vm275, %v263, 0
      %v343 = vsel %vm275, %v264, 0
      %v346 = vsel %vm275, %v265, 0
      %v349 = vsel %vm275, %v266, 0
      %v352 = vsel %vm275, %v267, 0
      %v355 = vsel %vm275, %v268, 0
      %v358 = vsel %vm275, %v269, 0
      %v361 = vsel %vm275, %v270, 0
      %v364 = vsel %vm275, %v271, 0
      %v367 = vsel %vm275, %v272, 0
      %v370 = vsel %vm275, %v273, 0
      %vm372 = vcmask 1043456
      %v374 = vsel %vm372, %v274, 0
      %376 = vmatprep.subr.mxu0 0.0
      %377 = vmatpush1.msra.mxu0 0.0
      %378 = vmatprep.subr.mxu0 0.0
      %379 = vmatpush1.msra.mxu0 0.0
      %380 = vmatprep.subr.mxu0 0.0
      %381 = vmatpush1.msra.mxu0 0.0
      %382 = vmatprep.subr.mxu0 0.0
      %383 = vmatpush1.msra.mxu0 0.0
      %384 = vmatprep.subr.mxu0 0.0
      %385 = vmatpush1.msra.mxu0 0.0
      %386 = vmatprep.subr.mxu0 0.0
      %387 = vmatpush1.msra.mxu0 0.0
      %388 = vmatprep.subr.mxu0 0.0
      %389 = vmatpush1.msra.mxu0 0.0
      %390 = vmatprep.subr.mxu0 0.0
      %391 = vmatpush1.msra.mxu0 0.0
      %392 = vmatprep.subr.mxu0 0.0
      %393 = vmatpush1.msra.mxu0 0.0
      %394 = vmatprep.subr.mxu0 0.0
      %395 = vmatpush1.msra.mxu0 0.0
      %396 = vmatprep.subr.mxu0 0.0
      %397 = vmatpush1.msra.mxu0 0.0
      %398 = vmatprep.subr.mxu0 0.0
      %399 = vmatpush1.msra.mxu0 0.0
      %400 = vmatprep.subr.mxu0 0.0
      %401 = vmatpush1.msra.mxu0 0.0
      %402 = vmatprep.subr.mxu0 0.0
      %403 = vmatpush1.msra.mxu0 0.0
      %404 = vmatprep.subr.mxu0 0.0
      %405 = vmatpush1.msra.mxu0 0.0
      %406 = vmatprep.subr.mxu0 0.0
      %407 = vmatpush1.msra.mxu0 %v374
      %408 = vmatprep.subr.mxu0 0.0
      %409 = vmatpush2.msra.mxu0 0.0
      %410 = vmatprep.subr.mxu0 0.0
      %411 = vmatpush2.msra.mxu0 0.0
      %412 = vmatprep.subr.mxu0 0.0
      %413 = vmatpush2.msra.mxu0 0.0
      %414 = vmatprep.subr.mxu0 0.0
      %415 = vmatpush2.msra.mxu0 0.0
      %416 = vmatprep.subr.mxu0 0.0
      %417 = vmatpush2.msra.mxu0 0.0
      %418 = vmatprep.subr.mxu0 0.0
      %419 = vmatpush2.msra.mxu0 0.0
      %420 = vmatprep.subr.mxu0 0.0
      %421 = vmatpush2.msra.mxu0 0.0
      %422 = vmatprep.subr.mxu0 0.0
      %423 = vmatpush2.msra.mxu0 0.0
      %424 = vmatprep.subr.mxu0 0.0
      %425 = vmatpush2.msra.mxu0 0.0
      %426 = vmatprep.subr.mxu0 0.0
      %427 = vmatpush2.msra.mxu0 0.0
      %428 = vmatprep.subr.mxu0 0.0
      %429 = vmatpush2.msra.mxu0 0.0
      %430 = vmatprep.subr.mxu0 0.0
      %431 = vmatpush2.msra.mxu0 0.0
      %432 = vmatprep.subr.mxu0 0.0
      %433 = vmatpush2.msra.mxu0 0.0
      %434 = vmatprep.subr.mxu0 0.0
      %435 = vmatpush2.msra.mxu0 0.0
      %436 = vmatprep.subr.mxu0 0.0
      %437 = vmatpush2.msra.mxu0 0.0
      %438 = vmatprep.subr.mxu0 0.0
      %439 = vmatpush2.msra.mxu0 0.0
      %440 = vmatprep.mubr.f32.mxu0 0.0
      %441 = vmatmul.mubr.f32.gmra.mxu0 %v277
      %v442 = vpop.f32.mrf.mxu0
      %v443 = vadd.f32 0.0, %v442
      %v444 = vpop.f32.mrf.mxu0
      %445 = vmatprep.mubr.f32.mxu0 0.0
      %446 = vmatmul.mubr.f32.gmra.mxu0 %v280
      %v447 = vpop.f32.mrf.mxu0
      %v448 = vadd.f32 0.0, %v447
      %v449 = vpop.f32.mrf.mxu0
      %450 = vmatprep.mubr.f32.mxu0 0.0
      %451 = vmatmul.mubr.f32.gmra.mxu0 %v283
      %v452 = vpop.f32.mrf.mxu0
      %v453 = vadd.f32 0.0, %v452
      %v454 = vpop.f32.mrf.mxu0
      %455 = vmatprep.mubr.f32.mxu0 0.0
      %456 = vmatmul.mubr.f32.gmra.mxu0 %v286
      %v457 = vpop.f32.mrf.mxu0
      %v458 = vadd.f32 0.0, %v457
      %v459 = vpop.f32.mrf.mxu0
      %460 = vmatprep.mubr.f32.mxu0 0.0
      %461 = vmatmul.mubr.f32.gmra.mxu0 %v289
      %v462 = vpop.f32.mrf.mxu0
      %v463 = vadd.f32 0.0, %v462
      %v464 = vpop.f32.mrf.mxu0
      %465 = vmatprep.mubr.f32.mxu0 0.0
      %466 = vmatmul.mubr.f32.gmra.mxu0 %v292
      %v467 = vpop.f32.mrf.mxu0
      %v468 = vadd.f32 0.0, %v467
      %v469 = vpop.f32.mrf.mxu0
      %470 = vmatprep.mubr.f32.mxu0 0.0
      %471 = vmatmul.mubr.f32.gmra.mxu0 %v295
      %v472 = vpop.f32.mrf.mxu0
      %v473 = vadd.f32 0.0, %v472
      %v474 = vpop.f32.mrf.mxu0
      %475 = vmatprep.mubr.f32.mxu0 0.0
      %476 = vmatmul.mubr.f32.gmra.mxu0 %v298
      %v477 = vpop.f32.mrf.mxu0
      %v478 = vadd.f32 0.0, %v477
      %v479 = vpop.f32.mrf.mxu0
      %480 = vmatprep.mubr.f32.mxu0 0.0
      %481 = vmatmul.mubr.f32.gmra.mxu0 %v301
      %v482 = vpop.f32.mrf.mxu0
      %v483 = vadd.f32 0.0, %v482
      %v484 = vpop.f32.mrf.mxu0
      %485 = vmatprep.mubr.f32.mxu0 0.0
      %486 = vmatmul.mubr.f32.gmra.mxu0 %v304
      %v487 = vpop.f32.mrf.mxu0
      %v488 = vadd.f32 0.0, %v487
      %v489 = vpop.f32.mrf.mxu0
      %490 = vmatprep.mubr.f32.mxu0 0.0
      %491 = vmatmul.mubr.f32.gmra.mxu0 %v307
      %v492 = vpop.f32.mrf.mxu0
      %v493 = vadd.f32 0.0, %v492
      %v494 = vpop.f32.mrf.mxu0
      %495 = vmatprep.mubr.f32.mxu0 0.0
      %496 = vmatmul.mubr.f32.gmra.mxu0 %v310
      %v497 = vpop.f32.mrf.mxu0
      %v498 = vadd.f32 0.0, %v497
      %v499 = vpop.f32.mrf.mxu0
      %500 = vmatprep.mubr.f32.mxu0 0.0
      %501 = vmatmul.mubr.f32.gmra.mxu0 %v313
      %v502 = vpop.f32.mrf.mxu0
      %v503 = vadd.f32 0.0, %v502
      %v504 = vpop.f32.mrf.mxu0
      %505 = vmatprep.mubr.f32.mxu0 0.0
      %506 = vmatmul.mubr.f32.gmra.mxu0 %v316
      %v507 = vpop.f32.mrf.mxu0
      %v508 = vadd.f32 0.0, %v507
      %v509 = vpop.f32.mrf.mxu0
      %510 = vmatprep.mubr.f32.mxu0 0.0
      %511 = vmatmul.mubr.f32.gmra.mxu0 %v319
      %v512 = vpop.f32.mrf.mxu0
      %v513 = vadd.f32 0.0, %v512
      %v514 = vpop.f32.mrf.mxu0
      %515 = vmatprep.mubr.f32.mxu0 0.0
      %516 = vmatmul.mubr.f32.gmra.mxu0 %v322
      %v517 = vpop.f32.mrf.mxu0
      %v518 = vadd.f32 0.0, %v517
      %v519 = vpop.f32.mrf.mxu0
      %520 = vmatprep.mubr.f32.mxu0 0.0
      %521 = vmatmul.mubr.f32.gmra.mxu0 %v325
      %v522 = vpop.f32.mrf.mxu0
      %v523 = vadd.f32 0.0, %v522
      %v524 = vpop.f32.mrf.mxu0
      %525 = vmatprep.mubr.f32.mxu0 0.0
      %526 = vmatmul.mubr.f32.gmra.mxu0 %v328
      %v527 = vpop.f32.mrf.mxu0
      %v528 = vadd.f32 0.0, %v527
      %v529 = vpop.f32.mrf.mxu0
      %530 = vmatprep.mubr.f32.mxu0 0.0
      %531 = vmatmul.mubr.f32.gmra.mxu0 %v331
      %v532 = vpop.f32.mrf.mxu0
      %v533 = vadd.f32 0.0, %v532
      %v534 = vpop.f32.mrf.mxu0
      %535 = vmatprep.mubr.f32.mxu0 0.0
      %536 = vmatmul.mubr.f32.gmra.mxu0 %v334
      %v537 = vpop.f32.mrf.mxu0
      %v538 = vadd.f32 0.0, %v537
      %v539 = vpop.f32.mrf.mxu0
      %540 = vmatprep.mubr.f32.mxu0 0.0
      %541 = vmatmul.mubr.f32.gmra.mxu0 %v337
      %v542 = vpop.f32.mrf.mxu0
      %v543 = vadd.f32 0.0, %v542
      %v544 = vpop.f32.mrf.mxu0
      %545 = vmatprep.mubr.f32.mxu0 0.0
      %546 = vmatmul.mubr.f32.gmra.mxu0 %v340
      %v547 = vpop.f32.mrf.mxu0
      %v548 = vadd.f32 0.0, %v547
      %v549 = vpop.f32.mrf.mxu0
      %550 = vmatprep.mubr.f32.mxu0 0.0
      %551 = vmatmul.mubr.f32.gmra.mxu0 %v343
      %v552 = vpop.f32.mrf.mxu0
      %v553 = vadd.f32 0.0, %v552
      %v554 = vpop.f32.mrf.mxu0
      %555 = vmatprep.mubr.f32.mxu0 0.0
      %556 = vmatmul.mubr.f32.gmra.mxu0 %v346
      %v557 = vpop.f32.mrf.mxu0
      %v558 = vadd.f32 0.0, %v557
      %v559 = vpop.f32.mrf.mxu0
      %560 = vmatprep.mubr.f32.mxu0 0.0
      %561 = vmatmul.mubr.f32.gmra.mxu0 %v349
      %v562 = vpop.f32.mrf.mxu0
      %v563 = vadd.f32 0.0, %v562
      %v564 = vpop.f32.mrf.mxu0
      %565 = vmatprep.mubr.f32.mxu0 0.0
      %566 = vmatmul.mubr.f32.gmra.mxu0 %v352
      %v567 = vpop.f32.mrf.mxu0
      %v568 = vadd.f32 0.0, %v567
      %v569 = vpop.f32.mrf.mxu0
      %570 = vmatprep.mubr.f32.mxu0 0.0
      %571 = vmatmul.mubr.f32.gmra.mxu0 %v355
      %v572 = vpop.f32.mrf.mxu0
      %v573 = vadd.f32 0.0, %v572
      %v574 = vpop.f32.mrf.mxu0
      %575 = vmatprep.mubr.f32.mxu0 0.0
      %576 = vmatmul.mubr.f32.gmra.mxu0 %v358
      %v577 = vpop.f32.mrf.mxu0
      %v578 = vadd.f32 0.0, %v577
      %v579 = vpop.f32.mrf.mxu0
      %580 = vmatprep.mubr.f32.mxu0 0.0
      %581 = vmatmul.mubr.f32.gmra.mxu0 %v361
      %v582 = vpop.f32.mrf.mxu0
      %v583 = vadd.f32 0.0, %v582
      %v584 = vpop.f32.mrf.mxu0
      %585 = vmatprep.mubr.f32.mxu0 0.0
      %586 = vmatmul.mubr.f32.gmra.mxu0 %v364
      %v587 = vpop.f32.mrf.mxu0
      %v588 = vadd.f32 0.0, %v587
      %v589 = vpop.f32.mrf.mxu0
      %590 = vmatprep.mubr.f32.mxu0 0.0
      %591 = vmatmul.mubr.f32.gmra.mxu0 %v367
      %v592 = vpop.f32.mrf.mxu0
      %v593 = vadd.f32 0.0, %v592
      %v594 = vpop.f32.mrf.mxu0
      %595 = vmatprep.mubr.f32.mxu0 0.0
      %596 = vmatmul.mubr.f32.gmra.mxu0 %v370
      %v597 = vpop.f32.mrf.mxu0
      %v598 = vadd.f32 0.0, %v597
      %v599 = vpop.f32.mrf.mxu0
      %600 = vdwg.mxu0
      %v601 = vld [vmem:[%s2] sm:$0xff]
      %v602 = vld [vmem:[%s2 + $0x8] sm:$0xff]
      %v603 = vld [vmem:[%s2 + $0x10] sm:$0xff]
      %v604 = vld [vmem:[%s2 + $0x18] sm:$0xff]
      %v605 = vld [vmem:[%s2 + $0x20] sm:$0xff]
      %v606 = vld [vmem:[%s2 + $0x28] sm:$0xff]
      %v607 = vld [vmem:[%s2 + $0x30] sm:$0xff]
      %v608 = vld [vmem:[%s2 + $0x38] sm:$0xff]
      %v609 = vld [vmem:[%s2 + $0x40] sm:$0xff]
      %v610 = vld [vmem:[%s2 + $0x48] sm:$0xff]
      %v611 = vld [vmem:[%s2 + $0x50] sm:$0xff]
      %v612 = vld [vmem:[%s2 + $0x58] sm:$0xff]
      %v613 = vld [vmem:[%s2 + $0x60] sm:$0xff]
      %v614 = vld [vmem:[%s2 + $0x68] sm:$0xff]
      %v615 = vld [vmem:[%s2 + $0x70] sm:$0xff]
      %v616 = vld [vmem:[%s2 + $0x78] sm:$0xff]
      %v617 = vld [vmem:[%s2 + $0x80] sm:$0xff]
      %v618 = vld [vmem:[%s2 + $0x88] sm:$0xff]
      %v619 = vld [vmem:[%s2 + $0x90] sm:$0xff]
      %v620 = vld [vmem:[%s2 + $0x98] sm:$0xff]
      %v621 = vld [vmem:[%s2 + $0xa0] sm:$0xff]
      %v622 = vld [vmem:[%s2 + $0xa8] sm:$0xff]
      %v623 = vld [vmem:[%s2 + $0xb0] sm:$0xff]
      %v624 = vld [vmem:[%s2 + $0xb8] sm:$0xff]
      %v625 = vld [vmem:[%s2 + $0xc0] sm:$0xff]
      %v626 = vld [vmem:[%s2 + $0xc8] sm:$0xff]
      %v627 = vld [vmem:[%s2 + $0xd0] sm:$0xff]
      %v628 = vld [vmem:[%s2 + $0xd8] sm:$0xff]
      %v629 = vld [vmem:[%s2 + $0xe0] sm:$0xff]
      %v630 = vld [vmem:[%s2 + $0xe8] sm:$0xff]
      %v631 = vld [vmem:[%s2 + $0xf0] sm:$0xff]
      %v632 = vld [vmem:[%s2 + $0xf8] sm:$0xff]
      %633 = vrot.lane.b32.xlu0 %v274, 120
      %v634 = vpop.permute.xlu0 %633
      %v635 = vsel %vm372, %v634, 0
      %637 = vmatprep.subr.mxu0 0.0
      %638 = vmatpush1.msra.mxu0 0.0
      %639 = vmatprep.subr.mxu0 0.0
      %640 = vmatpush1.msra.mxu0 0.0
      %641 = vmatprep.subr.mxu0 0.0
      %642 = vmatpush1.msra.mxu0 0.0
      %643 = vmatprep.subr.mxu0 0.0
      %644 = vmatpush1.msra.mxu0 0.0
      %645 = vmatprep.subr.mxu0 0.0
      %646 = vmatpush1.msra.mxu0 0.0
      %647 = vmatprep.subr.mxu0 0.0
      %648 = vmatpush1.msra.mxu0 0.0
      %649 = vmatprep.subr.mxu0 0.0
      %650 = vmatpush1.msra.mxu0 0.0
      %651 = vmatprep.subr.mxu0 0.0
      %652 = vmatpush1.msra.mxu0 0.0
      %653 = vmatprep.subr.mxu0 0.0
      %654 = vmatpush1.msra.mxu0 0.0
      %655 = vmatprep.subr.mxu0 0.0
      %656 = vmatpush1.msra.mxu0 0.0
      %657 = vmatprep.subr.mxu0 0.0
      %658 = vmatpush1.msra.mxu0 0.0
      %659 = vmatprep.subr.mxu0 0.0
      %660 = vmatpush1.msra.mxu0 0.0
      %661 = vmatprep.subr.mxu0 0.0
      %662 = vmatpush1.msra.mxu0 0.0
      %663 = vmatprep.subr.mxu0 0.0
      %664 = vmatpush1.msra.mxu0 0.0
      %665 = vmatprep.subr.mxu0 0.0
      %666 = vmatpush1.msra.mxu0 0.0
      %667 = vmatprep.subr.mxu0 0.0
      %668 = vmatpush1.msra.mxu0 %v635
      %669 = vmatprep.subr.mxu0 0.0
      %670 = vmatpush2.msra.mxu0 0.0
      %671 = vmatprep.subr.mxu0 0.0
      %672 = vmatpush2.msra.mxu0 0.0
      %673 = vmatprep.subr.mxu0 0.0
      %674 = vmatpush2.msra.mxu0 0.0
      %675 = vmatprep.subr.mxu0 0.0
      %676 = vmatpush2.msra.mxu0 0.0
      %677 = vmatprep.subr.mxu0 0.0
      %678 = vmatpush2.msra.mxu0 0.0
      %679 = vmatprep.subr.mxu0 0.0
      %680 = vmatpush2.msra.mxu0 0.0
      %681 = vmatprep.subr.mxu0 0.0
      %682 = vmatpush2.msra.mxu0 0.0
      %683 = vmatprep.subr.mxu0 0.0
      %684 = vmatpush2.msra.mxu0 0.0
      %685 = vmatprep.subr.mxu0 0.0
      %686 = vmatpush2.msra.mxu0 0.0
      %687 = vmatprep.subr.mxu0 0.0
      %688 = vmatpush2.msra.mxu0 0.0
      %689 = vmatprep.subr.mxu0 0.0
      %690 = vmatpush2.msra.mxu0 0.0
      %691 = vmatprep.subr.mxu0 0.0
      %692 = vmatpush2.msra.mxu0 0.0
      %693 = vmatprep.subr.mxu0 0.0
      %694 = vmatpush2.msra.mxu0 0.0
      %695 = vmatprep.subr.mxu0 0.0
      %696 = vmatpush2.msra.mxu0 0.0
      %697 = vmatprep.subr.mxu0 0.0
      %698 = vmatpush2.msra.mxu0 0.0
      %699 = vmatprep.subr.mxu0 0.0
      %700 = vmatpush2.msra.mxu0 0.0
      %701 = vmatprep.mubr.f32.mxu0 0.0
      %702 = vmatmul.mubr.f32.gmra.mxu0 %v277
      %v703 = vpop.f32.mrf.mxu0
      %v704 = vadd.f32 0.0, %v703
      %v705 = vpop.f32.mrf.mxu0
      %706 = vmatprep.mubr.f32.mxu0 0.0
      %707 = vmatmul.mubr.f32.gmra.mxu0 %v280
      %v708 = vpop.f32.mrf.mxu0
      %v709 = vadd.f32 0.0, %v708
      %v710 = vpop.f32.mrf.mxu0
      %711 = vmatprep.mubr.f32.mxu0 0.0
      %712 = vmatmul.mubr.f32.gmra.mxu0 %v283
      %v713 = vpop.f32.mrf.mxu0
      %v714 = vadd.f32 0.0, %v713
      %v715 = vpop.f32.mrf.mxu0
      %716 = vmatprep.mubr.f32.mxu0 0.0
      %717 = vmatmul.mubr.f32.gmra.mxu0 %v286
      %v718 = vpop.f32.mrf.mxu0
      %v719 = vadd.f32 0.0, %v718
      %v720 = vpop.f32.mrf.mxu0
      %721 = vmatprep.mubr.f32.mxu0 0.0
      %722 = vmatmul.mubr.f32.gmra.mxu0 %v289
      %v723 = vpop.f32.mrf.mxu0
      %v724 = vadd.f32 0.0, %v723
      %v725 = vpop.f32.mrf.mxu0
      %726 = vmatprep.mubr.f32.mxu0 0.0
      %727 = vmatmul.mubr.f32.gmra.mxu0 %v292
      %v728 = vpop.f32.mrf.mxu0
      %v729 = vadd.f32 0.0, %v728
      %v730 = vpop.f32.mrf.mxu0
      %731 = vmatprep.mubr.f32.mxu0 0.0
      %732 = vmatmul.mubr.f32.gmra.mxu0 %v295
      %v733 = vpop.f32.mrf.mxu0
      %v734 = vadd.f32 0.0, %v733
      %v735 = vpop.f32.mrf.mxu0
      %736 = vmatprep.mubr.f32.mxu0 0.0
      %737 = vmatmul.mubr.f32.gmra.mxu0 %v298
      %v738 = vpop.f32.mrf.mxu0
      %v739 = vadd.f32 0.0, %v738
      %v740 = vpop.f32.mrf.mxu0
      %741 = vmatprep.mubr.f32.mxu0 0.0
      %742 = vmatmul.mubr.f32.gmra.mxu0 %v301
      %v743 = vpop.f32.mrf.mxu0
      %v744 = vadd.f32 0.0, %v743
      %v745 = vpop.f32.mrf.mxu0
      %746 = vmatprep.mubr.f32.mxu0 0.0
      %747 = vmatmul.mubr.f32.gmra.mxu0 %v304
      %v748 = vpop.f32.mrf.mxu0
      %v749 = vadd.f32 0.0, %v748
      %v750 = vpop.f32.mrf.mxu0
      %751 = vmatprep.mubr.f32.mxu0 0.0
      %752 = vmatmul.mubr.f32.gmra.mxu0 %v307
      %v753 = vpop.f32.mrf.mxu0
      %v754 = vadd.f32 0.0, %v753
      %v755 = vpop.f32.mrf.mxu0
      %756 = vmatprep.mubr.f32.mxu0 0.0
      %757 = vmatmul.mubr.f32.gmra.mxu0 %v310
      %v758 = vpop.f32.mrf.mxu0
      %v759 = vadd.f32 0.0, %v758
      %v760 = vpop.f32.mrf.mxu0
      %761 = vmatprep.mubr.f32.mxu0 0.0
      %762 = vmatmul.mubr.f32.gmra.mxu0 %v313
      %v763 = vpop.f32.mrf.mxu0
      %v764 = vadd.f32 0.0, %v763
      %v765 = vpop.f32.mrf.mxu0
      %766 = vmatprep.mubr.f32.mxu0 0.0
      %767 = vmatmul.mubr.f32.gmra.mxu0 %v316
      %v768 = vpop.f32.mrf.mxu0
      %v769 = vadd.f32 0.0, %v768
      %v770 = vpop.f32.mrf.mxu0
      %771 = vmatprep.mubr.f32.mxu0 0.0
      %772 = vmatmul.mubr.f32.gmra.mxu0 %v319
      %v773 = vpop.f32.mrf.mxu0
      %v774 = vadd.f32 0.0, %v773
      %v775 = vpop.f32.mrf.mxu0
      %776 = vmatprep.mubr.f32.mxu0 0.0
      %777 = vmatmul.mubr.f32.gmra.mxu0 %v322
      %v778 = vpop.f32.mrf.mxu0
      %v779 = vadd.f32 0.0, %v778
      %v780 = vpop.f32.mrf.mxu0
      %781 = vmatprep.mubr.f32.mxu0 0.0
      %782 = vmatmul.mubr.f32.gmra.mxu0 %v325
      %v783 = vpop.f32.mrf.mxu0
      %v784 = vadd.f32 0.0, %v783
      %v785 = vpop.f32.mrf.mxu0
      %786 = vmatprep.mubr.f32.mxu0 0.0
      %787 = vmatmul.mubr.f32.gmra.mxu0 %v328
      %v788 = vpop.f32.mrf.mxu0
      %v789 = vadd.f32 0.0, %v788
      %v790 = vpop.f32.mrf.mxu0
      %791 = vmatprep.mubr.f32.mxu0 0.0
      %792 = vmatmul.mubr.f32.gmra.mxu0 %v331
      %v793 = vpop.f32.mrf.mxu0
      %v794 = vadd.f32 0.0, %v793
      %v795 = vpop.f32.mrf.mxu0
      %796 = vmatprep.mubr.f32.mxu0 0.0
      %797 = vmatmul.mubr.f32.gmra.mxu0 %v334
      %v798 = vpop.f32.mrf.mxu0
      %v799 = vadd.f32 0.0, %v798
      %v800 = vpop.f32.mrf.mxu0
      %801 = vmatprep.mubr.f32.mxu0 0.0
      %802 = vmatmul.mubr.f32.gmra.mxu0 %v337
      %v803 = vpop.f32.mrf.mxu0
      %v804 = vadd.f32 0.0, %v803
      %v805 = vpop.f32.mrf.mxu0
      %806 = vmatprep.mubr.f32.mxu0 0.0
      %807 = vmatmul.mubr.f32.gmra.mxu0 %v340
      %v808 = vpop.f32.mrf.mxu0
      %v809 = vadd.f32 0.0, %v808
      %v810 = vpop.f32.mrf.mxu0
      %811 = vmatprep.mubr.f32.mxu0 0.0
      %812 = vmatmul.mubr.f32.gmra.mxu0 %v343
      %v813 = vpop.f32.mrf.mxu0
      %v814 = vadd.f32 0.0, %v813
      %v815 = vpop.f32.mrf.mxu0
      %816 = vmatprep.mubr.f32.mxu0 0.0
      %817 = vmatmul.mubr.f32.gmra.mxu0 %v346
      %v818 = vpop.f32.mrf.mxu0
      %v819 = vadd.f32 0.0, %v818
      %v820 = vpop.f32.mrf.mxu0
      %821 = vmatprep.mubr.f32.mxu0 0.0
      %822 = vmatmul.mubr.f32.gmra.mxu0 %v349
      %v823 = vpop.f32.mrf.mxu0
      %v824 = vadd.f32 0.0, %v823
      %v825 = vpop.f32.mrf.mxu0
      %826 = vmatprep.mubr.f32.mxu0 0.0
      %827 = vmatmul.mubr.f32.gmra.mxu0 %v352
      %v828 = vpop.f32.mrf.mxu0
      %v829 = vadd.f32 0.0, %v828
      %v830 = vpop.f32.mrf.mxu0
      %831 = vmatprep.mubr.f32.mxu0 0.0
      %832 = vmatmul.mubr.f32.gmra.mxu0 %v355
      %v833 = vpop.f32.mrf.mxu0
      %v834 = vadd.f32 0.0, %v833
      %v835 = vpop.f32.mrf.mxu0
      %836 = vmatprep.mubr.f32.mxu0 0.0
      %837 = vmatmul.mubr.f32.gmra.mxu0 %v358
      %v838 = vpop.f32.mrf.mxu0
      %v839 = vadd.f32 0.0, %v838
      %v840 = vpop.f32.mrf.mxu0
      %841 = vmatprep.mubr.f32.mxu0 0.0
      %842 = vmatmul.mubr.f32.gmra.mxu0 %v361
      %v843 = vpop.f32.mrf.mxu0
      %v844 = vadd.f32 0.0, %v843
      %v845 = vpop.f32.mrf.mxu0
      %846 = vmatprep.mubr.f32.mxu0 0.0
      %847 = vmatmul.mubr.f32.gmra.mxu0 %v364
      %v848 = vpop.f32.mrf.mxu0
      %v849 = vadd.f32 0.0, %v848
      %v850 = vpop.f32.mrf.mxu0
      %851 = vmatprep.mubr.f32.mxu0 0.0
      %852 = vmatmul.mubr.f32.gmra.mxu0 %v367
      %v853 = vpop.f32.mrf.mxu0
      %v854 = vadd.f32 0.0, %v853
      %v855 = vpop.f32.mrf.mxu0
      %856 = vmatprep.mubr.f32.mxu0 0.0
      %857 = vmatmul.mubr.f32.gmra.mxu0 %v370
      %v858 = vpop.f32.mrf.mxu0
      %v859 = vadd.f32 0.0, %v858
      %v860 = vpop.f32.mrf.mxu0
      %861 = vdwg.mxu0
      %s862 = scalar_lea.vmem %s2, 256
      %v863 = vld [vmem:[%s862] sm:$0xff]
      %v864 = vld [vmem:[%s862 + $0x8] sm:$0xff]
      %v865 = vld [vmem:[%s862 + $0x10] sm:$0xff]
      %v866 = vld [vmem:[%s862 + $0x18] sm:$0xff]
      %v867 = vld [vmem:[%s862 + $0x20] sm:$0xff]
      %v868 = vld [vmem:[%s862 + $0x28] sm:$0xff]
      %v869 = vld [vmem:[%s862 + $0x30] sm:$0xff]
      %v870 = vld [vmem:[%s862 + $0x38] sm:$0xff]
      %v871 = vld [vmem:[%s862 + $0x40] sm:$0xff]
      %v872 = vld [vmem:[%s862 + $0x48] sm:$0xff]
      %v873 = vld [vmem:[%s862 + $0x50] sm:$0xff]
      %v874 = vld [vmem:[%s862 + $0x58] sm:$0xff]
      %v875 = vld [vmem:[%s862 + $0x60] sm:$0xff]
      %v876 = vld [vmem:[%s862 + $0x68] sm:$0xff]
      %v877 = vld [vmem:[%s862 + $0x70] sm:$0xff]
      %v878 = vld [vmem:[%s862 + $0x78] sm:$0xff]
      %v879 = vld [vmem:[%s862 + $0x80] sm:$0xff]
      %v880 = vld [vmem:[%s862 + $0x88] sm:$0xff]
      %v881 = vld [vmem:[%s862 + $0x90] sm:$0xff]
      %v882 = vld [vmem:[%s862 + $0x98] sm:$0xff]
      %v883 = vld [vmem:[%s862 + $0xa0] sm:$0xff]
      %v884 = vld [vmem:[%s862 + $0xa8] sm:$0xff]
      %v885 = vld [vmem:[%s862 + $0xb0] sm:$0xff]
      %v886 = vld [vmem:[%s862 + $0xb8] sm:$0xff]
      %v887 = vld [vmem:[%s862 + $0xc0] sm:$0xff]
      %v888 = vld [vmem:[%s862 + $0xc8] sm:$0xff]
      %v889 = vld [vmem:[%s862 + $0xd0] sm:$0xff]
      %v890 = vld [vmem:[%s862 + $0xd8] sm:$0xff]
      %v891 = vld [vmem:[%s862 + $0xe0] sm:$0xff]
      %v892 = vld [vmem:[%s862 + $0xe8] sm:$0xff]
      %v893 = vld [vmem:[%s862 + $0xf0] sm:$0xff]
      %v894 = vld [vmem:[%s862 + $0xf8] sm:$0xff]
      %vm895 = vcmask 261120
      %v897 = vsel %vm895, %v863, 0
      %v900 = vsel %vm895, %v864, 0
      %v903 = vsel %vm895, %v865, 0
      %v906 = vsel %vm895, %v866, 0
      %908 = vmatprep.subr.mxu0 0.0
      %909 = vmatpush1.msra.mxu0 0.0
      %910 = vmatprep.subr.mxu0 0.0
      %911 = vmatpush1.msra.mxu0 0.0
      %912 = vmatprep.subr.mxu0 0.0
      %913 = vmatpush1.msra.mxu0 0.0
      %914 = vmatprep.subr.mxu0 0.0
      %915 = vmatpush1.msra.mxu0 0.0
      %916 = vmatprep.subr.mxu0 0.0
      %917 = vmatpush1.msra.mxu0 0.0
      %918 = vmatprep.subr.mxu0 0.0
      %919 = vmatpush1.msra.mxu0 0.0
      %920 = vmatprep.subr.mxu0 0.0
      %921 = vmatpush1.msra.mxu0 0.0
      %922 = vmatprep.subr.mxu0 0.0
      %923 = vmatpush1.msra.mxu0 0.0
      %924 = vmatprep.subr.mxu0 0.0
      %925 = vmatpush1.msra.mxu0 0.0
      %926 = vmatprep.subr.mxu0 0.0
      %927 = vmatpush1.msra.mxu0 0.0
      %928 = vmatprep.subr.mxu0 0.0
      %929 = vmatpush1.msra.mxu0 0.0
      %930 = vmatprep.subr.mxu0 0.0
      %931 = vmatpush1.msra.mxu0 0.0
      %932 = vmatprep.subr.mxu0 0.0
      %933 = vmatpush1.msra.mxu0 %v719
      %934 = vmatprep.subr.mxu0 0.0
      %935 = vmatpush1.msra.mxu0 %v714
      %936 = vmatprep.subr.mxu0 0.0
      %937 = vmatpush1.msra.mxu0 %v709
      %938 = vmatprep.subr.mxu0 0.0
      %939 = vmatpush1.msra.mxu0 %v704
      %940 = vmatprep.subr.mxu0 0.0
      %941 = vmatpush2.msra.mxu0 0.0
      %942 = vmatprep.subr.mxu0 0.0
      %943 = vmatpush2.msra.mxu0 0.0
      %944 = vmatprep.subr.mxu0 0.0
      %945 = vmatpush2.msra.mxu0 0.0
      %946 = vmatprep.subr.mxu0 0.0
      %947 = vmatpush2.msra.mxu0 0.0
      %948 = vmatprep.subr.mxu0 0.0
      %949 = vmatpush2.msra.mxu0 0.0
      %950 = vmatprep.subr.mxu0 0.0
      %951 = vmatpush2.msra.mxu0 0.0
      %952 = vmatprep.subr.mxu0 0.0
      %953 = vmatpush2.msra.mxu0 0.0
      %954 = vmatprep.subr.mxu0 0.0
      %955 = vmatpush2.msra.mxu0 0.0
      %956 = vmatprep.subr.mxu0 0.0
      %957 = vmatpush2.msra.mxu0 0.0
      %958 = vmatprep.subr.mxu0 0.0
      %959 = vmatpush2.msra.mxu0 0.0
      %960 = vmatprep.subr.mxu0 0.0
      %961 = vmatpush2.msra.mxu0 0.0
      %962 = vmatprep.subr.mxu0 0.0
      %963 = vmatpush2.msra.mxu0 0.0
      %964 = vmatprep.subr.mxu0 0.0
      %965 = vmatpush2.msra.mxu0 0.0
      %966 = vmatprep.subr.mxu0 0.0
      %967 = vmatpush2.msra.mxu0 0.0
      %968 = vmatprep.subr.mxu0 0.0
      %969 = vmatpush2.msra.mxu0 0.0
      %970 = vmatprep.subr.mxu0 0.0
      %971 = vmatpush2.msra.mxu0 0.0
      %972 = vmatprep.mubr.f32.mxu0 0.0
      %973 = vmatmul.mubr.f32.gmra.mxu0 %v897
      %v974 = vpop.f32.mrf.mxu0
      %v975 = vadd.f32 0.0, %v974
      %v976 = vpop.f32.mrf.mxu0
      %977 = vmatprep.mubr.f32.mxu0 0.0
      %978 = vmatmul.mubr.f32.gmra.mxu0 %v900
      %v979 = vpop.f32.mrf.mxu0
      %v980 = vadd.f32 0.0, %v979
      %v981 = vpop.f32.mrf.mxu0
      %982 = vmatprep.mubr.f32.mxu0 0.0
      %983 = vmatmul.mubr.f32.gmra.mxu0 %v903
      %v984 = vpop.f32.mrf.mxu0
      %v985 = vadd.f32 0.0, %v984
      %v986 = vpop.f32.mrf.mxu0
      %987 = vmatprep.mubr.f32.mxu0 0.0
      %988 = vmatmul.mubr.f32.gmra.mxu0 %v906
      %v989 = vpop.f32.mrf.mxu0
      %v990 = vadd.f32 0.0, %v989
      %v991 = vpop.f32.mrf.mxu0
      %992 = vdwg.mxu0
      %v994 = vsel %vm895, %v867, 0
      %v997 = vsel %vm895, %v868, 0
      %v1000 = vsel %vm895, %v869, 0
      %v1003 = vsel %vm895, %v870, 0
      %1005 = vmatprep.subr.mxu0 0.0
      %1006 = vmatpush1.msra.mxu0 0.0
      %1007 = vmatprep.subr.mxu0 0.0
      %1008 = vmatpush1.msra.mxu0 0.0
      %1009 = vmatprep.subr.mxu0 0.0
      %1010 = vmatpush1.msra.mxu0 0.0
      %1011 = vmatprep.subr.mxu0 0.0
      %1012 = vmatpush1.msra.mxu0 0.0
      %1013 = vmatprep.subr.mxu0 0.0
      %1014 = vmatpush1.msra.mxu0 0.0
      %1015 = vmatprep.subr.mxu0 0.0
      %1016 = vmatpush1.msra.mxu0 0.0
      %1017 = vmatprep.subr.mxu0 0.0
      %1018 = vmatpush1.msra.mxu0 0.0
      %1019 = vmatprep.subr.mxu0 0.0
      %1020 = vmatpush1.msra.mxu0 0.0
      %1021 = vmatprep.subr.mxu0 0.0
      %1022 = vmatpush1.msra.mxu0 0.0
      %1023 = vmatprep.subr.mxu0 0.0
      %1024 = vmatpush1.msra.mxu0 0.0
      %1025 = vmatprep.subr.mxu0 0.0
      %1026 = vmatpush1.msra.mxu0 0.0
      %1027 = vmatprep.subr.mxu0 0.0
      %1028 = vmatpush1.msra.mxu0 0.0
      %1029 = vmatprep.subr.mxu0 0.0
      %1030 = vmatpush1.msra.mxu0 %v739
      %1031 = vmatprep.subr.mxu0 0.0
      %1032 = vmatpush1.msra.mxu0 %v734
      %1033 = vmatprep.subr.mxu0 0.0
      %1034 = vmatpush1.msra.mxu0 %v729
      %1035 = vmatprep.subr.mxu0 0.0
      %1036 = vmatpush1.msra.mxu0 %v724
      %1037 = vmatprep.subr.mxu0 0.0
      %1038 = vmatpush2.msra.mxu0 0.0
      %1039 = vmatprep.subr.mxu0 0.0
      %1040 = vmatpush2.msra.mxu0 0.0
      %1041 = vmatprep.subr.mxu0 0.0
      %1042 = vmatpush2.msra.mxu0 0.0
      %1043 = vmatprep.subr.mxu0 0.0
      %1044 = vmatpush2.msra.mxu0 0.0
      %1045 = vmatprep.subr.mxu0 0.0
      %1046 = vmatpush2.msra.mxu0 0.0
      %1047 = vmatprep.subr.mxu0 0.0
      %1048 = vmatpush2.msra.mxu0 0.0
      %1049 = vmatprep.subr.mxu0 0.0
      %1050 = vmatpush2.msra.mxu0 0.0
      %1051 = vmatprep.subr.mxu0 0.0
      %1052 = vmatpush2.msra.mxu0 0.0
      %1053 = vmatprep.subr.mxu0 0.0
      %1054 = vmatpush2.msra.mxu0 0.0
      %1055 = vmatprep.subr.mxu0 0.0
      %1056 = vmatpush2.msra.mxu0 0.0
      %1057 = vmatprep.subr.mxu0 0.0
      %1058 = vmatpush2.msra.mxu0 0.0
      %1059 = vmatprep.subr.mxu0 0.0
      %1060 = vmatpush2.msra.mxu0 0.0
      %1061 = vmatprep.subr.mxu0 0.0
      %1062 = vmatpush2.msra.mxu0 0.0
      %1063 = vmatprep.subr.mxu0 0.0
      %1064 = vmatpush2.msra.mxu0 0.0
      %1065 = vmatprep.subr.mxu0 0.0
      %1066 = vmatpush2.msra.mxu0 0.0
      %1067 = vmatprep.subr.mxu0 0.0
      %1068 = vmatpush2.msra.mxu0 0.0
      %1069 = vmatprep.mubr.f32.mxu0 0.0
      %1070 = vmatmul.mubr.f32.gmra.mxu0 %v994
      %v1071 = vpop.f32.mrf.mxu0
      %v1072 = vadd.f32 0.0, %v1071
      %v1073 = vpop.f32.mrf.mxu0
      %1074 = vmatprep.mubr.f32.mxu0 0.0
      %1075 = vmatmul.mubr.f32.gmra.mxu0 %v997
      %v1076 = vpop.f32.mrf.mxu0
      %v1077 = vadd.f32 0.0, %v1076
      %v1078 = vpop.f32.mrf.mxu0
      %1079 = vmatprep.mubr.f32.mxu0 0.0
      %1080 = vmatmul.mubr.f32.gmra.mxu0 %v1000
      %v1081 = vpop.f32.mrf.mxu0
      %v1082 = vadd.f32 0.0, %v1081
      %v1083 = vpop.f32.mrf.mxu0
      %1084 = vmatprep.mubr.f32.mxu0 0.0
      %1085 = vmatmul.mubr.f32.gmra.mxu0 %v1003
      %v1086 = vpop.f32.mrf.mxu0
      %v1087 = vadd.f32 0.0, %v1086
      %v1088 = vpop.f32.mrf.mxu0
      %1089 = vdwg.mxu0
      %v1091 = vsel %vm895, %v871, 0
      %v1094 = vsel %vm895, %v872, 0
      %v1097 = vsel %vm895, %v873, 0
      %v1100 = vsel %vm895, %v874, 0
      %1102 = vmatprep.subr.mxu0 0.0
      %1103 = vmatpush1.msra.mxu0 0.0
      %1104 = vmatprep.subr.mxu0 0.0
      %1105 = vmatpush1.msra.mxu0 0.0
      %1106 = vmatprep.subr.mxu0 0.0
      %1107 = vmatpush1.msra.mxu0 0.0
      %1108 = vmatprep.subr.mxu0 0.0
      %1109 = vmatpush1.msra.mxu0 0.0
      %1110 = vmatprep.subr.mxu0 0.0
      %1111 = vmatpush1.msra.mxu0 0.0
      %1112 = vmatprep.subr.mxu0 0.0
      %1113 = vmatpush1.msra.mxu0 0.0
      %1114 = vmatprep.subr.mxu0 0.0
      %1115 = vmatpush1.msra.mxu0 0.0
      %1116 = vmatprep.subr.mxu0 0.0
      %1117 = vmatpush1.msra.mxu0 0.0
      %1118 = vmatprep.subr.mxu0 0.0
      %1119 = vmatpush1.msra.mxu0 0.0
      %1120 = vmatprep.subr.mxu0 0.0
      %1121 = vmatpush1.msra.mxu0 0.0
      %1122 = vmatprep.subr.mxu0 0.0
      %1123 = vmatpush1.msra.mxu0 0.0
      %1124 = vmatprep.subr.mxu0 0.0
      %1125 = vmatpush1.msra.mxu0 0.0
      %1126 = vmatprep.subr.mxu0 0.0
      %1127 = vmatpush1.msra.mxu0 %v759
      %1128 = vmatprep.subr.mxu0 0.0
      %1129 = vmatpush1.msra.mxu0 %v754
      %1130 = vmatprep.subr.mxu0 0.0
      %1131 = vmatpush1.msra.mxu0 %v749
      %1132 = vmatprep.subr.mxu0 0.0
      %1133 = vmatpush1.msra.mxu0 %v744
      %1134 = vmatprep.subr.mxu0 0.0
      %1135 = vmatpush2.msra.mxu0 0.0
      %1136 = vmatprep.subr.mxu0 0.0
      %1137 = vmatpush2.msra.mxu0 0.0
      %1138 = vmatprep.subr.mxu0 0.0
      %1139 = vmatpush2.msra.mxu0 0.0
      %1140 = vmatprep.subr.mxu0 0.0
      %1141 = vmatpush2.msra.mxu0 0.0
      %1142 = vmatprep.subr.mxu0 0.0
      %1143 = vmatpush2.msra.mxu0 0.0
      %1144 = vmatprep.subr.mxu0 0.0
      %1145 = vmatpush2.msra.mxu0 0.0
      %1146 = vmatprep.subr.mxu0 0.0
      %1147 = vmatpush2.msra.mxu0 0.0
      %1148 = vmatprep.subr.mxu0 0.0
      %1149 = vmatpush2.msra.mxu0 0.0
      %1150 = vmatprep.subr.mxu0 0.0
      %1151 = vmatpush2.msra.mxu0 0.0
      %1152 = vmatprep.subr.mxu0 0.0
      %1153 = vmatpush2.msra.mxu0 0.0
      %1154 = vmatprep.subr.mxu0 0.0
      %1155 = vmatpush2.msra.mxu0 0.0
      %1156 = vmatprep.subr.mxu0 0.0
      %1157 = vmatpush2.msra.mxu0 0.0
      %1158 = vmatprep.subr.mxu0 0.0
      %1159 = vmatpush2.msra.mxu0 0.0
      %1160 = vmatprep.subr.mxu0 0.0
      %1161 = vmatpush2.msra.mxu0 0.0
      %1162 = vmatprep.subr.mxu0 0.0
      %1163 = vmatpush2.msra.mxu0 0.0
      %1164 = vmatprep.subr.mxu0 0.0
      %1165 = vmatpush2.msra.mxu0 0.0
      %1166 = vmatprep.mubr.f32.mxu0 0.0
      %1167 = vmatmul.mubr.f32.gmra.mxu0 %v1091
      %v1168 = vpop.f32.mrf.mxu0
      %v1169 = vadd.f32 0.0, %v1168
      %v1170 = vpop.f32.mrf.mxu0
      %1171 = vmatprep.mubr.f32.mxu0 0.0
      %1172 = vmatmul.mubr.f32.gmra.mxu0 %v1094
      %v1173 = vpop.f32.mrf.mxu0
      %v1174 = vadd.f32 0.0, %v1173
      %v1175 = vpop.f32.mrf.mxu0
      %1176 = vmatprep.mubr.f32.mxu0 0.0
      %1177 = vmatmul.mubr.f32.gmra.mxu0 %v1097
      %v1178 = vpop.f32.mrf.mxu0
      %v1179 = vadd.f32 0.0, %v1178
      %v1180 = vpop.f32.mrf.mxu0
      %1181 = vmatprep.mubr.f32.mxu0 0.0
      %1182 = vmatmul.mubr.f32.gmra.mxu0 %v1100
      %v1183 = vpop.f32.mrf.mxu0
      %v1184 = vadd.f32 0.0, %v1183
      %v1185 = vpop.f32.mrf.mxu0
      %1186 = vdwg.mxu0
      %v1188 = vsel %vm895, %v875, 0
      %v1191 = vsel %vm895, %v876, 0
      %v1194 = vsel %vm895, %v877, 0
      %v1197 = vsel %vm895, %v878, 0
      %1199 = vmatprep.subr.mxu0 0.0
      %1200 = vmatpush1.msra.mxu0 0.0
      %1201 = vmatprep.subr.mxu0 0.0
      %1202 = vmatpush1.msra.mxu0 0.0
      %1203 = vmatprep.subr.mxu0 0.0
      %1204 = vmatpush1.msra.mxu0 0.0
      %1205 = vmatprep.subr.mxu0 0.0
      %1206 = vmatpush1.msra.mxu0 0.0
      %1207 = vmatprep.subr.mxu0 0.0
      %1208 = vmatpush1.msra.mxu0 0.0
      %1209 = vmatprep.subr.mxu0 0.0
      %1210 = vmatpush1.msra.mxu0 0.0
      %1211 = vmatprep.subr.mxu0 0.0
      %1212 = vmatpush1.msra.mxu0 0.0
      %1213 = vmatprep.subr.mxu0 0.0
      %1214 = vmatpush1.msra.mxu0 0.0
      %1215 = vmatprep.subr.mxu0 0.0
      %1216 = vmatpush1.msra.mxu0 0.0
      %1217 = vmatprep.subr.mxu0 0.0
      %1218 = vmatpush1.msra.mxu0 0.0
      %1219 = vmatprep.subr.mxu0 0.0
      %1220 = vmatpush1.msra.mxu0 0.0
      %1221 = vmatprep.subr.mxu0 0.0
      %1222 = vmatpush1.msra.mxu0 0.0
      %1223 = vmatprep.subr.mxu0 0.0
      %1224 = vmatpush1.msra.mxu0 %v779
      %1225 = vmatprep.subr.mxu0 0.0
      %1226 = vmatpush1.msra.mxu0 %v774
      %1227 = vmatprep.subr.mxu0 0.0
      %1228 = vmatpush1.msra.mxu0 %v769
      %1229 = vmatprep.subr.mxu0 0.0
      %1230 = vmatpush1.msra.mxu0 %v764
      %1231 = vmatprep.subr.mxu0 0.0
      %1232 = vmatpush2.msra.mxu0 0.0
      %1233 = vmatprep.subr.mxu0 0.0
      %1234 = vmatpush2.msra.mxu0 0.0
      %1235 = vmatprep.subr.mxu0 0.0
      %1236 = vmatpush2.msra.mxu0 0.0
      %1237 = vmatprep.subr.mxu0 0.0
      %1238 = vmatpush2.msra.mxu0 0.0
      %1239 = vmatprep.subr.mxu0 0.0
      %1240 = vmatpush2.msra.mxu0 0.0
      %1241 = vmatprep.subr.mxu0 0.0
      %1242 = vmatpush2.msra.mxu0 0.0
      %1243 = vmatprep.subr.mxu0 0.0
      %1244 = vmatpush2.msra.mxu0 0.0
      %1245 = vmatprep.subr.mxu0 0.0
      %1246 = vmatpush2.msra.mxu0 0.0
      %1247 = vmatprep.subr.mxu0 0.0
      %1248 = vmatpush2.msra.mxu0 0.0
      %1249 = vmatprep.subr.mxu0 0.0
      %1250 = vmatpush2.msra.mxu0 0.0
      %1251 = vmatprep.subr.mxu0 0.0
      %1252 = vmatpush2.msra.mxu0 0.0
      %1253 = vmatprep.subr.mxu0 0.0
      %1254 = vmatpush2.msra.mxu0 0.0
      %1255 = vmatprep.subr.mxu0 0.0
      %1256 = vmatpush2.msra.mxu0 0.0
      %1257 = vmatprep.subr.mxu0 0.0
      %1258 = vmatpush2.msra.mxu0 0.0
      %1259 = vmatprep.subr.mxu0 0.0
      %1260 = vmatpush2.msra.mxu0 0.0
      %1261 = vmatprep.subr.mxu0 0.0
      %1262 = vmatpush2.msra.mxu0 0.0
      %1263 = vmatprep.mubr.f32.mxu0 0.0
      %1264 = vmatmul.mubr.f32.gmra.mxu0 %v1188
      %v1265 = vpop.f32.mrf.mxu0
      %v1266 = vadd.f32 0.0, %v1265
      %v1267 = vpop.f32.mrf.mxu0
      %1268 = vmatprep.mubr.f32.mxu0 0.0
      %1269 = vmatmul.mubr.f32.gmra.mxu0 %v1191
      %v1270 = vpop.f32.mrf.mxu0
      %v1271 = vadd.f32 0.0, %v1270
      %v1272 = vpop.f32.mrf.mxu0
      %1273 = vmatprep.mubr.f32.mxu0 0.0
      %1274 = vmatmul.mubr.f32.gmra.mxu0 %v1194
      %v1275 = vpop.f32.mrf.mxu0
      %v1276 = vadd.f32 0.0, %v1275
      %v1277 = vpop.f32.mrf.mxu0
      %1278 = vmatprep.mubr.f32.mxu0 0.0
      %1279 = vmatmul.mubr.f32.gmra.mxu0 %v1197
      %v1280 = vpop.f32.mrf.mxu0
      %v1281 = vadd.f32 0.0, %v1280
      %v1282 = vpop.f32.mrf.mxu0
      %1283 = vdwg.mxu0
      %v1285 = vsel %vm895, %v879, 0
      %v1288 = vsel %vm895, %v880, 0
      %v1291 = vsel %vm895, %v881, 0
      %v1294 = vsel %vm895, %v882, 0
      %1296 = vmatprep.subr.mxu0 0.0
      %1297 = vmatpush1.msra.mxu0 0.0
      %1298 = vmatprep.subr.mxu0 0.0
      %1299 = vmatpush1.msra.mxu0 0.0
      %1300 = vmatprep.subr.mxu0 0.0
      %1301 = vmatpush1.msra.mxu0 0.0
      %1302 = vmatprep.subr.mxu0 0.0
      %1303 = vmatpush1.msra.mxu0 0.0
      %1304 = vmatprep.subr.mxu0 0.0
      %1305 = vmatpush1.msra.mxu0 0.0
      %1306 = vmatprep.subr.mxu0 0.0
      %1307 = vmatpush1.msra.mxu0 0.0
      %1308 = vmatprep.subr.mxu0 0.0
      %1309 = vmatpush1.msra.mxu0 0.0
      %1310 = vmatprep.subr.mxu0 0.0
      %1311 = vmatpush1.msra.mxu0 0.0
      %1312 = vmatprep.subr.mxu0 0.0
      %1313 = vmatpush1.msra.mxu0 0.0
      %1314 = vmatprep.subr.mxu0 0.0
      %1315 = vmatpush1.msra.mxu0 0.0
      %1316 = vmatprep.subr.mxu0 0.0
      %1317 = vmatpush1.msra.mxu0 0.0
      %1318 = vmatprep.subr.mxu0 0.0
      %1319 = vmatpush1.msra.mxu0 0.0
      %1320 = vmatprep.subr.mxu0 0.0
      %1321 = vmatpush1.msra.mxu0 %v799
      %1322 = vmatprep.subr.mxu0 0.0
      %1323 = vmatpush1.msra.mxu0 %v794
      %1324 = vmatprep.subr.mxu0 0.0
      %1325 = vmatpush1.msra.mxu0 %v789
      %1326 = vmatprep.subr.mxu0 0.0
      %1327 = vmatpush1.msra.mxu0 %v784
      %1328 = vmatprep.subr.mxu0 0.0
      %1329 = vmatpush2.msra.mxu0 0.0
      %1330 = vmatprep.subr.mxu0 0.0
      %1331 = vmatpush2.msra.mxu0 0.0
      %1332 = vmatprep.subr.mxu0 0.0
      %1333 = vmatpush2.msra.mxu0 0.0
      %1334 = vmatprep.subr.mxu0 0.0
      %1335 = vmatpush2.msra.mxu0 0.0
      %1336 = vmatprep.subr.mxu0 0.0
      %1337 = vmatpush2.msra.mxu0 0.0
      %1338 = vmatprep.subr.mxu0 0.0
      %1339 = vmatpush2.msra.mxu0 0.0
      %1340 = vmatprep.subr.mxu0 0.0
      %1341 = vmatpush2.msra.mxu0 0.0
      %1342 = vmatprep.subr.mxu0 0.0
      %1343 = vmatpush2.msra.mxu0 0.0
      %1344 = vmatprep.subr.mxu0 0.0
      %1345 = vmatpush2.msra.mxu0 0.0
      %1346 = vmatprep.subr.mxu0 0.0
      %1347 = vmatpush2.msra.mxu0 0.0
      %1348 = vmatprep.subr.mxu0 0.0
      %1349 = vmatpush2.msra.mxu0 0.0
      %1350 = vmatprep.subr.mxu0 0.0
      %1351 = vmatpush2.msra.mxu0 0.0
      %1352 = vmatprep.subr.mxu0 0.0
      %1353 = vmatpush2.msra.mxu0 0.0
      %1354 = vmatprep.subr.mxu0 0.0
      %1355 = vmatpush2.msra.mxu0 0.0
      %1356 = vmatprep.subr.mxu0 0.0
      %1357 = vmatpush2.msra.mxu0 0.0
      %1358 = vmatprep.subr.mxu0 0.0
      %1359 = vmatpush2.msra.mxu0 0.0
      %1360 = vmatprep.mubr.f32.mxu0 0.0
      %1361 = vmatmul.mubr.f32.gmra.mxu0 %v1285
      %v1362 = vpop.f32.mrf.mxu0
      %v1363 = vadd.f32 0.0, %v1362
      %v1364 = vpop.f32.mrf.mxu0
      %1365 = vmatprep.mubr.f32.mxu0 0.0
      %1366 = vmatmul.mubr.f32.gmra.mxu0 %v1288
      %v1367 = vpop.f32.mrf.mxu0
      %v1368 = vadd.f32 0.0, %v1367
      %v1369 = vpop.f32.mrf.mxu0
      %1370 = vmatprep.mubr.f32.mxu0 0.0
      %1371 = vmatmul.mubr.f32.gmra.mxu0 %v1291
      %v1372 = vpop.f32.mrf.mxu0
      %v1373 = vadd.f32 0.0, %v1372
      %v1374 = vpop.f32.mrf.mxu0
      %1375 = vmatprep.mubr.f32.mxu0 0.0
      %1376 = vmatmul.mubr.f32.gmra.mxu0 %v1294
      %v1377 = vpop.f32.mrf.mxu0
      %v1378 = vadd.f32 0.0, %v1377
      %v1379 = vpop.f32.mrf.mxu0
      %1380 = vdwg.mxu0
      %v1382 = vsel %vm895, %v883, 0
      %v1385 = vsel %vm895, %v884, 0
      %v1388 = vsel %vm895, %v885, 0
      %v1391 = vsel %vm895, %v886, 0
      %1393 = vmatprep.subr.mxu0 0.0
      %1394 = vmatpush1.msra.mxu0 0.0
      %1395 = vmatprep.subr.mxu0 0.0
      %1396 = vmatpush1.msra.mxu0 0.0
      %1397 = vmatprep.subr.mxu0 0.0
      %1398 = vmatpush1.msra.mxu0 0.0
      %1399 = vmatprep.subr.mxu0 0.0
      %1400 = vmatpush1.msra.mxu0 0.0
      %1401 = vmatprep.subr.mxu0 0.0
      %1402 = vmatpush1.msra.mxu0 0.0
      %1403 = vmatprep.subr.mxu0 0.0
      %1404 = vmatpush1.msra.mxu0 0.0
      %1405 = vmatprep.subr.mxu0 0.0
      %1406 = vmatpush1.msra.mxu0 0.0
      %1407 = vmatprep.subr.mxu0 0.0
      %1408 = vmatpush1.msra.mxu0 0.0
      %1409 = vmatprep.subr.mxu0 0.0
      %1410 = vmatpush1.msra.mxu0 0.0
      %1411 = vmatprep.subr.mxu0 0.0
      %1412 = vmatpush1.msra.mxu0 0.0
      %1413 = vmatprep.subr.mxu0 0.0
      %1414 = vmatpush1.msra.mxu0 0.0
      %1415 = vmatprep.subr.mxu0 0.0
      %1416 = vmatpush1.msra.mxu0 0.0
      %1417 = vmatprep.subr.mxu0 0.0
      %1418 = vmatpush1.msra.mxu0 %v819
      %1419 = vmatprep.subr.mxu0 0.0
      %1420 = vmatpush1.msra.mxu0 %v814
      %1421 = vmatprep.subr.mxu0 0.0
      %1422 = vmatpush1.msra.mxu0 %v809
      %1423 = vmatprep.subr.mxu0 0.0
      %1424 = vmatpush1.msra.mxu0 %v804
      %1425 = vmatprep.subr.mxu0 0.0
      %1426 = vmatpush2.msra.mxu0 0.0
      %1427 = vmatprep.subr.mxu0 0.0
      %1428 = vmatpush2.msra.mxu0 0.0
      %1429 = vmatprep.subr.mxu0 0.0
      %1430 = vmatpush2.msra.mxu0 0.0
      %1431 = vmatprep.subr.mxu0 0.0
      %1432 = vmatpush2.msra.mxu0 0.0
      %1433 = vmatprep.subr.mxu0 0.0
      %1434 = vmatpush2.msra.mxu0 0.0
      %1435 = vmatprep.subr.mxu0 0.0
      %1436 = vmatpush2.msra.mxu0 0.0
      %1437 = vmatprep.subr.mxu0 0.0
      %1438 = vmatpush2.msra.mxu0 0.0
      %1439 = vmatprep.subr.mxu0 0.0
      %1440 = vmatpush2.msra.mxu0 0.0
      %1441 = vmatprep.subr.mxu0 0.0
      %1442 = vmatpush2.msra.mxu0 0.0
      %1443 = vmatprep.subr.mxu0 0.0
      %1444 = vmatpush2.msra.mxu0 0.0
      %1445 = vmatprep.subr.mxu0 0.0
      %1446 = vmatpush2.msra.mxu0 0.0
      %1447 = vmatprep.subr.mxu0 0.0
      %1448 = vmatpush2.msra.mxu0 0.0
      %1449 = vmatprep.subr.mxu0 0.0
      %1450 = vmatpush2.msra.mxu0 0.0
      %1451 = vmatprep.subr.mxu0 0.0
      %1452 = vmatpush2.msra.mxu0 0.0
      %1453 = vmatprep.subr.mxu0 0.0
      %1454 = vmatpush2.msra.mxu0 0.0
      %1455 = vmatprep.subr.mxu0 0.0
      %1456 = vmatpush2.msra.mxu0 0.0
      %1457 = vmatprep.mubr.f32.mxu0 0.0
      %1458 = vmatmul.mubr.f32.gmra.mxu0 %v1382
      %v1459 = vpop.f32.mrf.mxu0
      %v1460 = vadd.f32 0.0, %v1459
      %v1461 = vpop.f32.mrf.mxu0
      %1462 = vmatprep.mubr.f32.mxu0 0.0
      %1463 = vmatmul.mubr.f32.gmra.mxu0 %v1385
      %v1464 = vpop.f32.mrf.mxu0
      %v1465 = vadd.f32 0.0, %v1464
      %v1466 = vpop.f32.mrf.mxu0
      %1467 = vmatprep.mubr.f32.mxu0 0.0
      %1468 = vmatmul.mubr.f32.gmra.mxu0 %v1388
      %v1469 = vpop.f32.mrf.mxu0
      %v1470 = vadd.f32 0.0, %v1469
      %v1471 = vpop.f32.mrf.mxu0
      %1472 = vmatprep.mubr.f32.mxu0 0.0
      %1473 = vmatmul.mubr.f32.gmra.mxu0 %v1391
      %v1474 = vpop.f32.mrf.mxu0
      %v1475 = vadd.f32 0.0, %v1474
      %v1476 = vpop.f32.mrf.mxu0
      %1477 = vdwg.mxu0
      %v1479 = vsel %vm895, %v887, 0
      %v1482 = vsel %vm895, %v888, 0
      %v1485 = vsel %vm895, %v889, 0
      %v1488 = vsel %vm895, %v890, 0
      %1490 = vmatprep.subr.mxu0 0.0
      %1491 = vmatpush1.msra.mxu0 0.0
      %1492 = vmatprep.subr.mxu0 0.0
      %1493 = vmatpush1.msra.mxu0 0.0
      %1494 = vmatprep.subr.mxu0 0.0
      %1495 = vmatpush1.msra.mxu0 0.0
      %1496 = vmatprep.subr.mxu0 0.0
      %1497 = vmatpush1.msra.mxu0 0.0
      %1498 = vmatprep.subr.mxu0 0.0
      %1499 = vmatpush1.msra.mxu0 0.0
      %1500 = vmatprep.subr.mxu0 0.0
      %1501 = vmatpush1.msra.mxu0 0.0
      %1502 = vmatprep.subr.mxu0 0.0
      %1503 = vmatpush1.msra.mxu0 0.0
      %1504 = vmatprep.subr.mxu0 0.0
      %1505 = vmatpush1.msra.mxu0 0.0
      %1506 = vmatprep.subr.mxu0 0.0
      %1507 = vmatpush1.msra.mxu0 0.0
      %1508 = vmatprep.subr.mxu0 0.0
      %1509 = vmatpush1.msra.mxu0 0.0
      %1510 = vmatprep.subr.mxu0 0.0
      %1511 = vmatpush1.msra.mxu0 0.0
      %1512 = vmatprep.subr.mxu0 0.0
      %1513 = vmatpush1.msra.mxu0 0.0
      %1514 = vmatprep.subr.mxu0 0.0
      %1515 = vmatpush1.msra.mxu0 %v839
      %1516 = vmatprep.subr.mxu0 0.0
      %1517 = vmatpush1.msra.mxu0 %v834
      %1518 = vmatprep.subr.mxu0 0.0
      %1519 = vmatpush1.msra.mxu0 %v829
      %1520 = vmatprep.subr.mxu0 0.0
      %1521 = vmatpush1.msra.mxu0 %v824
      %1522 = vmatprep.subr.mxu0 0.0
      %1523 = vmatpush2.msra.mxu0 0.0
      %1524 = vmatprep.subr.mxu0 0.0
      %1525 = vmatpush2.msra.mxu0 0.0
      %1526 = vmatprep.subr.mxu0 0.0
      %1527 = vmatpush2.msra.mxu0 0.0
      %1528 = vmatprep.subr.mxu0 0.0
      %1529 = vmatpush2.msra.mxu0 0.0
      %1530 = vmatprep.subr.mxu0 0.0
      %1531 = vmatpush2.msra.mxu0 0.0
      %1532 = vmatprep.subr.mxu0 0.0
      %1533 = vmatpush2.msra.mxu0 0.0
      %1534 = vmatprep.subr.mxu0 0.0
      %1535 = vmatpush2.msra.mxu0 0.0
      %1536 = vmatprep.subr.mxu0 0.0
      %1537 = vmatpush2.msra.mxu0 0.0
      %1538 = vmatprep.subr.mxu0 0.0
      %1539 = vmatpush2.msra.mxu0 0.0
      %1540 = vmatprep.subr.mxu0 0.0
      %1541 = vmatpush2.msra.mxu0 0.0
      %1542 = vmatprep.subr.mxu0 0.0
      %1543 = vmatpush2.msra.mxu0 0.0
      %1544 = vmatprep.subr.mxu0 0.0
      %1545 = vmatpush2.msra.mxu0 0.0
      %1546 = vmatprep.subr.mxu0 0.0
      %1547 = vmatpush2.msra.mxu0 0.0
      %1548 = vmatprep.subr.mxu0 0.0
      %1549 = vmatpush2.msra.mxu0 0.0
      %1550 = vmatprep.subr.mxu0 0.0
      %1551 = vmatpush2.msra.mxu0 0.0
      %1552 = vmatprep.subr.mxu0 0.0
      %1553 = vmatpush2.msra.mxu0 0.0
      %1554 = vmatprep.mubr.f32.mxu0 0.0
      %1555 = vmatmul.mubr.f32.gmra.mxu0 %v1479
      %v1556 = vpop.f32.mrf.mxu0
      %v1557 = vadd.f32 0.0, %v1556
      %v1558 = vpop.f32.mrf.mxu0
      %1559 = vmatprep.mubr.f32.mxu0 0.0
      %1560 = vmatmul.mubr.f32.gmra.mxu0 %v1482
      %v1561 = vpop.f32.mrf.mxu0
      %v1562 = vadd.f32 0.0, %v1561
      %v1563 = vpop.f32.mrf.mxu0
      %1564 = vmatprep.mubr.f32.mxu0 0.0
      %1565 = vmatmul.mubr.f32.gmra.mxu0 %v1485
      %v1566 = vpop.f32.mrf.mxu0
      %v1567 = vadd.f32 0.0, %v1566
      %v1568 = vpop.f32.mrf.mxu0
      %1569 = vmatprep.mubr.f32.mxu0 0.0
      %1570 = vmatmul.mubr.f32.gmra.mxu0 %v1488
      %v1571 = vpop.f32.mrf.mxu0
      %v1572 = vadd.f32 0.0, %v1571
      %v1573 = vpop.f32.mrf.mxu0
      %1574 = vdwg.mxu0
      %v1576 = vsel %vm895, %v891, 0
      %v1579 = vsel %vm895, %v892, 0
      %v1582 = vsel %vm895, %v893, 0
      %v1585 = vsel %vm895, %v894, 0
      %1587 = vmatprep.subr.mxu0 0.0
      %1588 = vmatpush1.msra.mxu0 0.0
      %1589 = vmatprep.subr.mxu0 0.0
      %1590 = vmatpush1.msra.mxu0 0.0
      %1591 = vmatprep.subr.mxu0 0.0
      %1592 = vmatpush1.msra.mxu0 0.0
      %1593 = vmatprep.subr.mxu0 0.0
      %1594 = vmatpush1.msra.mxu0 0.0
      %1595 = vmatprep.subr.mxu0 0.0
      %1596 = vmatpush1.msra.mxu0 0.0
      %1597 = vmatprep.subr.mxu0 0.0
      %1598 = vmatpush1.msra.mxu0 0.0
      %1599 = vmatprep.subr.mxu0 0.0
      %1600 = vmatpush1.msra.mxu0 0.0
      %1601 = vmatprep.subr.mxu0 0.0
      %1602 = vmatpush1.msra.mxu0 0.0
      %1603 = vmatprep.subr.mxu0 0.0
      %1604 = vmatpush1.msra.mxu0 0.0
      %1605 = vmatprep.subr.mxu0 0.0
      %1606 = vmatpush1.msra.mxu0 0.0
      %1607 = vmatprep.subr.mxu0 0.0
      %1608 = vmatpush1.msra.mxu0 0.0
      %1609 = vmatprep.subr.mxu0 0.0
      %1610 = vmatpush1.msra.mxu0 0.0
      %1611 = vmatprep.subr.mxu0 0.0
      %1612 = vmatpush1.msra.mxu0 %v859
      %1613 = vmatprep.subr.mxu0 0.0
      %1614 = vmatpush1.msra.mxu0 %v854
      %1615 = vmatprep.subr.mxu0 0.0
      %1616 = vmatpush1.msra.mxu0 %v849
      %1617 = vmatprep.subr.mxu0 0.0
      %1618 = vmatpush1.msra.mxu0 %v844
      %1619 = vmatprep.subr.mxu0 0.0
      %1620 = vmatpush2.msra.mxu0 0.0
      %1621 = vmatprep.subr.mxu0 0.0
      %1622 = vmatpush2.msra.mxu0 0.0
      %1623 = vmatprep.subr.mxu0 0.0
      %1624 = vmatpush2.msra.mxu0 0.0
      %1625 = vmatprep.subr.mxu0 0.0
      %1626 = vmatpush2.msra.mxu0 0.0
      %1627 = vmatprep.subr.mxu0 0.0
      %1628 = vmatpush2.msra.mxu0 0.0
      %1629 = vmatprep.subr.mxu0 0.0
      %1630 = vmatpush2.msra.mxu0 0.0
      %1631 = vmatprep.subr.mxu0 0.0
      %1632 = vmatpush2.msra.mxu0 0.0
      %1633 = vmatprep.subr.mxu0 0.0
      %1634 = vmatpush2.msra.mxu0 0.0
      %1635 = vmatprep.subr.mxu0 0.0
      %1636 = vmatpush2.msra.mxu0 0.0
      %1637 = vmatprep.subr.mxu0 0.0
      %1638 = vmatpush2.msra.mxu0 0.0
      %1639 = vmatprep.subr.mxu0 0.0
      %1640 = vmatpush2.msra.mxu0 0.0
      %1641 = vmatprep.subr.mxu0 0.0
      %1642 = vmatpush2.msra.mxu0 0.0
      %1643 = vmatprep.subr.mxu0 0.0
      %1644 = vmatpush2.msra.mxu0 0.0
      %1645 = vmatprep.subr.mxu0 0.0
      %1646 = vmatpush2.msra.mxu0 0.0
      %1647 = vmatprep.subr.mxu0 0.0
      %1648 = vmatpush2.msra.mxu0 0.0
      %1649 = vmatprep.subr.mxu0 0.0
      %1650 = vmatpush2.msra.mxu0 0.0
      %1651 = vmatprep.mubr.f32.mxu0 0.0
      %1652 = vmatmul.mubr.f32.gmra.mxu0 %v1576
      %v1653 = vpop.f32.mrf.mxu0
      %v1654 = vadd.f32 0.0, %v1653
      %v1655 = vpop.f32.mrf.mxu0
      %1656 = vmatprep.mubr.f32.mxu0 0.0
      %1657 = vmatmul.mubr.f32.gmra.mxu0 %v1579
      %v1658 = vpop.f32.mrf.mxu0
      %v1659 = vadd.f32 0.0, %v1658
      %v1660 = vpop.f32.mrf.mxu0
      %1661 = vmatprep.mubr.f32.mxu0 0.0
      %1662 = vmatmul.mubr.f32.gmra.mxu0 %v1582
      %v1663 = vpop.f32.mrf.mxu0
      %v1664 = vadd.f32 0.0, %v1663
      %v1665 = vpop.f32.mrf.mxu0
      %1666 = vmatprep.mubr.f32.mxu0 0.0
      %1667 = vmatmul.mubr.f32.gmra.mxu0 %v1585
      %v1668 = vpop.f32.mrf.mxu0
      %v1669 = vadd.f32 0.0, %v1668
      %v1670 = vpop.f32.mrf.mxu0
      %1671 = vdwg.mxu0
      %v1673 = vsel %vm895, %v601, 0
      %v1676 = vsel %vm895, %v602, 0
      %v1679 = vsel %vm895, %v603, 0
      %v1682 = vsel %vm895, %v604, 0
      %1684 = vmatprep.subr.mxu0 0.0
      %1685 = vmatpush1.msra.mxu0 0.0
      %1686 = vmatprep.subr.mxu0 0.0
      %1687 = vmatpush1.msra.mxu0 0.0
      %1688 = vmatprep.subr.mxu0 0.0
      %1689 = vmatpush1.msra.mxu0 0.0
      %1690 = vmatprep.subr.mxu0 0.0
      %1691 = vmatpush1.msra.mxu0 0.0
      %1692 = vmatprep.subr.mxu0 0.0
      %1693 = vmatpush1.msra.mxu0 0.0
      %1694 = vmatprep.subr.mxu0 0.0
      %1695 = vmatpush1.msra.mxu0 0.0
      %1696 = vmatprep.subr.mxu0 0.0
      %1697 = vmatpush1.msra.mxu0 0.0
      %1698 = vmatprep.subr.mxu0 0.0
      %1699 = vmatpush1.msra.mxu0 0.0
      %1700 = vmatprep.subr.mxu0 0.0
      %1701 = vmatpush1.msra.mxu0 0.0
      %1702 = vmatprep.subr.mxu0 0.0
      %1703 = vmatpush1.msra.mxu0 0.0
      %1704 = vmatprep.subr.mxu0 0.0
      %1705 = vmatpush1.msra.mxu0 0.0
      %1706 = vmatprep.subr.mxu0 0.0
      %1707 = vmatpush1.msra.mxu0 0.0
      %1708 = vmatprep.subr.mxu0 0.0
      %1709 = vmatpush1.msra.mxu0 %v458
      %1710 = vmatprep.subr.mxu0 0.0
      %1711 = vmatpush1.msra.mxu0 %v453
      %1712 = vmatprep.subr.mxu0 0.0
      %1713 = vmatpush1.msra.mxu0 %v448
      %1714 = vmatprep.subr.mxu0 0.0
      %1715 = vmatpush1.msra.mxu0 %v443
      %1716 = vmatprep.subr.mxu0 0.0
      %1717 = vmatpush2.msra.mxu0 0.0
      %1718 = vmatprep.subr.mxu0 0.0
      %1719 = vmatpush2.msra.mxu0 0.0
      %1720 = vmatprep.subr.mxu0 0.0
      %1721 = vmatpush2.msra.mxu0 0.0
      %1722 = vmatprep.subr.mxu0 0.0
      %1723 = vmatpush2.msra.mxu0 0.0
      %1724 = vmatprep.subr.mxu0 0.0
      %1725 = vmatpush2.msra.mxu0 0.0
      %1726 = vmatprep.subr.mxu0 0.0
      %1727 = vmatpush2.msra.mxu0 0.0
      %1728 = vmatprep.subr.mxu0 0.0
      %1729 = vmatpush2.msra.mxu0 0.0
      %1730 = vmatprep.subr.mxu0 0.0
      %1731 = vmatpush2.msra.mxu0 0.0
      %1732 = vmatprep.subr.mxu0 0.0
      %1733 = vmatpush2.msra.mxu0 0.0
      %1734 = vmatprep.subr.mxu0 0.0
      %1735 = vmatpush2.msra.mxu0 0.0
      %1736 = vmatprep.subr.mxu0 0.0
      %1737 = vmatpush2.msra.mxu0 0.0
      %1738 = vmatprep.subr.mxu0 0.0
      %1739 = vmatpush2.msra.mxu0 0.0
      %1740 = vmatprep.subr.mxu0 0.0
      %1741 = vmatpush2.msra.mxu0 0.0
      %1742 = vmatprep.subr.mxu0 0.0
      %1743 = vmatpush2.msra.mxu0 0.0
      %1744 = vmatprep.subr.mxu0 0.0
      %1745 = vmatpush2.msra.mxu0 0.0
      %1746 = vmatprep.subr.mxu0 0.0
      %1747 = vmatpush2.msra.mxu0 0.0
      %1748 = vmatprep.mubr.f32.mxu0 0.0
      %1749 = vmatmul.mubr.f32.gmra.mxu0 %v1673
      %v1750 = vpop.f32.mrf.mxu0
      %v1751 = vadd.f32 %v975, %v1750
      %v1752 = vpop.f32.mrf.mxu0
      %1753 = vmatprep.mubr.f32.mxu0 0.0
      %1754 = vmatmul.mubr.f32.gmra.mxu0 %v1676
      %v1755 = vpop.f32.mrf.mxu0
      %v1756 = vadd.f32 %v980, %v1755
      %v1757 = vpop.f32.mrf.mxu0
      %1758 = vmatprep.mubr.f32.mxu0 0.0
      %1759 = vmatmul.mubr.f32.gmra.mxu0 %v1679
      %v1760 = vpop.f32.mrf.mxu0
      %v1761 = vadd.f32 %v985, %v1760
      %v1762 = vpop.f32.mrf.mxu0
      %1763 = vmatprep.mubr.f32.mxu0 0.0
      %1764 = vmatmul.mubr.f32.gmra.mxu0 %v1682
      %v1765 = vpop.f32.mrf.mxu0
      %v1766 = vadd.f32 %v990, %v1765
      %v1767 = vpop.f32.mrf.mxu0
      %1768 = vdwg.mxu0
      %v1770 = vsel %vm895, %v605, 0
      %v1773 = vsel %vm895, %v606, 0
      %v1776 = vsel %vm895, %v607, 0
      %v1779 = vsel %vm895, %v608, 0
      %1781 = vmatprep.subr.mxu0 0.0
      %1782 = vmatpush1.msra.mxu0 0.0
      %1783 = vmatprep.subr.mxu0 0.0
      %1784 = vmatpush1.msra.mxu0 0.0
      %1785 = vmatprep.subr.mxu0 0.0
      %1786 = vmatpush1.msra.mxu0 0.0
      %1787 = vmatprep.subr.mxu0 0.0
      %1788 = vmatpush1.msra.mxu0 0.0
      %1789 = vmatprep.subr.mxu0 0.0
      %1790 = vmatpush1.msra.mxu0 0.0
      %1791 = vmatprep.subr.mxu0 0.0
      %1792 = vmatpush1.msra.mxu0 0.0
      %1793 = vmatprep.subr.mxu0 0.0
      %1794 = vmatpush1.msra.mxu0 0.0
      %1795 = vmatprep.subr.mxu0 0.0
      %1796 = vmatpush1.msra.mxu0 0.0
      %1797 = vmatprep.subr.mxu0 0.0
      %1798 = vmatpush1.msra.mxu0 0.0
      %1799 = vmatprep.subr.mxu0 0.0
      %1800 = vmatpush1.msra.mxu0 0.0
      %1801 = vmatprep.subr.mxu0 0.0
      %1802 = vmatpush1.msra.mxu0 0.0
      %1803 = vmatprep.subr.mxu0 0.0
      %1804 = vmatpush1.msra.mxu0 0.0
      %1805 = vmatprep.subr.mxu0 0.0
      %1806 = vmatpush1.msra.mxu0 %v478
      %1807 = vmatprep.subr.mxu0 0.0
      %1808 = vmatpush1.msra.mxu0 %v473
      %1809 = vmatprep.subr.mxu0 0.0
      %1810 = vmatpush1.msra.mxu0 %v468
      %1811 = vmatprep.subr.mxu0 0.0
      %1812 = vmatpush1.msra.mxu0 %v463
      %1813 = vmatprep.subr.mxu0 0.0
      %1814 = vmatpush2.msra.mxu0 0.0
      %1815 = vmatprep.subr.mxu0 0.0
      %1816 = vmatpush2.msra.mxu0 0.0
      %1817 = vmatprep.subr.mxu0 0.0
      %1818 = vmatpush2.msra.mxu0 0.0
      %1819 = vmatprep.subr.mxu0 0.0
      %1820 = vmatpush2.msra.mxu0 0.0
      %1821 = vmatprep.subr.mxu0 0.0
      %1822 = vmatpush2.msra.mxu0 0.0
      %1823 = vmatprep.subr.mxu0 0.0
      %1824 = vmatpush2.msra.mxu0 0.0
      %1825 = vmatprep.subr.mxu0 0.0
      %1826 = vmatpush2.msra.mxu0 0.0
      %1827 = vmatprep.subr.mxu0 0.0
      %1828 = vmatpush2.msra.mxu0 0.0
      %1829 = vmatprep.subr.mxu0 0.0
      %1830 = vmatpush2.msra.mxu0 0.0
      %1831 = vmatprep.subr.mxu0 0.0
      %1832 = vmatpush2.msra.mxu0 0.0
      %1833 = vmatprep.subr.mxu0 0.0
      %1834 = vmatpush2.msra.mxu0 0.0
      %1835 = vmatprep.subr.mxu0 0.0
      %1836 = vmatpush2.msra.mxu0 0.0
      %1837 = vmatprep.subr.mxu0 0.0
      %1838 = vmatpush2.msra.mxu0 0.0
      %1839 = vmatprep.subr.mxu0 0.0
      %1840 = vmatpush2.msra.mxu0 0.0
      %1841 = vmatprep.subr.mxu0 0.0
      %1842 = vmatpush2.msra.mxu0 0.0
      %1843 = vmatprep.subr.mxu0 0.0
      %1844 = vmatpush2.msra.mxu0 0.0
      %1845 = vmatprep.mubr.f32.mxu0 0.0
      %1846 = vmatmul.mubr.f32.gmra.mxu0 %v1770
      %v1847 = vpop.f32.mrf.mxu0
      %v1848 = vadd.f32 %v1072, %v1847
      %v1849 = vpop.f32.mrf.mxu0
      %1850 = vmatprep.mubr.f32.mxu0 0.0
      %1851 = vmatmul.mubr.f32.gmra.mxu0 %v1773
      %v1852 = vpop.f32.mrf.mxu0
      %v1853 = vadd.f32 %v1077, %v1852
      %v1854 = vpop.f32.mrf.mxu0
      %1855 = vmatprep.mubr.f32.mxu0 0.0
      %1856 = vmatmul.mubr.f32.gmra.mxu0 %v1776
      %v1857 = vpop.f32.mrf.mxu0
      %v1858 = vadd.f32 %v1082, %v1857
      %v1859 = vpop.f32.mrf.mxu0
      %1860 = vmatprep.mubr.f32.mxu0 0.0
      %1861 = vmatmul.mubr.f32.gmra.mxu0 %v1779
      %v1862 = vpop.f32.mrf.mxu0
      %v1863 = vadd.f32 %v1087, %v1862
      %v1864 = vpop.f32.mrf.mxu0
      %1865 = vdwg.mxu0
      %v1867 = vsel %vm895, %v609, 0
      %v1870 = vsel %vm895, %v610, 0
      %v1873 = vsel %vm895, %v611, 0
      %v1876 = vsel %vm895, %v612, 0
      %1878 = vmatprep.subr.mxu0 0.0
      %1879 = vmatpush1.msra.mxu0 0.0
      %1880 = vmatprep.subr.mxu0 0.0
      %1881 = vmatpush1.msra.mxu0 0.0
      %1882 = vmatprep.subr.mxu0 0.0
      %1883 = vmatpush1.msra.mxu0 0.0
      %1884 = vmatprep.subr.mxu0 0.0
      %1885 = vmatpush1.msra.mxu0 0.0
      %1886 = vmatprep.subr.mxu0 0.0
      %1887 = vmatpush1.msra.mxu0 0.0
      %1888 = vmatprep.subr.mxu0 0.0
      %1889 = vmatpush1.msra.mxu0 0.0
      %1890 = vmatprep.subr.mxu0 0.0
      %1891 = vmatpush1.msra.mxu0 0.0
      %1892 = vmatprep.subr.mxu0 0.0
      %1893 = vmatpush1.msra.mxu0 0.0
      %1894 = vmatprep.subr.mxu0 0.0
      %1895 = vmatpush1.msra.mxu0 0.0
      %1896 = vmatprep.subr.mxu0 0.0
      %1897 = vmatpush1.msra.mxu0 0.0
      %1898 = vmatprep.subr.mxu0 0.0
      %1899 = vmatpush1.msra.mxu0 0.0
      %1900 = vmatprep.subr.mxu0 0.0
      %1901 = vmatpush1.msra.mxu0 0.0
      %1902 = vmatprep.subr.mxu0 0.0
      %1903 = vmatpush1.msra.mxu0 %v498
      %1904 = vmatprep.subr.mxu0 0.0
      %1905 = vmatpush1.msra.mxu0 %v493
      %1906 = vmatprep.subr.mxu0 0.0
      %1907 = vmatpush1.msra.mxu0 %v488
      %1908 = vmatprep.subr.mxu0 0.0
      %1909 = vmatpush1.msra.mxu0 %v483
      %1910 = vmatprep.subr.mxu0 0.0
      %1911 = vmatpush2.msra.mxu0 0.0
      %1912 = vmatprep.subr.mxu0 0.0
      %1913 = vmatpush2.msra.mxu0 0.0
      %1914 = vmatprep.subr.mxu0 0.0
      %1915 = vmatpush2.msra.mxu0 0.0
      %1916 = vmatprep.subr.mxu0 0.0
      %1917 = vmatpush2.msra.mxu0 0.0
      %1918 = vmatprep.subr.mxu0 0.0
      %1919 = vmatpush2.msra.mxu0 0.0
      %1920 = vmatprep.subr.mxu0 0.0
      %1921 = vmatpush2.msra.mxu0 0.0
      %1922 = vmatprep.subr.mxu0 0.0
      %1923 = vmatpush2.msra.mxu0 0.0
      %1924 = vmatprep.subr.mxu0 0.0
      %1925 = vmatpush2.msra.mxu0 0.0
      %1926 = vmatprep.subr.mxu0 0.0
      %1927 = vmatpush2.msra.mxu0 0.0
      %1928 = vmatprep.subr.mxu0 0.0
      %1929 = vmatpush2.msra.mxu0 0.0
      %1930 = vmatprep.subr.mxu0 0.0
      %1931 = vmatpush2.msra.mxu0 0.0
      %1932 = vmatprep.subr.mxu0 0.0
      %1933 = vmatpush2.msra.mxu0 0.0
      %1934 = vmatprep.subr.mxu0 0.0
      %1935 = vmatpush2.msra.mxu0 0.0
      %1936 = vmatprep.subr.mxu0 0.0
      %1937 = vmatpush2.msra.mxu0 0.0
      %1938 = vmatprep.subr.mxu0 0.0
      %1939 = vmatpush2.msra.mxu0 0.0
      %1940 = vmatprep.subr.mxu0 0.0
      %1941 = vmatpush2.msra.mxu0 0.0
      %1942 = vmatprep.mubr.f32.mxu0 0.0
      %1943 = vmatmul.mubr.f32.gmra.mxu0 %v1867
      %v1944 = vpop.f32.mrf.mxu0
      %v1945 = vadd.f32 %v1169, %v1944
      %v1946 = vpop.f32.mrf.mxu0
      %1947 = vmatprep.mubr.f32.mxu0 0.0
      %1948 = vmatmul.mubr.f32.gmra.mxu0 %v1870
      %v1949 = vpop.f32.mrf.mxu0
      %v1950 = vadd.f32 %v1174, %v1949
      %v1951 = vpop.f32.mrf.mxu0
      %1952 = vmatprep.mubr.f32.mxu0 0.0
      %1953 = vmatmul.mubr.f32.gmra.mxu0 %v1873
      %v1954 = vpop.f32.mrf.mxu0
      %v1955 = vadd.f32 %v1179, %v1954
      %v1956 = vpop.f32.mrf.mxu0
      %1957 = vmatprep.mubr.f32.mxu0 0.0
      %1958 = vmatmul.mubr.f32.gmra.mxu0 %v1876
      %v1959 = vpop.f32.mrf.mxu0
      %v1960 = vadd.f32 %v1184, %v1959
      %v1961 = vpop.f32.mrf.mxu0
      %1962 = vdwg.mxu0
      %v1964 = vsel %vm895, %v613, 0
      %v1967 = vsel %vm895, %v614, 0
      %v1970 = vsel %vm895, %v615, 0
      %v1973 = vsel %vm895, %v616, 0
      %1975 = vmatprep.subr.mxu0 0.0
      %1976 = vmatpush1.msra.mxu0 0.0
      %1977 = vmatprep.subr.mxu0 0.0
      %1978 = vmatpush1.msra.mxu0 0.0
      %1979 = vmatprep.subr.mxu0 0.0
      %1980 = vmatpush1.msra.mxu0 0.0
      %1981 = vmatprep.subr.mxu0 0.0
      %1982 = vmatpush1.msra.mxu0 0.0
      %1983 = vmatprep.subr.mxu0 0.0
      %1984 = vmatpush1.msra.mxu0 0.0
      %1985 = vmatprep.subr.mxu0 0.0
      %1986 = vmatpush1.msra.mxu0 0.0
      %1987 = vmatprep.subr.mxu0 0.0
      %1988 = vmatpush1.msra.mxu0 0.0
      %1989 = vmatprep.subr.mxu0 0.0
      %1990 = vmatpush1.msra.mxu0 0.0
      %1991 = vmatprep.subr.mxu0 0.0
      %1992 = vmatpush1.msra.mxu0 0.0
      %1993 = vmatprep.subr.mxu0 0.0
      %1994 = vmatpush1.msra.mxu0 0.0
      %1995 = vmatprep.subr.mxu0 0.0
      %1996 = vmatpush1.msra.mxu0 0.0
      %1997 = vmatprep.subr.mxu0 0.0
      %1998 = vmatpush1.msra.mxu0 0.0
      %1999 = vmatprep.subr.mxu0 0.0
      %2000 = vmatpush1.msra.mxu0 %v518
      %2001 = vmatprep.subr.mxu0 0.0
      %2002 = vmatpush1.msra.mxu0 %v513
      %2003 = vmatprep.subr.mxu0 0.0
      %2004 = vmatpush1.msra.mxu0 %v508
      %2005 = vmatprep.subr.mxu0 0.0
      %2006 = vmatpush1.msra.mxu0 %v503
      %2007 = vmatprep.subr.mxu0 0.0
      %2008 = vmatpush2.msra.mxu0 0.0
      %2009 = vmatprep.subr.mxu0 0.0
      %2010 = vmatpush2.msra.mxu0 0.0
      %2011 = vmatprep.subr.mxu0 0.0
      %2012 = vmatpush2.msra.mxu0 0.0
      %2013 = vmatprep.subr.mxu0 0.0
      %2014 = vmatpush2.msra.mxu0 0.0
      %2015 = vmatprep.subr.mxu0 0.0
      %2016 = vmatpush2.msra.mxu0 0.0
      %2017 = vmatprep.subr.mxu0 0.0
      %2018 = vmatpush2.msra.mxu0 0.0
      %2019 = vmatprep.subr.mxu0 0.0
      %2020 = vmatpush2.msra.mxu0 0.0
      %2021 = vmatprep.subr.mxu0 0.0
      %2022 = vmatpush2.msra.mxu0 0.0
      %2023 = vmatprep.subr.mxu0 0.0
      %2024 = vmatpush2.msra.mxu0 0.0
      %2025 = vmatprep.subr.mxu0 0.0
      %2026 = vmatpush2.msra.mxu0 0.0
      %2027 = vmatprep.subr.mxu0 0.0
      %2028 = vmatpush2.msra.mxu0 0.0
      %2029 = vmatprep.subr.mxu0 0.0
      %2030 = vmatpush2.msra.mxu0 0.0
      %2031 = vmatprep.subr.mxu0 0.0
      %2032 = vmatpush2.msra.mxu0 0.0
      %2033 = vmatprep.subr.mxu0 0.0
      %2034 = vmatpush2.msra.mxu0 0.0
      %2035 = vmatprep.subr.mxu0 0.0
      %2036 = vmatpush2.msra.mxu0 0.0
      %2037 = vmatprep.subr.mxu0 0.0
      %2038 = vmatpush2.msra.mxu0 0.0
      %2039 = vmatprep.mubr.f32.mxu0 0.0
      %2040 = vmatmul.mubr.f32.gmra.mxu0 %v1964
      %v2041 = vpop.f32.mrf.mxu0
      %v2042 = vadd.f32 %v1266, %v2041
      %v2043 = vpop.f32.mrf.mxu0
      %2044 = vmatprep.mubr.f32.mxu0 0.0
      %2045 = vmatmul.mubr.f32.gmra.mxu0 %v1967
      %v2046 = vpop.f32.mrf.mxu0
      %v2047 = vadd.f32 %v1271, %v2046
      %v2048 = vpop.f32.mrf.mxu0
      %2049 = vmatprep.mubr.f32.mxu0 0.0
      %2050 = vmatmul.mubr.f32.gmra.mxu0 %v1970
      %v2051 = vpop.f32.mrf.mxu0
      %v2052 = vadd.f32 %v1276, %v2051
      %v2053 = vpop.f32.mrf.mxu0
      %2054 = vmatprep.mubr.f32.mxu0 0.0
      %2055 = vmatmul.mubr.f32.gmra.mxu0 %v1973
      %v2056 = vpop.f32.mrf.mxu0
      %v2057 = vadd.f32 %v1281, %v2056
      %v2058 = vpop.f32.mrf.mxu0
      %2059 = vdwg.mxu0
      %v2061 = vsel %vm895, %v617, 0
      %v2064 = vsel %vm895, %v618, 0
      %v2067 = vsel %vm895, %v619, 0
      %v2070 = vsel %vm895, %v620, 0
      %2072 = vmatprep.subr.mxu0 0.0
      %2073 = vmatpush1.msra.mxu0 0.0
      %2074 = vmatprep.subr.mxu0 0.0
      %2075 = vmatpush1.msra.mxu0 0.0
      %2076 = vmatprep.subr.mxu0 0.0
      %2077 = vmatpush1.msra.mxu0 0.0
      %2078 = vmatprep.subr.mxu0 0.0
      %2079 = vmatpush1.msra.mxu0 0.0
      %2080 = vmatprep.subr.mxu0 0.0
      %2081 = vmatpush1.msra.mxu0 0.0
      %2082 = vmatprep.subr.mxu0 0.0
      %2083 = vmatpush1.msra.mxu0 0.0
      %2084 = vmatprep.subr.mxu0 0.0
      %2085 = vmatpush1.msra.mxu0 0.0
      %2086 = vmatprep.subr.mxu0 0.0
      %2087 = vmatpush1.msra.mxu0 0.0
      %2088 = vmatprep.subr.mxu0 0.0
      %2089 = vmatpush1.msra.mxu0 0.0
      %2090 = vmatprep.subr.mxu0 0.0
      %2091 = vmatpush1.msra.mxu0 0.0
      %2092 = vmatprep.subr.mxu0 0.0
      %2093 = vmatpush1.msra.mxu0 0.0
      %2094 = vmatprep.subr.mxu0 0.0
      %2095 = vmatpush1.msra.mxu0 0.0
      %2096 = vmatprep.subr.mxu0 0.0
      %2097 = vmatpush1.msra.mxu0 %v538
      %2098 = vmatprep.subr.mxu0 0.0
      %2099 = vmatpush1.msra.mxu0 %v533
      %2100 = vmatprep.subr.mxu0 0.0
      %2101 = vmatpush1.msra.mxu0 %v528
      %2102 = vmatprep.subr.mxu0 0.0
      %2103 = vmatpush1.msra.mxu0 %v523
      %2104 = vmatprep.subr.mxu0 0.0
      %2105 = vmatpush2.msra.mxu0 0.0
      %2106 = vmatprep.subr.mxu0 0.0
      %2107 = vmatpush2.msra.mxu0 0.0
      %2108 = vmatprep.subr.mxu0 0.0
      %2109 = vmatpush2.msra.mxu0 0.0
      %2110 = vmatprep.subr.mxu0 0.0
      %2111 = vmatpush2.msra.mxu0 0.0
      %2112 = vmatprep.subr.mxu0 0.0
      %2113 = vmatpush2.msra.mxu0 0.0
      %2114 = vmatprep.subr.mxu0 0.0
      %2115 = vmatpush2.msra.mxu0 0.0
      %2116 = vmatprep.subr.mxu0 0.0
      %2117 = vmatpush2.msra.mxu0 0.0
      %2118 = vmatprep.subr.mxu0 0.0
      %2119 = vmatpush2.msra.mxu0 0.0
      %2120 = vmatprep.subr.mxu0 0.0
      %2121 = vmatpush2.msra.mxu0 0.0
      %2122 = vmatprep.subr.mxu0 0.0
      %2123 = vmatpush2.msra.mxu0 0.0
      %2124 = vmatprep.subr.mxu0 0.0
      %2125 = vmatpush2.msra.mxu0 0.0
      %2126 = vmatprep.subr.mxu0 0.0
      %2127 = vmatpush2.msra.mxu0 0.0
      %2128 = vmatprep.subr.mxu0 0.0
      %2129 = vmatpush2.msra.mxu0 0.0
      %2130 = vmatprep.subr.mxu0 0.0
      %2131 = vmatpush2.msra.mxu0 0.0
      %2132 = vmatprep.subr.mxu0 0.0
      %2133 = vmatpush2.msra.mxu0 0.0
      %2134 = vmatprep.subr.mxu0 0.0
      %2135 = vmatpush2.msra.mxu0 0.0
      %2136 = vmatprep.mubr.f32.mxu0 0.0
      %2137 = vmatmul.mubr.f32.gmra.mxu0 %v2061
      %v2138 = vpop.f32.mrf.mxu0
      %v2139 = vadd.f32 %v1363, %v2138
      %v2140 = vpop.f32.mrf.mxu0
      %2141 = vmatprep.mubr.f32.mxu0 0.0
      %2142 = vmatmul.mubr.f32.gmra.mxu0 %v2064
      %v2143 = vpop.f32.mrf.mxu0
      %v2144 = vadd.f32 %v1368, %v2143
      %v2145 = vpop.f32.mrf.mxu0
      %2146 = vmatprep.mubr.f32.mxu0 0.0
      %2147 = vmatmul.mubr.f32.gmra.mxu0 %v2067
      %v2148 = vpop.f32.mrf.mxu0
      %v2149 = vadd.f32 %v1373, %v2148
      %v2150 = vpop.f32.mrf.mxu0
      %2151 = vmatprep.mubr.f32.mxu0 0.0
      %2152 = vmatmul.mubr.f32.gmra.mxu0 %v2070
      %v2153 = vpop.f32.mrf.mxu0
      %v2154 = vadd.f32 %v1378, %v2153
      %v2155 = vpop.f32.mrf.mxu0
      %2156 = vdwg.mxu0
      %v2158 = vsel %vm895, %v621, 0
      %v2161 = vsel %vm895, %v622, 0
      %v2164 = vsel %vm895, %v623, 0
      %v2167 = vsel %vm895, %v624, 0
      %2169 = vmatprep.subr.mxu0 0.0
      %2170 = vmatpush1.msra.mxu0 0.0
      %2171 = vmatprep.subr.mxu0 0.0
      %2172 = vmatpush1.msra.mxu0 0.0
      %2173 = vmatprep.subr.mxu0 0.0
      %2174 = vmatpush1.msra.mxu0 0.0
      %2175 = vmatprep.subr.mxu0 0.0
      %2176 = vmatpush1.msra.mxu0 0.0
      %2177 = vmatprep.subr.mxu0 0.0
      %2178 = vmatpush1.msra.mxu0 0.0
      %2179 = vmatprep.subr.mxu0 0.0
      %2180 = vmatpush1.msra.mxu0 0.0
      %2181 = vmatprep.subr.mxu0 0.0
      %2182 = vmatpush1.msra.mxu0 0.0
      %2183 = vmatprep.subr.mxu0 0.0
      %2184 = vmatpush1.msra.mxu0 0.0
      %2185 = vmatprep.subr.mxu0 0.0
      %2186 = vmatpush1.msra.mxu0 0.0
      %2187 = vmatprep.subr.mxu0 0.0
      %2188 = vmatpush1.msra.mxu0 0.0
      %2189 = vmatprep.subr.mxu0 0.0
      %2190 = vmatpush1.msra.mxu0 0.0
      %2191 = vmatprep.subr.mxu0 0.0
      %2192 = vmatpush1.msra.mxu0 0.0
      %2193 = vmatprep.subr.mxu0 0.0
      %2194 = vmatpush1.msra.mxu0 %v558
      %2195 = vmatprep.subr.mxu0 0.0
      %2196 = vmatpush1.msra.mxu0 %v553
      %2197 = vmatprep.subr.mxu0 0.0
      %2198 = vmatpush1.msra.mxu0 %v548
      %2199 = vmatprep.subr.mxu0 0.0
      %2200 = vmatpush1.msra.mxu0 %v543
      %2201 = vmatprep.subr.mxu0 0.0
      %2202 = vmatpush2.msra.mxu0 0.0
      %2203 = vmatprep.subr.mxu0 0.0
      %2204 = vmatpush2.msra.mxu0 0.0
      %2205 = vmatprep.subr.mxu0 0.0
      %2206 = vmatpush2.msra.mxu0 0.0
      %2207 = vmatprep.subr.mxu0 0.0
      %2208 = vmatpush2.msra.mxu0 0.0
      %2209 = vmatprep.subr.mxu0 0.0
      %2210 = vmatpush2.msra.mxu0 0.0
      %2211 = vmatprep.subr.mxu0 0.0
      %2212 = vmatpush2.msra.mxu0 0.0
      %2213 = vmatprep.subr.mxu0 0.0
      %2214 = vmatpush2.msra.mxu0 0.0
      %2215 = vmatprep.subr.mxu0 0.0
      %2216 = vmatpush2.msra.mxu0 0.0
      %2217 = vmatprep.subr.mxu0 0.0
      %2218 = vmatpush2.msra.mxu0 0.0
      %2219 = vmatprep.subr.mxu0 0.0
      %2220 = vmatpush2.msra.mxu0 0.0
      %2221 = vmatprep.subr.mxu0 0.0
      %2222 = vmatpush2.msra.mxu0 0.0
      %2223 = vmatprep.subr.mxu0 0.0
      %2224 = vmatpush2.msra.mxu0 0.0
      %2225 = vmatprep.subr.mxu0 0.0
      %2226 = vmatpush2.msra.mxu0 0.0
      %2227 = vmatprep.subr.mxu0 0.0
      %2228 = vmatpush2.msra.mxu0 0.0
      %2229 = vmatprep.subr.mxu0 0.0
      %2230 = vmatpush2.msra.mxu0 0.0
      %2231 = vmatprep.subr.mxu0 0.0
      %2232 = vmatpush2.msra.mxu0 0.0
      %2233 = vmatprep.mubr.f32.mxu0 0.0
      %2234 = vmatmul.mubr.f32.gmra.mxu0 %v2158
      %v2235 = vpop.f32.mrf.mxu0
      %v2236 = vadd.f32 %v1460, %v2235
      %v2237 = vpop.f32.mrf.mxu0
      %2238 = vmatprep.mubr.f32.mxu0 0.0
      %2239 = vmatmul.mubr.f32.gmra.mxu0 %v2161
      %v2240 = vpop.f32.mrf.mxu0
      %v2241 = vadd.f32 %v1465, %v2240
      %v2242 = vpop.f32.mrf.mxu0
      %2243 = vmatprep.mubr.f32.mxu0 0.0
      %2244 = vmatmul.mubr.f32.gmra.mxu0 %v2164
      %v2245 = vpop.f32.mrf.mxu0
      %v2246 = vadd.f32 %v1470, %v2245
      %v2247 = vpop.f32.mrf.mxu0
      %2248 = vmatprep.mubr.f32.mxu0 0.0
      %2249 = vmatmul.mubr.f32.gmra.mxu0 %v2167
      %v2250 = vpop.f32.mrf.mxu0
      %v2251 = vadd.f32 %v1475, %v2250
      %v2252 = vpop.f32.mrf.mxu0
      %2253 = vdwg.mxu0
      %v2255 = vsel %vm895, %v625, 0
      %v2258 = vsel %vm895, %v626, 0
      %v2261 = vsel %vm895, %v627, 0
      %v2264 = vsel %vm895, %v628, 0
      %2266 = vmatprep.subr.mxu0 0.0
      %2267 = vmatpush1.msra.mxu0 0.0
      %2268 = vmatprep.subr.mxu0 0.0
      %2269 = vmatpush1.msra.mxu0 0.0
      %2270 = vmatprep.subr.mxu0 0.0
      %2271 = vmatpush1.msra.mxu0 0.0
      %2272 = vmatprep.subr.mxu0 0.0
      %2273 = vmatpush1.msra.mxu0 0.0
      %2274 = vmatprep.subr.mxu0 0.0
      %2275 = vmatpush1.msra.mxu0 0.0
      %2276 = vmatprep.subr.mxu0 0.0
      %2277 = vmatpush1.msra.mxu0 0.0
      %2278 = vmatprep.subr.mxu0 0.0
      %2279 = vmatpush1.msra.mxu0 0.0
      %2280 = vmatprep.subr.mxu0 0.0
      %2281 = vmatpush1.msra.mxu0 0.0
      %2282 = vmatprep.subr.mxu0 0.0
      %2283 = vmatpush1.msra.mxu0 0.0
      %2284 = vmatprep.subr.mxu0 0.0
      %2285 = vmatpush1.msra.mxu0 0.0
      %2286 = vmatprep.subr.mxu0 0.0
      %2287 = vmatpush1.msra.mxu0 0.0
      %2288 = vmatprep.subr.mxu0 0.0
      %2289 = vmatpush1.msra.mxu0 0.0
      %2290 = vmatprep.subr.mxu0 0.0
      %2291 = vmatpush1.msra.mxu0 %v578
      %2292 = vmatprep.subr.mxu0 0.0
      %2293 = vmatpush1.msra.mxu0 %v573
      %2294 = vmatprep.subr.mxu0 0.0
      %2295 = vmatpush1.msra.mxu0 %v568
      %2296 = vmatprep.subr.mxu0 0.0
      %2297 = vmatpush1.msra.mxu0 %v563
      %2298 = vmatprep.subr.mxu0 0.0
      %2299 = vmatpush2.msra.mxu0 0.0
      %2300 = vmatprep.subr.mxu0 0.0
      %2301 = vmatpush2.msra.mxu0 0.0
      %2302 = vmatprep.subr.mxu0 0.0
      %2303 = vmatpush2.msra.mxu0 0.0
      %2304 = vmatprep.subr.mxu0 0.0
      %2305 = vmatpush2.msra.mxu0 0.0
      %2306 = vmatprep.subr.mxu0 0.0
      %2307 = vmatpush2.msra.mxu0 0.0
      %2308 = vmatprep.subr.mxu0 0.0
      %2309 = vmatpush2.msra.mxu0 0.0
      %2310 = vmatprep.subr.mxu0 0.0
      %2311 = vmatpush2.msra.mxu0 0.0
      %2312 = vmatprep.subr.mxu0 0.0
      %2313 = vmatpush2.msra.mxu0 0.0
      %2314 = vmatprep.subr.mxu0 0.0
      %2315 = vmatpush2.msra.mxu0 0.0
      %2316 = vmatprep.subr.mxu0 0.0
      %2317 = vmatpush2.msra.mxu0 0.0
      %2318 = vmatprep.subr.mxu0 0.0
      %2319 = vmatpush2.msra.mxu0 0.0
      %2320 = vmatprep.subr.mxu0 0.0
      %2321 = vmatpush2.msra.mxu0 0.0
      %2322 = vmatprep.subr.mxu0 0.0
      %2323 = vmatpush2.msra.mxu0 0.0
      %2324 = vmatprep.subr.mxu0 0.0
      %2325 = vmatpush2.msra.mxu0 0.0
      %2326 = vmatprep.subr.mxu0 0.0
      %2327 = vmatpush2.msra.mxu0 0.0
      %2328 = vmatprep.subr.mxu0 0.0
      %2329 = vmatpush2.msra.mxu0 0.0
      %2330 = vmatprep.mubr.f32.mxu0 0.0
      %2331 = vmatmul.mubr.f32.gmra.mxu0 %v2255
      %v2332 = vpop.f32.mrf.mxu0
      %v2333 = vadd.f32 %v1557, %v2332
      %v2334 = vpop.f32.mrf.mxu0
      %2335 = vmatprep.mubr.f32.mxu0 0.0
      %2336 = vmatmul.mubr.f32.gmra.mxu0 %v2258
      %v2337 = vpop.f32.mrf.mxu0
      %v2338 = vadd.f32 %v1562, %v2337
      %v2339 = vpop.f32.mrf.mxu0
      %2340 = vmatprep.mubr.f32.mxu0 0.0
      %2341 = vmatmul.mubr.f32.gmra.mxu0 %v2261
      %v2342 = vpop.f32.mrf.mxu0
      %v2343 = vadd.f32 %v1567, %v2342
      %v2344 = vpop.f32.mrf.mxu0
      %2345 = vmatprep.mubr.f32.mxu0 0.0
      %2346 = vmatmul.mubr.f32.gmra.mxu0 %v2264
      %v2347 = vpop.f32.mrf.mxu0
      %v2348 = vadd.f32 %v1572, %v2347
      %v2349 = vpop.f32.mrf.mxu0
      %2350 = vdwg.mxu0
      %v2352 = vsel %vm895, %v629, 0
      %v2355 = vsel %vm895, %v630, 0
      %v2358 = vsel %vm895, %v631, 0
      %v2361 = vsel %vm895, %v632, 0
      %2363 = vmatprep.subr.mxu0 0.0
      %2364 = vmatpush1.msra.mxu0 0.0
      %2365 = vmatprep.subr.mxu0 0.0
      %2366 = vmatpush1.msra.mxu0 0.0
      %2367 = vmatprep.subr.mxu0 0.0
      %2368 = vmatpush1.msra.mxu0 0.0
      %2369 = vmatprep.subr.mxu0 0.0
      %2370 = vmatpush1.msra.mxu0 0.0
      %2371 = vmatprep.subr.mxu0 0.0
      %2372 = vmatpush1.msra.mxu0 0.0
      %2373 = vmatprep.subr.mxu0 0.0
      %2374 = vmatpush1.msra.mxu0 0.0
      %2375 = vmatprep.subr.mxu0 0.0
      %2376 = vmatpush1.msra.mxu0 0.0
      %2377 = vmatprep.subr.mxu0 0.0
      %2378 = vmatpush1.msra.mxu0 0.0
      %2379 = vmatprep.subr.mxu0 0.0
      %2380 = vmatpush1.msra.mxu0 0.0
      %2381 = vmatprep.subr.mxu0 0.0
      %2382 = vmatpush1.msra.mxu0 0.0
      %2383 = vmatprep.subr.mxu0 0.0
      %2384 = vmatpush1.msra.mxu0 0.0
      %2385 = vmatprep.subr.mxu0 0.0
      %2386 = vmatpush1.msra.mxu0 0.0
      %2387 = vmatprep.subr.mxu0 0.0
      %2388 = vmatpush1.msra.mxu0 %v598
      %2389 = vmatprep.subr.mxu0 0.0
      %2390 = vmatpush1.msra.mxu0 %v593
      %2391 = vmatprep.subr.mxu0 0.0
      %2392 = vmatpush1.msra.mxu0 %v588
      %2393 = vmatprep.subr.mxu0 0.0
      %2394 = vmatpush1.msra.mxu0 %v583
      %2395 = vmatprep.subr.mxu0 0.0
      %2396 = vmatpush2.msra.mxu0 0.0
      %2397 = vmatprep.subr.mxu0 0.0
      %2398 = vmatpush2.msra.mxu0 0.0
      %2399 = vmatprep.subr.mxu0 0.0
      %2400 = vmatpush2.msra.mxu0 0.0
      %2401 = vmatprep.subr.mxu0 0.0
      %2402 = vmatpush2.msra.mxu0 0.0
      %2403 = vmatprep.subr.mxu0 0.0
      %2404 = vmatpush2.msra.mxu0 0.0
      %2405 = vmatprep.subr.mxu0 0.0
      %2406 = vmatpush2.msra.mxu0 0.0
      %2407 = vmatprep.subr.mxu0 0.0
      %2408 = vmatpush2.msra.mxu0 0.0
      %2409 = vmatprep.subr.mxu0 0.0
      %2410 = vmatpush2.msra.mxu0 0.0
      %2411 = vmatprep.subr.mxu0 0.0
      %2412 = vmatpush2.msra.mxu0 0.0
      %2413 = vmatprep.subr.mxu0 0.0
      %2414 = vmatpush2.msra.mxu0 0.0
      %2415 = vmatprep.subr.mxu0 0.0
      %2416 = vmatpush2.msra.mxu0 0.0
      %2417 = vmatprep.subr.mxu0 0.0
      %2418 = vmatpush2.msra.mxu0 0.0
      %2419 = vmatprep.subr.mxu0 0.0
      %2420 = vmatpush2.msra.mxu0 0.0
      %2421 = vmatprep.subr.mxu0 0.0
      %2422 = vmatpush2.msra.mxu0 0.0
      %2423 = vmatprep.subr.mxu0 0.0
      %2424 = vmatpush2.msra.mxu0 0.0
      %2425 = vmatprep.subr.mxu0 0.0
      %2426 = vmatpush2.msra.mxu0 0.0
      %2427 = vmatprep.mubr.f32.mxu0 0.0
      %2428 = vmatmul.mubr.f32.gmra.mxu0 %v2352
      %v2429 = vpop.f32.mrf.mxu0
      %v2430 = vadd.f32 %v1654, %v2429
      %v2431 = vpop.f32.mrf.mxu0
      %2432 = vmatprep.mubr.f32.mxu0 0.0
      %2433 = vmatmul.mubr.f32.gmra.mxu0 %v2355
      %v2434 = vpop.f32.mrf.mxu0
      %v2435 = vadd.f32 %v1659, %v2434
      %v2436 = vpop.f32.mrf.mxu0
      %2437 = vmatprep.mubr.f32.mxu0 0.0
      %2438 = vmatmul.mubr.f32.gmra.mxu0 %v2358
      %v2439 = vpop.f32.mrf.mxu0
      %v2440 = vadd.f32 %v1664, %v2439
      %v2441 = vpop.f32.mrf.mxu0
      %2442 = vmatprep.mubr.f32.mxu0 0.0
      %2443 = vmatmul.mubr.f32.gmra.mxu0 %v2361
      %v2444 = vpop.f32.mrf.mxu0
      %v2445 = vadd.f32 %v1669, %v2444
      %v2446 = vpop.f32.mrf.mxu0
      %2447 = vdwg.mxu0
      %2448 = vrot.lane.b32.xlu0 %v274, 112
      %v2449 = vpop.permute.xlu0 %2448
      %v2450 = vsel %vm372, %v2449, 0
      %2452 = vmatprep.subr.mxu0 0.0
      %2453 = vmatpush1.msra.mxu0 0.0
      %2454 = vmatprep.subr.mxu0 0.0
      %2455 = vmatpush1.msra.mxu0 0.0
      %2456 = vmatprep.subr.mxu0 0.0
      %2457 = vmatpush1.msra.mxu0 0.0
      %2458 = vmatprep.subr.mxu0 0.0
      %2459 = vmatpush1.msra.mxu0 0.0
      %2460 = vmatprep.subr.mxu0 0.0
      %2461 = vmatpush1.msra.mxu0 0.0
      %2462 = vmatprep.subr.mxu0 0.0
      %2463 = vmatpush1.msra.mxu0 0.0
      %2464 = vmatprep.subr.mxu0 0.0
      %2465 = vmatpush1.msra.mxu0 0.0
      %2466 = vmatprep.subr.mxu0 0.0
      %2467 = vmatpush1.msra.mxu0 0.0
      %2468 = vmatprep.subr.mxu0 0.0
      %2469 = vmatpush1.msra.mxu0 0.0
      %2470 = vmatprep.subr.mxu0 0.0
      %2471 = vmatpush1.msra.mxu0 0.0
      %2472 = vmatprep.subr.mxu0 0.0
      %2473 = vmatpush1.msra.mxu0 0.0
      %2474 = vmatprep.subr.mxu0 0.0
      %2475 = vmatpush1.msra.mxu0 0.0
      %2476 = vmatprep.subr.mxu0 0.0
      %2477 = vmatpush1.msra.mxu0 0.0
      %2478 = vmatprep.subr.mxu0 0.0
      %2479 = vmatpush1.msra.mxu0 0.0
      %2480 = vmatprep.subr.mxu0 0.0
      %2481 = vmatpush1.msra.mxu0 0.0
      %2482 = vmatprep.subr.mxu0 0.0
      %2483 = vmatpush1.msra.mxu0 %v2450
      %2484 = vmatprep.subr.mxu0 0.0
      %2485 = vmatpush2.msra.mxu0 0.0
      %2486 = vmatprep.subr.mxu0 0.0
      %2487 = vmatpush2.msra.mxu0 0.0
      %2488 = vmatprep.subr.mxu0 0.0
      %2489 = vmatpush2.msra.mxu0 0.0
      %2490 = vmatprep.subr.mxu0 0.0
      %2491 = vmatpush2.msra.mxu0 0.0
      %2492 = vmatprep.subr.mxu0 0.0
      %2493 = vmatpush2.msra.mxu0 0.0
      %2494 = vmatprep.subr.mxu0 0.0
      %2495 = vmatpush2.msra.mxu0 0.0
      %2496 = vmatprep.subr.mxu0 0.0
      %2497 = vmatpush2.msra.mxu0 0.0
      %2498 = vmatprep.subr.mxu0 0.0
      %2499 = vmatpush2.msra.mxu0 0.0
      %2500 = vmatprep.subr.mxu0 0.0
      %2501 = vmatpush2.msra.mxu0 0.0
      %2502 = vmatprep.subr.mxu0 0.0
      %2503 = vmatpush2.msra.mxu0 0.0
      %2504 = vmatprep.subr.mxu0 0.0
      %2505 = vmatpush2.msra.mxu0 0.0
      %2506 = vmatprep.subr.mxu0 0.0
      %2507 = vmatpush2.msra.mxu0 0.0
      %2508 = vmatprep.subr.mxu0 0.0
      %2509 = vmatpush2.msra.mxu0 0.0
      %2510 = vmatprep.subr.mxu0 0.0
      %2511 = vmatpush2.msra.mxu0 0.0
      %2512 = vmatprep.subr.mxu0 0.0
      %2513 = vmatpush2.msra.mxu0 0.0
      %2514 = vmatprep.subr.mxu0 0.0
      %2515 = vmatpush2.msra.mxu0 0.0
      %2516 = vmatprep.mubr.f32.mxu0 0.0
      %2517 = vmatmul.mubr.f32.gmra.mxu0 %v277
      %v2518 = vpop.f32.mrf.mxu0
      %v2519 = vadd.f32 0.0, %v2518
      %v2520 = vpop.f32.mrf.mxu0
      %2521 = vmatprep.mubr.f32.mxu0 0.0
      %2522 = vmatmul.mubr.f32.gmra.mxu0 %v280
      %v2523 = vpop.f32.mrf.mxu0
      %v2524 = vadd.f32 0.0, %v2523
      %v2525 = vpop.f32.mrf.mxu0
      %2526 = vmatprep.mubr.f32.mxu0 0.0
      %2527 = vmatmul.mubr.f32.gmra.mxu0 %v283
      %v2528 = vpop.f32.mrf.mxu0
      %v2529 = vadd.f32 0.0, %v2528
      %v2530 = vpop.f32.mrf.mxu0
      %2531 = vmatprep.mubr.f32.mxu0 0.0
      %2532 = vmatmul.mubr.f32.gmra.mxu0 %v286
      %v2533 = vpop.f32.mrf.mxu0
      %v2534 = vadd.f32 0.0, %v2533
      %v2535 = vpop.f32.mrf.mxu0
      %2536 = vmatprep.mubr.f32.mxu0 0.0
      %2537 = vmatmul.mubr.f32.gmra.mxu0 %v289
      %v2538 = vpop.f32.mrf.mxu0
      %v2539 = vadd.f32 0.0, %v2538
      %v2540 = vpop.f32.mrf.mxu0
      %2541 = vmatprep.mubr.f32.mxu0 0.0
      %2542 = vmatmul.mubr.f32.gmra.mxu0 %v292
      %v2543 = vpop.f32.mrf.mxu0
      %v2544 = vadd.f32 0.0, %v2543
      %v2545 = vpop.f32.mrf.mxu0
      %2546 = vmatprep.mubr.f32.mxu0 0.0
      %2547 = vmatmul.mubr.f32.gmra.mxu0 %v295
      %v2548 = vpop.f32.mrf.mxu0
      %v2549 = vadd.f32 0.0, %v2548
      %v2550 = vpop.f32.mrf.mxu0
      %2551 = vmatprep.mubr.f32.mxu0 0.0
      %2552 = vmatmul.mubr.f32.gmra.mxu0 %v298
      %v2553 = vpop.f32.mrf.mxu0
      %v2554 = vadd.f32 0.0, %v2553
      %v2555 = vpop.f32.mrf.mxu0
      %2556 = vmatprep.mubr.f32.mxu0 0.0
      %2557 = vmatmul.mubr.f32.gmra.mxu0 %v301
      %v2558 = vpop.f32.mrf.mxu0
      %v2559 = vadd.f32 0.0, %v2558
      %v2560 = vpop.f32.mrf.mxu0
      %2561 = vmatprep.mubr.f32.mxu0 0.0
      %2562 = vmatmul.mubr.f32.gmra.mxu0 %v304
      %v2563 = vpop.f32.mrf.mxu0
      %v2564 = vadd.f32 0.0, %v2563
      %v2565 = vpop.f32.mrf.mxu0
      %2566 = vmatprep.mubr.f32.mxu0 0.0
      %2567 = vmatmul.mubr.f32.gmra.mxu0 %v307
      %v2568 = vpop.f32.mrf.mxu0
      %v2569 = vadd.f32 0.0, %v2568
      %v2570 = vpop.f32.mrf.mxu0
      %2571 = vmatprep.mubr.f32.mxu0 0.0
      %2572 = vmatmul.mubr.f32.gmra.mxu0 %v310
      %v2573 = vpop.f32.mrf.mxu0
      %v2574 = vadd.f32 0.0, %v2573
      %v2575 = vpop.f32.mrf.mxu0
      %2576 = vmatprep.mubr.f32.mxu0 0.0
      %2577 = vmatmul.mubr.f32.gmra.mxu0 %v313
      %v2578 = vpop.f32.mrf.mxu0
      %v2579 = vadd.f32 0.0, %v2578
      %v2580 = vpop.f32.mrf.mxu0
      %2581 = vmatprep.mubr.f32.mxu0 0.0
      %2582 = vmatmul.mubr.f32.gmra.mxu0 %v316
      %v2583 = vpop.f32.mrf.mxu0
      %v2584 = vadd.f32 0.0, %v2583
      %v2585 = vpop.f32.mrf.mxu0
      %2586 = vmatprep.mubr.f32.mxu0 0.0
      %2587 = vmatmul.mubr.f32.gmra.mxu0 %v319
      %v2588 = vpop.f32.mrf.mxu0
      %v2589 = vadd.f32 0.0, %v2588
      %v2590 = vpop.f32.mrf.mxu0
      %2591 = vmatprep.mubr.f32.mxu0 0.0
      %2592 = vmatmul.mubr.f32.gmra.mxu0 %v322
      %v2593 = vpop.f32.mrf.mxu0
      %v2594 = vadd.f32 0.0, %v2593
      %v2595 = vpop.f32.mrf.mxu0
      %2596 = vmatprep.mubr.f32.mxu0 0.0
      %2597 = vmatmul.mubr.f32.gmra.mxu0 %v325
      %v2598 = vpop.f32.mrf.mxu0
      %v2599 = vadd.f32 0.0, %v2598
      %v2600 = vpop.f32.mrf.mxu0
      %2601 = vmatprep.mubr.f32.mxu0 0.0
      %2602 = vmatmul.mubr.f32.gmra.mxu0 %v328
      %v2603 = vpop.f32.mrf.mxu0
      %v2604 = vadd.f32 0.0, %v2603
      %v2605 = vpop.f32.mrf.mxu0
      %2606 = vmatprep.mubr.f32.mxu0 0.0
      %2607 = vmatmul.mubr.f32.gmra.mxu0 %v331
      %v2608 = vpop.f32.mrf.mxu0
      %v2609 = vadd.f32 0.0, %v2608
      %v2610 = vpop.f32.mrf.mxu0
      %2611 = vmatprep.mubr.f32.mxu0 0.0
      %2612 = vmatmul.mubr.f32.gmra.mxu0 %v334
      %v2613 = vpop.f32.mrf.mxu0
      %v2614 = vadd.f32 0.0, %v2613
      %v2615 = vpop.f32.mrf.mxu0
      %2616 = vmatprep.mubr.f32.mxu0 0.0
      %2617 = vmatmul.mubr.f32.gmra.mxu0 %v337
      %v2618 = vpop.f32.mrf.mxu0
      %v2619 = vadd.f32 0.0, %v2618
      %v2620 = vpop.f32.mrf.mxu0
      %2621 = vmatprep.mubr.f32.mxu0 0.0
      %2622 = vmatmul.mubr.f32.gmra.mxu0 %v340
      %v2623 = vpop.f32.mrf.mxu0
      %v2624 = vadd.f32 0.0, %v2623
      %v2625 = vpop.f32.mrf.mxu0
      %2626 = vmatprep.mubr.f32.mxu0 0.0
      %2627 = vmatmul.mubr.f32.gmra.mxu0 %v343
      %v2628 = vpop.f32.mrf.mxu0
      %v2629 = vadd.f32 0.0, %v2628
      %v2630 = vpop.f32.mrf.mxu0
      %2631 = vmatprep.mubr.f32.mxu0 0.0
      %2632 = vmatmul.mubr.f32.gmra.mxu0 %v346
      %v2633 = vpop.f32.mrf.mxu0
      %v2634 = vadd.f32 0.0, %v2633
      %v2635 = vpop.f32.mrf.mxu0
      %2636 = vmatprep.mubr.f32.mxu0 0.0
      %2637 = vmatmul.mubr.f32.gmra.mxu0 %v349
      %v2638 = vpop.f32.mrf.mxu0
      %v2639 = vadd.f32 0.0, %v2638
      %v2640 = vpop.f32.mrf.mxu0
      %2641 = vmatprep.mubr.f32.mxu0 0.0
      %2642 = vmatmul.mubr.f32.gmra.mxu0 %v352
      %v2643 = vpop.f32.mrf.mxu0
      %v2644 = vadd.f32 0.0, %v2643
      %v2645 = vpop.f32.mrf.mxu0
      %2646 = vmatprep.mubr.f32.mxu0 0.0
      %2647 = vmatmul.mubr.f32.gmra.mxu0 %v355
      %v2648 = vpop.f32.mrf.mxu0
      %v2649 = vadd.f32 0.0, %v2648
      %v2650 = vpop.f32.mrf.mxu0
      %2651 = vmatprep.mubr.f32.mxu0 0.0
      %2652 = vmatmul.mubr.f32.gmra.mxu0 %v358
      %v2653 = vpop.f32.mrf.mxu0
      %v2654 = vadd.f32 0.0, %v2653
      %v2655 = vpop.f32.mrf.mxu0
      %2656 = vmatprep.mubr.f32.mxu0 0.0
      %2657 = vmatmul.mubr.f32.gmra.mxu0 %v361
      %v2658 = vpop.f32.mrf.mxu0
      %v2659 = vadd.f32 0.0, %v2658
      %v2660 = vpop.f32.mrf.mxu0
      %2661 = vmatprep.mubr.f32.mxu0 0.0
      %2662 = vmatmul.mubr.f32.gmra.mxu0 %v364
      %v2663 = vpop.f32.mrf.mxu0
      %v2664 = vadd.f32 0.0, %v2663
      %v2665 = vpop.f32.mrf.mxu0
      %2666 = vmatprep.mubr.f32.mxu0 0.0
      %2667 = vmatmul.mubr.f32.gmra.mxu0 %v367
      %v2668 = vpop.f32.mrf.mxu0
      %v2669 = vadd.f32 0.0, %v2668
      %v2670 = vpop.f32.mrf.mxu0
      %2671 = vmatprep.mubr.f32.mxu0 0.0
      %2672 = vmatmul.mubr.f32.gmra.mxu0 %v370
      %v2673 = vpop.f32.mrf.mxu0
      %v2674 = vadd.f32 0.0, %v2673
      %v2675 = vpop.f32.mrf.mxu0
      %2676 = vdwg.mxu0
      %s2677 = scalar_lea.vmem %s2, 512
      %v2678 = vld [vmem:[%s2677] sm:$0xff]
      %v2679 = vld [vmem:[%s2677 + $0x8] sm:$0xff]
      %v2680 = vld [vmem:[%s2677 + $0x10] sm:$0xff]
      %v2681 = vld [vmem:[%s2677 + $0x18] sm:$0xff]
      %v2682 = vld [vmem:[%s2677 + $0x20] sm:$0xff]
      %v2683 = vld [vmem:[%s2677 + $0x28] sm:$0xff]
      %v2684 = vld [vmem:[%s2677 + $0x30] sm:$0xff]
      %v2685 = vld [vmem:[%s2677 + $0x38] sm:$0xff]
      %v2686 = vld [vmem:[%s2677 + $0x40] sm:$0xff]
      %v2687 = vld [vmem:[%s2677 + $0x48] sm:$0xff]
      %v2688 = vld [vmem:[%s2677 + $0x50] sm:$0xff]
      %v2689 = vld [vmem:[%s2677 + $0x58] sm:$0xff]
      %v2690 = vld [vmem:[%s2677 + $0x60] sm:$0xff]
      %v2691 = vld [vmem:[%s2677 + $0x68] sm:$0xff]
      %v2692 = vld [vmem:[%s2677 + $0x70] sm:$0xff]
      %v2693 = vld [vmem:[%s2677 + $0x78] sm:$0xff]
      %v2694 = vld [vmem:[%s2677 + $0x80] sm:$0xff]
      %v2695 = vld [vmem:[%s2677 + $0x88] sm:$0xff]
      %v2696 = vld [vmem:[%s2677 + $0x90] sm:$0xff]
      %v2697 = vld [vmem:[%s2677 + $0x98] sm:$0xff]
      %v2698 = vld [vmem:[%s2677 + $0xa0] sm:$0xff]
      %v2699 = vld [vmem:[%s2677 + $0xa8] sm:$0xff]
      %v2700 = vld [vmem:[%s2677 + $0xb0] sm:$0xff]
      %v2701 = vld [vmem:[%s2677 + $0xb8] sm:$0xff]
      %v2702 = vld [vmem:[%s2677 + $0xc0] sm:$0xff]
      %v2703 = vld [vmem:[%s2677 + $0xc8] sm:$0xff]
      %v2704 = vld [vmem:[%s2677 + $0xd0] sm:$0xff]
      %v2705 = vld [vmem:[%s2677 + $0xd8] sm:$0xff]
      %v2706 = vld [vmem:[%s2677 + $0xe0] sm:$0xff]
      %v2707 = vld [vmem:[%s2677 + $0xe8] sm:$0xff]
      %v2708 = vld [vmem:[%s2677 + $0xf0] sm:$0xff]
      %v2709 = vld [vmem:[%s2677 + $0xf8] sm:$0xff]
      %v2711 = vsel %vm895, %v2678, 0
      %v2714 = vsel %vm895, %v2679, 0
      %v2717 = vsel %vm895, %v2680, 0
      %v2720 = vsel %vm895, %v2681, 0
      %2722 = vmatprep.subr.mxu0 0.0
      %2723 = vmatpush1.msra.mxu0 0.0
      %2724 = vmatprep.subr.mxu0 0.0
      %2725 = vmatpush1.msra.mxu0 0.0
      %2726 = vmatprep.subr.mxu0 0.0
      %2727 = vmatpush1.msra.mxu0 0.0
      %2728 = vmatprep.subr.mxu0 0.0
      %2729 = vmatpush1.msra.mxu0 0.0
      %2730 = vmatprep.subr.mxu0 0.0
      %2731 = vmatpush1.msra.mxu0 0.0
      %2732 = vmatprep.subr.mxu0 0.0
      %2733 = vmatpush1.msra.mxu0 0.0
      %2734 = vmatprep.subr.mxu0 0.0
      %2735 = vmatpush1.msra.mxu0 0.0
      %2736 = vmatprep.subr.mxu0 0.0
      %2737 = vmatpush1.msra.mxu0 0.0
      %2738 = vmatprep.subr.mxu0 0.0
      %2739 = vmatpush1.msra.mxu0 0.0
      %2740 = vmatprep.subr.mxu0 0.0
      %2741 = vmatpush1.msra.mxu0 0.0
      %2742 = vmatprep.subr.mxu0 0.0
      %2743 = vmatpush1.msra.mxu0 0.0
      %2744 = vmatprep.subr.mxu0 0.0
      %2745 = vmatpush1.msra.mxu0 0.0
      %2746 = vmatprep.subr.mxu0 0.0
      %2747 = vmatpush1.msra.mxu0 %v2534
      %2748 = vmatprep.subr.mxu0 0.0
      %2749 = vmatpush1.msra.mxu0 %v2529
      %2750 = vmatprep.subr.mxu0 0.0
      %2751 = vmatpush1.msra.mxu0 %v2524
      %2752 = vmatprep.subr.mxu0 0.0
      %2753 = vmatpush1.msra.mxu0 %v2519
      %2754 = vmatprep.subr.mxu0 0.0
      %2755 = vmatpush2.msra.mxu0 0.0
      %2756 = vmatprep.subr.mxu0 0.0
      %2757 = vmatpush2.msra.mxu0 0.0
      %2758 = vmatprep.subr.mxu0 0.0
      %2759 = vmatpush2.msra.mxu0 0.0
      %2760 = vmatprep.subr.mxu0 0.0
      %2761 = vmatpush2.msra.mxu0 0.0
      %2762 = vmatprep.subr.mxu0 0.0
      %2763 = vmatpush2.msra.mxu0 0.0
      %2764 = vmatprep.subr.mxu0 0.0
      %2765 = vmatpush2.msra.mxu0 0.0
      %2766 = vmatprep.subr.mxu0 0.0
      %2767 = vmatpush2.msra.mxu0 0.0
      %2768 = vmatprep.subr.mxu0 0.0
      %2769 = vmatpush2.msra.mxu0 0.0
      %2770 = vmatprep.subr.mxu0 0.0
      %2771 = vmatpush2.msra.mxu0 0.0
      %2772 = vmatprep.subr.mxu0 0.0
      %2773 = vmatpush2.msra.mxu0 0.0
      %2774 = vmatprep.subr.mxu0 0.0
      %2775 = vmatpush2.msra.mxu0 0.0
      %2776 = vmatprep.subr.mxu0 0.0
      %2777 = vmatpush2.msra.mxu0 0.0
      %2778 = vmatprep.subr.mxu0 0.0
      %2779 = vmatpush2.msra.mxu0 0.0
      %2780 = vmatprep.subr.mxu0 0.0
      %2781 = vmatpush2.msra.mxu0 0.0
      %2782 = vmatprep.subr.mxu0 0.0
      %2783 = vmatpush2.msra.mxu0 0.0
      %2784 = vmatprep.subr.mxu0 0.0
      %2785 = vmatpush2.msra.mxu0 0.0
      %2786 = vmatprep.mubr.f32.mxu0 0.0
      %2787 = vmatmul.mubr.f32.gmra.mxu0 %v2711
      %v2788 = vpop.f32.mrf.mxu0
      %v2789 = vadd.f32 0.0, %v2788
      %v2790 = vpop.f32.mrf.mxu0
      %2791 = vmatprep.mubr.f32.mxu0 0.0
      %2792 = vmatmul.mubr.f32.gmra.mxu0 %v2714
      %v2793 = vpop.f32.mrf.mxu0
      %v2794 = vadd.f32 0.0, %v2793
      %v2795 = vpop.f32.mrf.mxu0
      %2796 = vmatprep.mubr.f32.mxu0 0.0
      %2797 = vmatmul.mubr.f32.gmra.mxu0 %v2717
      %v2798 = vpop.f32.mrf.mxu0
      %v2799 = vadd.f32 0.0, %v2798
      %v2800 = vpop.f32.mrf.mxu0
      %2801 = vmatprep.mubr.f32.mxu0 0.0
      %2802 = vmatmul.mubr.f32.gmra.mxu0 %v2720
      %v2803 = vpop.f32.mrf.mxu0
      %v2804 = vadd.f32 0.0, %v2803
      %v2805 = vpop.f32.mrf.mxu0
      %2806 = vdwg.mxu0
      %v2808 = vsel %vm895, %v2682, 0
      %v2811 = vsel %vm895, %v2683, 0
      %v2814 = vsel %vm895, %v2684, 0
      %v2817 = vsel %vm895, %v2685, 0
      %2819 = vmatprep.subr.mxu0 0.0
      %2820 = vmatpush1.msra.mxu0 0.0
      %2821 = vmatprep.subr.mxu0 0.0
      %2822 = vmatpush1.msra.mxu0 0.0
      %2823 = vmatprep.subr.mxu0 0.0
      %2824 = vmatpush1.msra.mxu0 0.0
      %2825 = vmatprep.subr.mxu0 0.0
      %2826 = vmatpush1.msra.mxu0 0.0
      %2827 = vmatprep.subr.mxu0 0.0
      %2828 = vmatpush1.msra.mxu0 0.0
      %2829 = vmatprep.subr.mxu0 0.0
      %2830 = vmatpush1.msra.mxu0 0.0
      %2831 = vmatprep.subr.mxu0 0.0
      %2832 = vmatpush1.msra.mxu0 0.0
      %2833 = vmatprep.subr.mxu0 0.0
      %2834 = vmatpush1.msra.mxu0 0.0
      %2835 = vmatprep.subr.mxu0 0.0
      %2836 = vmatpush1.msra.mxu0 0.0
      %2837 = vmatprep.subr.mxu0 0.0
      %2838 = vmatpush1.msra.mxu0 0.0
      %2839 = vmatprep.subr.mxu0 0.0
      %2840 = vmatpush1.msra.mxu0 0.0
      %2841 = vmatprep.subr.mxu0 0.0
      %2842 = vmatpush1.msra.mxu0 0.0
      %2843 = vmatprep.subr.mxu0 0.0
      %2844 = vmatpush1.msra.mxu0 %v2554
      %2845 = vmatprep.subr.mxu0 0.0
      %2846 = vmatpush1.msra.mxu0 %v2549
      %2847 = vmatprep.subr.mxu0 0.0
      %2848 = vmatpush1.msra.mxu0 %v2544
      %2849 = vmatprep.subr.mxu0 0.0
      %2850 = vmatpush1.msra.mxu0 %v2539
      %2851 = vmatprep.subr.mxu0 0.0
      %2852 = vmatpush2.msra.mxu0 0.0
      %2853 = vmatprep.subr.mxu0 0.0
      %2854 = vmatpush2.msra.mxu0 0.0
      %2855 = vmatprep.subr.mxu0 0.0
      %2856 = vmatpush2.msra.mxu0 0.0
      %2857 = vmatprep.subr.mxu0 0.0
      %2858 = vmatpush2.msra.mxu0 0.0
      %2859 = vmatprep.subr.mxu0 0.0
      %2860 = vmatpush2.msra.mxu0 0.0
      %2861 = vmatprep.subr.mxu0 0.0
      %2862 = vmatpush2.msra.mxu0 0.0
      %2863 = vmatprep.subr.mxu0 0.0
      %2864 = vmatpush2.msra.mxu0 0.0
      %2865 = vmatprep.subr.mxu0 0.0
      %2866 = vmatpush2.msra.mxu0 0.0
      %2867 = vmatprep.subr.mxu0 0.0
      %2868 = vmatpush2.msra.mxu0 0.0
      %2869 = vmatprep.subr.mxu0 0.0
      %2870 = vmatpush2.msra.mxu0 0.0
      %2871 = vmatprep.subr.mxu0 0.0
      %2872 = vmatpush2.msra.mxu0 0.0
      %2873 = vmatprep.subr.mxu0 0.0
      %2874 = vmatpush2.msra.mxu0 0.0
      %2875 = vmatprep.subr.mxu0 0.0
      %2876 = vmatpush2.msra.mxu0 0.0
      %2877 = vmatprep.subr.mxu0 0.0
      %2878 = vmatpush2.msra.mxu0 0.0
      %2879 = vmatprep.subr.mxu0 0.0
      %2880 = vmatpush2.msra.mxu0 0.0
      %2881 = vmatprep.subr.mxu0 0.0
      %2882 = vmatpush2.msra.mxu0 0.0
      %2883 = vmatprep.mubr.f32.mxu0 0.0
      %2884 = vmatmul.mubr.f32.gmra.mxu0 %v2808
      %v2885 = vpop.f32.mrf.mxu0
      %v2886 = vadd.f32 0.0, %v2885
      %v2887 = vpop.f32.mrf.mxu0
      %2888 = vmatprep.mubr.f32.mxu0 0.0
      %2889 = vmatmul.mubr.f32.gmra.mxu0 %v2811
      %v2890 = vpop.f32.mrf.mxu0
      %v2891 = vadd.f32 0.0, %v2890
      %v2892 = vpop.f32.mrf.mxu0
      %2893 = vmatprep.mubr.f32.mxu0 0.0
      %2894 = vmatmul.mubr.f32.gmra.mxu0 %v2814
      %v2895 = vpop.f32.mrf.mxu0
      %v2896 = vadd.f32 0.0, %v2895
      %v2897 = vpop.f32.mrf.mxu0
      %2898 = vmatprep.mubr.f32.mxu0 0.0
      %2899 = vmatmul.mubr.f32.gmra.mxu0 %v2817
      %v2900 = vpop.f32.mrf.mxu0
      %v2901 = vadd.f32 0.0, %v2900
      %v2902 = vpop.f32.mrf.mxu0
      %2903 = vdwg.mxu0
      %v2905 = vsel %vm895, %v2686, 0
      %v2908 = vsel %vm895, %v2687, 0
      %v2911 = vsel %vm895, %v2688, 0
      %v2914 = vsel %vm895, %v2689, 0
      %2916 = vmatprep.subr.mxu0 0.0
      %2917 = vmatpush1.msra.mxu0 0.0
      %2918 = vmatprep.subr.mxu0 0.0
      %2919 = vmatpush1.msra.mxu0 0.0
      %2920 = vmatprep.subr.mxu0 0.0
      %2921 = vmatpush1.msra.mxu0 0.0
      %2922 = vmatprep.subr.mxu0 0.0
      %2923 = vmatpush1.msra.mxu0 0.0
      %2924 = vmatprep.subr.mxu0 0.0
      %2925 = vmatpush1.msra.mxu0 0.0
      %2926 = vmatprep.subr.mxu0 0.0
      %2927 = vmatpush1.msra.mxu0 0.0
      %2928 = vmatprep.subr.mxu0 0.0
      %2929 = vmatpush1.msra.mxu0 0.0
      %2930 = vmatprep.subr.mxu0 0.0
      %2931 = vmatpush1.msra.mxu0 0.0
      %2932 = vmatprep.subr.mxu0 0.0
      %2933 = vmatpush1.msra.mxu0 0.0
      %2934 = vmatprep.subr.mxu0 0.0
      %2935 = vmatpush1.msra.mxu0 0.0
      %2936 = vmatprep.subr.mxu0 0.0
      %2937 = vmatpush1.msra.mxu0 0.0
      %2938 = vmatprep.subr.mxu0 0.0
      %2939 = vmatpush1.msra.mxu0 0.0
      %2940 = vmatprep.subr.mxu0 0.0
      %2941 = vmatpush1.msra.mxu0 %v2574
      %2942 = vmatprep.subr.mxu0 0.0
      %2943 = vmatpush1.msra.mxu0 %v2569
      %2944 = vmatprep.subr.mxu0 0.0
      %2945 = vmatpush1.msra.mxu0 %v2564
      %2946 = vmatprep.subr.mxu0 0.0
      %2947 = vmatpush1.msra.mxu0 %v2559
      %2948 = vmatprep.subr.mxu0 0.0
      %2949 = vmatpush2.msra.mxu0 0.0
      %2950 = vmatprep.subr.mxu0 0.0
      %2951 = vmatpush2.msra.mxu0 0.0
      %2952 = vmatprep.subr.mxu0 0.0
      %2953 = vmatpush2.msra.mxu0 0.0
      %2954 = vmatprep.subr.mxu0 0.0
      %2955 = vmatpush2.msra.mxu0 0.0
      %2956 = vmatprep.subr.mxu0 0.0
      %2957 = vmatpush2.msra.mxu0 0.0
      %2958 = vmatprep.subr.mxu0 0.0
      %2959 = vmatpush2.msra.mxu0 0.0
      %2960 = vmatprep.subr.mxu0 0.0
      %2961 = vmatpush2.msra.mxu0 0.0
      %2962 = vmatprep.subr.mxu0 0.0
      %2963 = vmatpush2.msra.mxu0 0.0
      %2964 = vmatprep.subr.mxu0 0.0
      %2965 = vmatpush2.msra.mxu0 0.0
      %2966 = vmatprep.subr.mxu0 0.0
      %2967 = vmatpush2.msra.mxu0 0.0
      %2968 = vmatprep.subr.mxu0 0.0
      %2969 = vmatpush2.msra.mxu0 0.0
      %2970 = vmatprep.subr.mxu0 0.0
      %2971 = vmatpush2.msra.mxu0 0.0
      %2972 = vmatprep.subr.mxu0 0.0
      %2973 = vmatpush2.msra.mxu0 0.0
      %2974 = vmatprep.subr.mxu0 0.0
      %2975 = vmatpush2.msra.mxu0 0.0
      %2976 = vmatprep.subr.mxu0 0.0
      %2977 = vmatpush2.msra.mxu0 0.0
      %2978 = vmatprep.subr.mxu0 0.0
      %2979 = vmatpush2.msra.mxu0 0.0
      %2980 = vmatprep.mubr.f32.mxu0 0.0
      %2981 = vmatmul.mubr.f32.gmra.mxu0 %v2905
      %v2982 = vpop.f32.mrf.mxu0
      %v2983 = vadd.f32 0.0, %v2982
      %v2984 = vpop.f32.mrf.mxu0
      %2985 = vmatprep.mubr.f32.mxu0 0.0
      %2986 = vmatmul.mubr.f32.gmra.mxu0 %v2908
      %v2987 = vpop.f32.mrf.mxu0
      %v2988 = vadd.f32 0.0, %v2987
      %v2989 = vpop.f32.mrf.mxu0
      %2990 = vmatprep.mubr.f32.mxu0 0.0
      %2991 = vmatmul.mubr.f32.gmra.mxu0 %v2911
      %v2992 = vpop.f32.mrf.mxu0
      %v2993 = vadd.f32 0.0, %v2992
      %v2994 = vpop.f32.mrf.mxu0
      %2995 = vmatprep.mubr.f32.mxu0 0.0
      %2996 = vmatmul.mubr.f32.gmra.mxu0 %v2914
      %v2997 = vpop.f32.mrf.mxu0
      %v2998 = vadd.f32 0.0, %v2997
      %v2999 = vpop.f32.mrf.mxu0
      %3000 = vdwg.mxu0
      %v3002 = vsel %vm895, %v2690, 0
      %v3005 = vsel %vm895, %v2691, 0
      %v3008 = vsel %vm895, %v2692, 0
      %v3011 = vsel %vm895, %v2693, 0
      %3013 = vmatprep.subr.mxu0 0.0
      %3014 = vmatpush1.msra.mxu0 0.0
      %3015 = vmatprep.subr.mxu0 0.0
      %3016 = vmatpush1.msra.mxu0 0.0
      %3017 = vmatprep.subr.mxu0 0.0
      %3018 = vmatpush1.msra.mxu0 0.0
      %3019 = vmatprep.subr.mxu0 0.0
      %3020 = vmatpush1.msra.mxu0 0.0
      %3021 = vmatprep.subr.mxu0 0.0
      %3022 = vmatpush1.msra.mxu0 0.0
      %3023 = vmatprep.subr.mxu0 0.0
      %3024 = vmatpush1.msra.mxu0 0.0
      %3025 = vmatprep.subr.mxu0 0.0
      %3026 = vmatpush1.msra.mxu0 0.0
      %3027 = vmatprep.subr.mxu0 0.0
      %3028 = vmatpush1.msra.mxu0 0.0
      %3029 = vmatprep.subr.mxu0 0.0
      %3030 = vmatpush1.msra.mxu0 0.0
      %3031 = vmatprep.subr.mxu0 0.0
      %3032 = vmatpush1.msra.mxu0 0.0
      %3033 = vmatprep.subr.mxu0 0.0
      %3034 = vmatpush1.msra.mxu0 0.0
      %3035 = vmatprep.subr.mxu0 0.0
      %3036 = vmatpush1.msra.mxu0 0.0
      %3037 = vmatprep.subr.mxu0 0.0
      %3038 = vmatpush1.msra.mxu0 %v2594
      %3039 = vmatprep.subr.mxu0 0.0
      %3040 = vmatpush1.msra.mxu0 %v2589
      %3041 = vmatprep.subr.mxu0 0.0
      %3042 = vmatpush1.msra.mxu0 %v2584
      %3043 = vmatprep.subr.mxu0 0.0
      %3044 = vmatpush1.msra.mxu0 %v2579
      %3045 = vmatprep.subr.mxu0 0.0
      %3046 = vmatpush2.msra.mxu0 0.0
      %3047 = vmatprep.subr.mxu0 0.0
      %3048 = vmatpush2.msra.mxu0 0.0
      %3049 = vmatprep.subr.mxu0 0.0
      %3050 = vmatpush2.msra.mxu0 0.0
      %3051 = vmatprep.subr.mxu0 0.0
      %3052 = vmatpush2.msra.mxu0 0.0
      %3053 = vmatprep.subr.mxu0 0.0
      %3054 = vmatpush2.msra.mxu0 0.0
      %3055 = vmatprep.subr.mxu0 0.0
      %3056 = vmatpush2.msra.mxu0 0.0
      %3057 = vmatprep.subr.mxu0 0.0
      %3058 = vmatpush2.msra.mxu0 0.0
      %3059 = vmatprep.subr.mxu0 0.0
      %3060 = vmatpush2.msra.mxu0 0.0
      %3061 = vmatprep.subr.mxu0 0.0
      %3062 = vmatpush2.msra.mxu0 0.0
      %3063 = vmatprep.subr.mxu0 0.0
      %3064 = vmatpush2.msra.mxu0 0.0
      %3065 = vmatprep.subr.mxu0 0.0
      %3066 = vmatpush2.msra.mxu0 0.0
      %3067 = vmatprep.subr.mxu0 0.0
      %3068 = vmatpush2.msra.mxu0 0.0
      %3069 = vmatprep.subr.mxu0 0.0
      %3070 = vmatpush2.msra.mxu0 0.0
      %3071 = vmatprep.subr.mxu0 0.0
      %3072 = vmatpush2.msra.mxu0 0.0
      %3073 = vmatprep.subr.mxu0 0.0
      %3074 = vmatpush2.msra.mxu0 0.0
      %3075 = vmatprep.subr.mxu0 0.0
      %3076 = vmatpush2.msra.mxu0 0.0
      %3077 = vmatprep.mubr.f32.mxu0 0.0
      %3078 = vmatmul.mubr.f32.gmra.mxu0 %v3002
      %v3079 = vpop.f32.mrf.mxu0
      %v3080 = vadd.f32 0.0, %v3079
      %v3081 = vpop.f32.mrf.mxu0
      %3082 = vmatprep.mubr.f32.mxu0 0.0
      %3083 = vmatmul.mubr.f32.gmra.mxu0 %v3005
      %v3084 = vpop.f32.mrf.mxu0
      %v3085 = vadd.f32 0.0, %v3084
      %v3086 = vpop.f32.mrf.mxu0
      %3087 = vmatprep.mubr.f32.mxu0 0.0
      %3088 = vmatmul.mubr.f32.gmra.mxu0 %v3008
      %v3089 = vpop.f32.mrf.mxu0
      %v3090 = vadd.f32 0.0, %v3089
      %v3091 = vpop.f32.mrf.mxu0
      %3092 = vmatprep.mubr.f32.mxu0 0.0
      %3093 = vmatmul.mubr.f32.gmra.mxu0 %v3011
      %v3094 = vpop.f32.mrf.mxu0
      %v3095 = vadd.f32 0.0, %v3094
      %v3096 = vpop.f32.mrf.mxu0
      %3097 = vdwg.mxu0
      %v3099 = vsel %vm895, %v2694, 0
      %v3102 = vsel %vm895, %v2695, 0
      %v3105 = vsel %vm895, %v2696, 0
      %v3108 = vsel %vm895, %v2697, 0
      %3110 = vmatprep.subr.mxu0 0.0
      %3111 = vmatpush1.msra.mxu0 0.0
      %3112 = vmatprep.subr.mxu0 0.0
      %3113 = vmatpush1.msra.mxu0 0.0
      %3114 = vmatprep.subr.mxu0 0.0
      %3115 = vmatpush1.msra.mxu0 0.0
      %3116 = vmatprep.subr.mxu0 0.0
      %3117 = vmatpush1.msra.mxu0 0.0
      %3118 = vmatprep.subr.mxu0 0.0
      %3119 = vmatpush1.msra.mxu0 0.0
      %3120 = vmatprep.subr.mxu0 0.0
      %3121 = vmatpush1.msra.mxu0 0.0
      %3122 = vmatprep.subr.mxu0 0.0
      %3123 = vmatpush1.msra.mxu0 0.0
      %3124 = vmatprep.subr.mxu0 0.0
      %3125 = vmatpush1.msra.mxu0 0.0
      %3126 = vmatprep.subr.mxu0 0.0
      %3127 = vmatpush1.msra.mxu0 0.0
      %3128 = vmatprep.subr.mxu0 0.0
      %3129 = vmatpush1.msra.mxu0 0.0
      %3130 = vmatprep.subr.mxu0 0.0
      %3131 = vmatpush1.msra.mxu0 0.0
      %3132 = vmatprep.subr.mxu0 0.0
      %3133 = vmatpush1.msra.mxu0 0.0
      %3134 = vmatprep.subr.mxu0 0.0
      %3135 = vmatpush1.msra.mxu0 %v2614
      %3136 = vmatprep.subr.mxu0 0.0
      %3137 = vmatpush1.msra.mxu0 %v2609
      %3138 = vmatprep.subr.mxu0 0.0
      %3139 = vmatpush1.msra.mxu0 %v2604
      %3140 = vmatprep.subr.mxu0 0.0
      %3141 = vmatpush1.msra.mxu0 %v2599
      %3142 = vmatprep.subr.mxu0 0.0
      %3143 = vmatpush2.msra.mxu0 0.0
      %3144 = vmatprep.subr.mxu0 0.0
      %3145 = vmatpush2.msra.mxu0 0.0
      %3146 = vmatprep.subr.mxu0 0.0
      %3147 = vmatpush2.msra.mxu0 0.0
      %3148 = vmatprep.subr.mxu0 0.0
      %3149 = vmatpush2.msra.mxu0 0.0
      %3150 = vmatprep.subr.mxu0 0.0
      %3151 = vmatpush2.msra.mxu0 0.0
      %3152 = vmatprep.subr.mxu0 0.0
      %3153 = vmatpush2.msra.mxu0 0.0
      %3154 = vmatprep.subr.mxu0 0.0
      %3155 = vmatpush2.msra.mxu0 0.0
      %3156 = vmatprep.subr.mxu0 0.0
      %3157 = vmatpush2.msra.mxu0 0.0
      %3158 = vmatprep.subr.mxu0 0.0
      %3159 = vmatpush2.msra.mxu0 0.0
      %3160 = vmatprep.subr.mxu0 0.0
      %3161 = vmatpush2.msra.mxu0 0.0
      %3162 = vmatprep.subr.mxu0 0.0
      %3163 = vmatpush2.msra.mxu0 0.0
      %3164 = vmatprep.subr.mxu0 0.0
      %3165 = vmatpush2.msra.mxu0 0.0
      %3166 = vmatprep.subr.mxu0 0.0
      %3167 = vmatpush2.msra.mxu0 0.0
      %3168 = vmatprep.subr.mxu0 0.0
      %3169 = vmatpush2.msra.mxu0 0.0
      %3170 = vmatprep.subr.mxu0 0.0
      %3171 = vmatpush2.msra.mxu0 0.0
      %3172 = vmatprep.subr.mxu0 0.0
      %3173 = vmatpush2.msra.mxu0 0.0
      %3174 = vmatprep.mubr.f32.mxu0 0.0
      %3175 = vmatmul.mubr.f32.gmra.mxu0 %v3099
      %v3176 = vpop.f32.mrf.mxu0
      %v3177 = vadd.f32 0.0, %v3176
      %v3178 = vpop.f32.mrf.mxu0
      %3179 = vmatprep.mubr.f32.mxu0 0.0
      %3180 = vmatmul.mubr.f32.gmra.mxu0 %v3102
      %v3181 = vpop.f32.mrf.mxu0
      %v3182 = vadd.f32 0.0, %v3181
      %v3183 = vpop.f32.mrf.mxu0
      %3184 = vmatprep.mubr.f32.mxu0 0.0
      %3185 = vmatmul.mubr.f32.gmra.mxu0 %v3105
      %v3186 = vpop.f32.mrf.mxu0
      %v3187 = vadd.f32 0.0, %v3186
      %v3188 = vpop.f32.mrf.mxu0
      %3189 = vmatprep.mubr.f32.mxu0 0.0
      %3190 = vmatmul.mubr.f32.gmra.mxu0 %v3108
      %v3191 = vpop.f32.mrf.mxu0
      %v3192 = vadd.f32 0.0, %v3191
      %v3193 = vpop.f32.mrf.mxu0
      %3194 = vdwg.mxu0
      %v3196 = vsel %vm895, %v2698, 0
      %v3199 = vsel %vm895, %v2699, 0
      %v3202 = vsel %vm895, %v2700, 0
      %v3205 = vsel %vm895, %v2701, 0
      %3207 = vmatprep.subr.mxu0 0.0
      %3208 = vmatpush1.msra.mxu0 0.0
      %3209 = vmatprep.subr.mxu0 0.0
      %3210 = vmatpush1.msra.mxu0 0.0
      %3211 = vmatprep.subr.mxu0 0.0
      %3212 = vmatpush1.msra.mxu0 0.0
      %3213 = vmatprep.subr.mxu0 0.0
      %3214 = vmatpush1.msra.mxu0 0.0
      %3215 = vmatprep.subr.mxu0 0.0
      %3216 = vmatpush1.msra.mxu0 0.0
      %3217 = vmatprep.subr.mxu0 0.0
      %3218 = vmatpush1.msra.mxu0 0.0
      %3219 = vmatprep.subr.mxu0 0.0
      %3220 = vmatpush1.msra.mxu0 0.0
      %3221 = vmatprep.subr.mxu0 0.0
      %3222 = vmatpush1.msra.mxu0 0.0
      %3223 = vmatprep.subr.mxu0 0.0
      %3224 = vmatpush1.msra.mxu0 0.0
      %3225 = vmatprep.subr.mxu0 0.0
      %3226 = vmatpush1.msra.mxu0 0.0
      %3227 = vmatprep.subr.mxu0 0.0
      %3228 = vmatpush1.msra.mxu0 0.0
      %3229 = vmatprep.subr.mxu0 0.0
      %3230 = vmatpush1.msra.mxu0 0.0
      %3231 = vmatprep.subr.mxu0 0.0
      %3232 = vmatpush1.msra.mxu0 %v2634
      %3233 = vmatprep.subr.mxu0 0.0
      %3234 = vmatpush1.msra.mxu0 %v2629
      %3235 = vmatprep.subr.mxu0 0.0
      %3236 = vmatpush1.msra.mxu0 %v2624
      %3237 = vmatprep.subr.mxu0 0.0
      %3238 = vmatpush1.msra.mxu0 %v2619
      %3239 = vmatprep.subr.mxu0 0.0
      %3240 = vmatpush2.msra.mxu0 0.0
      %3241 = vmatprep.subr.mxu0 0.0
      %3242 = vmatpush2.msra.mxu0 0.0
      %3243 = vmatprep.subr.mxu0 0.0
      %3244 = vmatpush2.msra.mxu0 0.0
      %3245 = vmatprep.subr.mxu0 0.0
      %3246 = vmatpush2.msra.mxu0 0.0
      %3247 = vmatprep.subr.mxu0 0.0
      %3248 = vmatpush2.msra.mxu0 0.0
      %3249 = vmatprep.subr.mxu0 0.0
      %3250 = vmatpush2.msra.mxu0 0.0
      %3251 = vmatprep.subr.mxu0 0.0
      %3252 = vmatpush2.msra.mxu0 0.0
      %3253 = vmatprep.subr.mxu0 0.0
      %3254 = vmatpush2.msra.mxu0 0.0
      %3255 = vmatprep.subr.mxu0 0.0
      %3256 = vmatpush2.msra.mxu0 0.0
      %3257 = vmatprep.subr.mxu0 0.0
      %3258 = vmatpush2.msra.mxu0 0.0
      %3259 = vmatprep.subr.mxu0 0.0
      %3260 = vmatpush2.msra.mxu0 0.0
      %3261 = vmatprep.subr.mxu0 0.0
      %3262 = vmatpush2.msra.mxu0 0.0
      %3263 = vmatprep.subr.mxu0 0.0
      %3264 = vmatpush2.msra.mxu0 0.0
      %3265 = vmatprep.subr.mxu0 0.0
      %3266 = vmatpush2.msra.mxu0 0.0
      %3267 = vmatprep.subr.mxu0 0.0
      %3268 = vmatpush2.msra.mxu0 0.0
      %3269 = vmatprep.subr.mxu0 0.0
      %3270 = vmatpush2.msra.mxu0 0.0
      %3271 = vmatprep.mubr.f32.mxu0 0.0
      %3272 = vmatmul.mubr.f32.gmra.mxu0 %v3196
      %v3273 = vpop.f32.mrf.mxu0
      %v3274 = vadd.f32 0.0, %v3273
      %v3275 = vpop.f32.mrf.mxu0
      %3276 = vmatprep.mubr.f32.mxu0 0.0
      %3277 = vmatmul.mubr.f32.gmra.mxu0 %v3199
      %v3278 = vpop.f32.mrf.mxu0
      %v3279 = vadd.f32 0.0, %v3278
      %v3280 = vpop.f32.mrf.mxu0
      %3281 = vmatprep.mubr.f32.mxu0 0.0
      %3282 = vmatmul.mubr.f32.gmra.mxu0 %v3202
      %v3283 = vpop.f32.mrf.mxu0
      %v3284 = vadd.f32 0.0, %v3283
      %v3285 = vpop.f32.mrf.mxu0
      %3286 = vmatprep.mubr.f32.mxu0 0.0
      %3287 = vmatmul.mubr.f32.gmra.mxu0 %v3205
      %v3288 = vpop.f32.mrf.mxu0
      %v3289 = vadd.f32 0.0, %v3288
      %v3290 = vpop.f32.mrf.mxu0
      %3291 = vdwg.mxu0
      %v3293 = vsel %vm895, %v2702, 0
      %v3296 = vsel %vm895, %v2703, 0
      %v3299 = vsel %vm895, %v2704, 0
      %v3302 = vsel %vm895, %v2705, 0
      %3304 = vmatprep.subr.mxu0 0.0
      %3305 = vmatpush1.msra.mxu0 0.0
      %3306 = vmatprep.subr.mxu0 0.0
      %3307 = vmatpush1.msra.mxu0 0.0
      %3308 = vmatprep.subr.mxu0 0.0
      %3309 = vmatpush1.msra.mxu0 0.0
      %3310 = vmatprep.subr.mxu0 0.0
      %3311 = vmatpush1.msra.mxu0 0.0
      %3312 = vmatprep.subr.mxu0 0.0
      %3313 = vmatpush1.msra.mxu0 0.0
      %3314 = vmatprep.subr.mxu0 0.0
      %3315 = vmatpush1.msra.mxu0 0.0
      %3316 = vmatprep.subr.mxu0 0.0
      %3317 = vmatpush1.msra.mxu0 0.0
      %3318 = vmatprep.subr.mxu0 0.0
      %3319 = vmatpush1.msra.mxu0 0.0
      %3320 = vmatprep.subr.mxu0 0.0
      %3321 = vmatpush1.msra.mxu0 0.0
      %3322 = vmatprep.subr.mxu0 0.0
      %3323 = vmatpush1.msra.mxu0 0.0
      %3324 = vmatprep.subr.mxu0 0.0
      %3325 = vmatpush1.msra.mxu0 0.0
      %3326 = vmatprep.subr.mxu0 0.0
      %3327 = vmatpush1.msra.mxu0 0.0
      %3328 = vmatprep.subr.mxu0 0.0
      %3329 = vmatpush1.msra.mxu0 %v2654
      %3330 = vmatprep.subr.mxu0 0.0
      %3331 = vmatpush1.msra.mxu0 %v2649
      %3332 = vmatprep.subr.mxu0 0.0
      %3333 = vmatpush1.msra.mxu0 %v2644
      %3334 = vmatprep.subr.mxu0 0.0
      %3335 = vmatpush1.msra.mxu0 %v2639
      %3336 = vmatprep.subr.mxu0 0.0
      %3337 = vmatpush2.msra.mxu0 0.0
      %3338 = vmatprep.subr.mxu0 0.0
      %3339 = vmatpush2.msra.mxu0 0.0
      %3340 = vmatprep.subr.mxu0 0.0
      %3341 = vmatpush2.msra.mxu0 0.0
      %3342 = vmatprep.subr.mxu0 0.0
      %3343 = vmatpush2.msra.mxu0 0.0
      %3344 = vmatprep.subr.mxu0 0.0
      %3345 = vmatpush2.msra.mxu0 0.0
      %3346 = vmatprep.subr.mxu0 0.0
      %3347 = vmatpush2.msra.mxu0 0.0
      %3348 = vmatprep.subr.mxu0 0.0
      %3349 = vmatpush2.msra.mxu0 0.0
      %3350 = vmatprep.subr.mxu0 0.0
      %3351 = vmatpush2.msra.mxu0 0.0
      %3352 = vmatprep.subr.mxu0 0.0
      %3353 = vmatpush2.msra.mxu0 0.0
      %3354 = vmatprep.subr.mxu0 0.0
      %3355 = vmatpush2.msra.mxu0 0.0
      %3356 = vmatprep.subr.mxu0 0.0
      %3357 = vmatpush2.msra.mxu0 0.0
      %3358 = vmatprep.subr.mxu0 0.0
      %3359 = vmatpush2.msra.mxu0 0.0
      %3360 = vmatprep.subr.mxu0 0.0
      %3361 = vmatpush2.msra.mxu0 0.0
      %3362 = vmatprep.subr.mxu0 0.0
      %3363 = vmatpush2.msra.mxu0 0.0
      %3364 = vmatprep.subr.mxu0 0.0
      %3365 = vmatpush2.msra.mxu0 0.0
      %3366 = vmatprep.subr.mxu0 0.0
      %3367 = vmatpush2.msra.mxu0 0.0
      %3368 = vmatprep.mubr.f32.mxu0 0.0
      %3369 = vmatmul.mubr.f32.gmra.mxu0 %v3293
      %v3370 = vpop.f32.mrf.mxu0
      %v3371 = vadd.f32 0.0, %v3370
      %v3372 = vpop.f32.mrf.mxu0
      %3373 = vmatprep.mubr.f32.mxu0 0.0
      %3374 = vmatmul.mubr.f32.gmra.mxu0 %v3296
      %v3375 = vpop.f32.mrf.mxu0
      %v3376 = vadd.f32 0.0, %v3375
      %v3377 = vpop.f32.mrf.mxu0
      %3378 = vmatprep.mubr.f32.mxu0 0.0
      %3379 = vmatmul.mubr.f32.gmra.mxu0 %v3299
      %v3380 = vpop.f32.mrf.mxu0
      %v3381 = vadd.f32 0.0, %v3380
      %v3382 = vpop.f32.mrf.mxu0
      %3383 = vmatprep.mubr.f32.mxu0 0.0
      %3384 = vmatmul.mubr.f32.gmra.mxu0 %v3302
      %v3385 = vpop.f32.mrf.mxu0
      %v3386 = vadd.f32 0.0, %v3385
      %v3387 = vpop.f32.mrf.mxu0
      %3388 = vdwg.mxu0
      %v3390 = vsel %vm895, %v2706, 0
      %v3393 = vsel %vm895, %v2707, 0
      %v3396 = vsel %vm895, %v2708, 0
      %v3399 = vsel %vm895, %v2709, 0
      %3401 = vmatprep.subr.mxu0 0.0
      %3402 = vmatpush1.msra.mxu0 0.0
      %3403 = vmatprep.subr.mxu0 0.0
      %3404 = vmatpush1.msra.mxu0 0.0
      %3405 = vmatprep.subr.mxu0 0.0
      %3406 = vmatpush1.msra.mxu0 0.0
      %3407 = vmatprep.subr.mxu0 0.0
      %3408 = vmatpush1.msra.mxu0 0.0
      %3409 = vmatprep.subr.mxu0 0.0
      %3410 = vmatpush1.msra.mxu0 0.0
      %3411 = vmatprep.subr.mxu0 0.0
      %3412 = vmatpush1.msra.mxu0 0.0
      %3413 = vmatprep.subr.mxu0 0.0
      %3414 = vmatpush1.msra.mxu0 0.0
      %3415 = vmatprep.subr.mxu0 0.0
      %3416 = vmatpush1.msra.mxu0 0.0
      %3417 = vmatprep.subr.mxu0 0.0
      %3418 = vmatpush1.msra.mxu0 0.0
      %3419 = vmatprep.subr.mxu0 0.0
      %3420 = vmatpush1.msra.mxu0 0.0
      %3421 = vmatprep.subr.mxu0 0.0
      %3422 = vmatpush1.msra.mxu0 0.0
      %3423 = vmatprep.subr.mxu0 0.0
      %3424 = vmatpush1.msra.mxu0 0.0
      %3425 = vmatprep.subr.mxu0 0.0
      %3426 = vmatpush1.msra.mxu0 %v2674
      %3427 = vmatprep.subr.mxu0 0.0
      %3428 = vmatpush1.msra.mxu0 %v2669
      %3429 = vmatprep.subr.mxu0 0.0
      %3430 = vmatpush1.msra.mxu0 %v2664
      %3431 = vmatprep.subr.mxu0 0.0
      %3432 = vmatpush1.msra.mxu0 %v2659
      %3433 = vmatprep.subr.mxu0 0.0
      %3434 = vmatpush2.msra.mxu0 0.0
      %3435 = vmatprep.subr.mxu0 0.0
      %3436 = vmatpush2.msra.mxu0 0.0
      %3437 = vmatprep.subr.mxu0 0.0
      %3438 = vmatpush2.msra.mxu0 0.0
      %3439 = vmatprep.subr.mxu0 0.0
      %3440 = vmatpush2.msra.mxu0 0.0
      %3441 = vmatprep.subr.mxu0 0.0
      %3442 = vmatpush2.msra.mxu0 0.0
      %3443 = vmatprep.subr.mxu0 0.0
      %3444 = vmatpush2.msra.mxu0 0.0
      %3445 = vmatprep.subr.mxu0 0.0
      %3446 = vmatpush2.msra.mxu0 0.0
      %3447 = vmatprep.subr.mxu0 0.0
      %3448 = vmatpush2.msra.mxu0 0.0
      %3449 = vmatprep.subr.mxu0 0.0
      %3450 = vmatpush2.msra.mxu0 0.0
      %3451 = vmatprep.subr.mxu0 0.0
      %3452 = vmatpush2.msra.mxu0 0.0
      %3453 = vmatprep.subr.mxu0 0.0
      %3454 = vmatpush2.msra.mxu0 0.0
      %3455 = vmatprep.subr.mxu0 0.0
      %3456 = vmatpush2.msra.mxu0 0.0
      %3457 = vmatprep.subr.mxu0 0.0
      %3458 = vmatpush2.msra.mxu0 0.0
      %3459 = vmatprep.subr.mxu0 0.0
      %3460 = vmatpush2.msra.mxu0 0.0
      %3461 = vmatprep.subr.mxu0 0.0
      %3462 = vmatpush2.msra.mxu0 0.0
      %3463 = vmatprep.subr.mxu0 0.0
      %3464 = vmatpush2.msra.mxu0 0.0
      %3465 = vmatprep.mubr.f32.mxu0 0.0
      %3466 = vmatmul.mubr.f32.gmra.mxu0 %v3390
      %v3467 = vpop.f32.mrf.mxu0
      %v3468 = vadd.f32 0.0, %v3467
      %v3469 = vpop.f32.mrf.mxu0
      %3470 = vmatprep.mubr.f32.mxu0 0.0
      %3471 = vmatmul.mubr.f32.gmra.mxu0 %v3393
      %v3472 = vpop.f32.mrf.mxu0
      %v3473 = vadd.f32 0.0, %v3472
      %v3474 = vpop.f32.mrf.mxu0
      %3475 = vmatprep.mubr.f32.mxu0 0.0
      %3476 = vmatmul.mubr.f32.gmra.mxu0 %v3396
      %v3477 = vpop.f32.mrf.mxu0
      %v3478 = vadd.f32 0.0, %v3477
      %v3479 = vpop.f32.mrf.mxu0
      %3480 = vmatprep.mubr.f32.mxu0 0.0
      %3481 = vmatmul.mubr.f32.gmra.mxu0 %v3399
      %v3482 = vpop.f32.mrf.mxu0
      %v3483 = vadd.f32 0.0, %v3482
      %v3484 = vpop.f32.mrf.mxu0
      %3485 = vdwg.mxu0
      %v3486 = vadd.f32 %v1751, %v2789
      %v3487 = vadd.f32 %v1756, %v2794
      %v3488 = vadd.f32 %v1761, %v2799
      %v3489 = vadd.f32 %v1766, %v2804
      %v3490 = vadd.f32 %v1848, %v2886
      %v3491 = vadd.f32 %v1853, %v2891
      %v3492 = vadd.f32 %v1858, %v2896
      %v3493 = vadd.f32 %v1863, %v2901
      %v3494 = vadd.f32 %v1945, %v2983
      %v3495 = vadd.f32 %v1950, %v2988
      %v3496 = vadd.f32 %v1955, %v2993
      %v3497 = vadd.f32 %v1960, %v2998
      %v3498 = vadd.f32 %v2042, %v3080
      %v3499 = vadd.f32 %v2047, %v3085
      %v3500 = vadd.f32 %v2052, %v3090
      %v3501 = vadd.f32 %v2057, %v3095
      %v3502 = vadd.f32 %v2139, %v3177
      %v3503 = vadd.f32 %v2144, %v3182
      %v3504 = vadd.f32 %v2149, %v3187
      %v3505 = vadd.f32 %v2154, %v3192
      %v3506 = vadd.f32 %v2236, %v3274
      %v3507 = vadd.f32 %v2241, %v3279
      %v3508 = vadd.f32 %v2246, %v3284
      %v3509 = vadd.f32 %v2251, %v3289
      %v3510 = vadd.f32 %v2333, %v3371
      %v3511 = vadd.f32 %v2338, %v3376
      %v3512 = vadd.f32 %v2343, %v3381
      %v3513 = vadd.f32 %v2348, %v3386
      %v3514 = vadd.f32 %v2430, %v3468
      %v3515 = vadd.f32 %v2435, %v3473
      %v3516 = vadd.f32 %v2440, %v3478
      %v3517 = vadd.f32 %v2445, %v3483
      %v3518 = vld [vmem:[%s3] sm:$0xff]
      %v3519 = vld [vmem:[%s3 + $0x8] sm:$0xff]
      %v3520 = vld [vmem:[%s3 + $0x10] sm:$0xff]
      %v3521 = vld [vmem:[%s3 + $0x18] sm:$0xff]
      %v3522 = vadd.f32 %v3486, %v3518
      %v3523 = vadd.f32 %v3487, %v3519
      %v3524 = vadd.f32 %v3488, %v3520
      %v3525 = vadd.f32 %v3489, %v3521
      %v3526 = vadd.f32 %v3490, %v3518
      %v3527 = vadd.f32 %v3491, %v3519
      %v3528 = vadd.f32 %v3492, %v3520
      %v3529 = vadd.f32 %v3493, %v3521
      %v3530 = vadd.f32 %v3494, %v3518
      %v3531 = vadd.f32 %v3495, %v3519
      %v3532 = vadd.f32 %v3496, %v3520
      %v3533 = vadd.f32 %v3497, %v3521
      %v3534 = vadd.f32 %v3498, %v3518
      %v3535 = vadd.f32 %v3499, %v3519
      %v3536 = vadd.f32 %v3500, %v3520
      %v3537 = vadd.f32 %v3501, %v3521
      %v3538 = vadd.f32 %v3502, %v3518
      %v3539 = vadd.f32 %v3503, %v3519
      %v3540 = vadd.f32 %v3504, %v3520
      %v3541 = vadd.f32 %v3505, %v3521
      %v3542 = vadd.f32 %v3506, %v3518
      %v3543 = vadd.f32 %v3507, %v3519
      %v3544 = vadd.f32 %v3508, %v3520
      %v3545 = vadd.f32 %v3509, %v3521
      %v3546 = vadd.f32 %v3510, %v3518
      %v3547 = vadd.f32 %v3511, %v3519
      %v3548 = vadd.f32 %v3512, %v3520
      %v3549 = vadd.f32 %v3513, %v3521
      %v3550 = vadd.f32 %v3514, %v3518
      %v3551 = vadd.f32 %v3515, %v3519
      %v3552 = vadd.f32 %v3516, %v3520
      %v3553 = vadd.f32 %v3517, %v3521
      %vm3554 = vcmask 64512
      %3555 = vst.msk [vmem:[%s240] sm:$0xff] %vm3554, %v3522
      %3556 = vst.msk [vmem:[%s240 + $0x8] sm:$0xff] %vm3554, %v3523
      %3557 = vst.msk [vmem:[%s240 + $0x10] sm:$0xff] %vm3554, %v3524
      %3558 = vst.msk [vmem:[%s240 + $0x18] sm:$0xff] %vm3554, %v3525
      %3559 = vst.msk [vmem:[%s240 + $0x20] sm:$0xff] %vm3554, %v3526
      %3560 = vst.msk [vmem:[%s240 + $0x28] sm:$0xff] %vm3554, %v3527
      %3561 = vst.msk [vmem:[%s240 + $0x30] sm:$0xff] %vm3554, %v3528
      %3562 = vst.msk [vmem:[%s240 + $0x38] sm:$0xff] %vm3554, %v3529
      %3563 = vst.msk [vmem:[%s240 + $0x40] sm:$0xff] %vm3554, %v3530
      %3564 = vst.msk [vmem:[%s240 + $0x48] sm:$0xff] %vm3554, %v3531
      %3565 = vst.msk [vmem:[%s240 + $0x50] sm:$0xff] %vm3554, %v3532
      %3566 = vst.msk [vmem:[%s240 + $0x58] sm:$0xff] %vm3554, %v3533
      %3567 = vst.msk [vmem:[%s240 + $0x60] sm:$0xff] %vm3554, %v3534
      %3568 = vst.msk [vmem:[%s240 + $0x68] sm:$0xff] %vm3554, %v3535
      %3569 = vst.msk [vmem:[%s240 + $0x70] sm:$0xff] %vm3554, %v3536
      %3570 = vst.msk [vmem:[%s240 + $0x78] sm:$0xff] %vm3554, %v3537
      %3571 = vst.msk [vmem:[%s240 + $0x80] sm:$0xff] %vm3554, %v3538
      %3572 = vst.msk [vmem:[%s240 + $0x88] sm:$0xff] %vm3554, %v3539
      %3573 = vst.msk [vmem:[%s240 + $0x90] sm:$0xff] %vm3554, %v3540
      %3574 = vst.msk [vmem:[%s240 + $0x98] sm:$0xff] %vm3554, %v3541
      %3575 = vst.msk [vmem:[%s240 + $0xa0] sm:$0xff] %vm3554, %v3542
      %3576 = vst.msk [vmem:[%s240 + $0xa8] sm:$0xff] %vm3554, %v3543
      %3577 = vst.msk [vmem:[%s240 + $0xb0] sm:$0xff] %vm3554, %v3544
      %3578 = vst.msk [vmem:[%s240 + $0xb8] sm:$0xff] %vm3554, %v3545
      %3579 = vst.msk [vmem:[%s240 + $0xc0] sm:$0xff] %vm3554, %v3546
      %3580 = vst.msk [vmem:[%s240 + $0xc8] sm:$0xff] %vm3554, %v3547
      %3581 = vst.msk [vmem:[%s240 + $0xd0] sm:$0xff] %vm3554, %v3548
      %3582 = vst.msk [vmem:[%s240 + $0xd8] sm:$0xff] %vm3554, %v3549
      %3583 = vst.msk [vmem:[%s240 + $0xe0] sm:$0xff] %vm3554, %v3550
      %3584 = vst.msk [vmem:[%s240 + $0xe8] sm:$0xff] %vm3554, %v3551
      %3585 = vst.msk [vmem:[%s240 + $0xf0] sm:$0xff] %vm3554, %v3552
      %3586 = vst.msk [vmem:[%s240 + $0xf8] sm:$0xff] %vm3554, %v3553
      %s3587 = smul.u32 8, %s20
      %p3588 = scmp.lt.s32.totalorder %s19, 1
      %s3589 = scalar_select %p3588, %s19, 1
      %p3590 = scmp.lt.s32.totalorder %s3587, 15
      %s3591 = scalar_select %p3590, %s3587, 15
      %s3592 = smul.addr %s3591, 4
      %s3593 = smul.addr %s3589, 64
      %s3594 = sadd.s32 %s3592, %s3593
      %s3595 = smul.addr %s3594, 8
      %s3596 = scalar_lea.vmem %s4, %s3595
      // Predicated region
      $region37: #{tpu_custom_call.1} parent=35 // pred_check
        %p3597 = pneg %p138
      $region38: #{tpu_custom_call.1} parent=35 // pred_check_branch
        %3599 = sbr.rel (%p3597) target = $region40
      $region39: #{tpu_custom_call.1} parent=35 // pred_region
        %s3600 = smul.u32 8, %s20
      $region40: #{tpu_custom_call.1} parent=35 // pred_fallthru
        _
    $region36: #{tpu_custom_call.1} parent=5 // pred_fallthru
      _
    %p3601 = scmp.le.s32.totalorder 2, %s10
    // Predicated region
    $region41: #{tpu_custom_call.1} parent=5 // pred_check
      %p3602 = pneg %p3601
    $region42: #{tpu_custom_call.1} parent=5 // pred_check_branch
      %3604 = sbr.rel (%p3602) target = $region44
    $region43: #{tpu_custom_call.1} parent=5 // pred_region
      %s3605 = ssub.s32 %s10, 2
      // Predicated region
      $region45: #{tpu_custom_call.1} parent=43 // pred_check
        %p3606 = pneg %p144
      $region46: #{tpu_custom_call.1} parent=43 // pred_check_branch
        %3608 = sbr.rel (%p3606) target = $region48
      $region47: #{tpu_custom_call.1} parent=43 // pred_region
        %s3609 = smul.u32 8, %s22
        %p3610 = scmp.lt.s32.totalorder %s21, 1
        %s3611 = scalar_select %p3610, %s21, 1
        %p3612 = scmp.lt.s32.totalorder %s3609, 15
        %s3613 = scalar_select %p3612, %s3609, 15
        %s3614 = smul.addr %s3613, 4
        %s3615 = smul.addr %s3611, 64
        %s3616 = sadd.s32 %s3614, %s3615
        %s3617 = smul.addr %s3616, 8
        %s3618 = scalar_lea.vmem %s4, %s3617
      $region48: #{tpu_custom_call.1} parent=43 // pred_fallthru
        _
    $region44: #{tpu_custom_call.1} parent=5 // pred_fallthru
      _
  $region6: #{tpu_custom_call.1} parent=0 // loop_footer
    %s14 = sadd.s32 1, %s10
  $region7: #{tpu_custom_call.1} parent=0 // loop_footer_branch
    %9 = sbr.rel target = $region3
  $region8: #{tpu_custom_call.1} parent=0 // loop_exit
    _

</llo_original>
